<compile_context>
chip_gen: v6e
topology: v6e:2x2x1
jax: 0.10.0
libtpu: 0.0.40
codegen_flags: <defaults>
</compile_context>

<pallas_src>
import math
import functools
import numpy as np
import jax
import jax.numpy as jnp
from jax.experimental import pallas as pl
from jax.experimental.pallas import tpu as pltpu

NEG_INF = -1000000.0
LN_EPS = 1e-5


# ---------------------------------------------------------------------------
# Fused kernel:  LN1 -> QKV -> MHSA(+rel-pos bias, +optional mask) -> proj
#                -> residual -> LN2 -> MLP(GELU) -> residual
# one grid step = WT windows, flattened to R = WT*N token rows.
# ---------------------------------------------------------------------------
def _fused_block_kernel(x_ref, *rest, num_heads, head_dim, scale, wt, n_tok, has_mask):
    if has_mask:
        mask_ref, rest = rest[0], rest[1:]
    else:
        mask_ref = None
    (rpb_ref, g1_ref, b1_ref, wqkv_ref, bqkv_ref, wproj_ref, bproj_ref,
     g2_ref, b2_ref, w1_ref, b1m_ref, w2_ref, b2m_ref,
     o_ref, qkv_scr, attn_scr) = rest

    C = num_heads * head_dim
    R = wt * n_tok

    # ---- LayerNorm 1 (per token) ------------------------------------------
    xf = x_ref[...].reshape(R, C)                               # (R, C)
    mu = jnp.mean(xf, axis=-1, keepdims=True)
    var = jnp.mean((xf - mu) ** 2, axis=-1, keepdims=True)
    xn = (xf - mu) * jax.lax.rsqrt(var + LN_EPS) * g1_ref[...] + b1_ref[...]

    # ---- fused QKV projection: one (R,C)x(C,3C) MXU matmul -----------------
    qkv = jnp.dot(xn, wqkv_ref[...], preferred_element_type=jnp.float32) + bqkv_ref[...]
    qkv_scr[...] = qkv.reshape(wt, n_tok, 3 * C)

    rpb = rpb_ref[...]                                          # (H, N, N)
    mask = mask_ref[...] if has_mask else None                  # (wt, N, N)

    # ---- attention, per head, batched over the wt windows ------------------
    for h in range(num_heads):
        c0 = h * head_dim
        q = qkv_scr[:, :, c0:c0 + head_dim] * scale             # (wt, N, D)
        k = qkv_scr[:, :, C + c0:C + c0 + head_dim]
        v = qkv_scr[:, :, 2 * C + c0:2 * C + c0 + head_dim]
        s = jnp.einsum('wnd,wmd->wnm', q, k,
                       preferred_element_type=jnp.float32)      # (wt, N, N)
        s = s + rpb[h][None, :, :]
        if has_mask:
            s = s + mask
        m = jnp.max(s, axis=-1, keepdims=True)
        e = jnp.exp(s - m)
        p = e * pl.reciprocal(jnp.sum(e, axis=-1, keepdims=True), approx=True)
        attn_scr[:, :, c0:c0 + head_dim] = jnp.einsum(
            'wnm,wmd->wnd', p, v, preferred_element_type=jnp.float32)

    # ---- single output projection + residual -------------------------------
    oh = attn_scr[...].reshape(R, C)
    attn = jnp.dot(oh, wproj_ref[...], preferred_element_type=jnp.float32) + bproj_ref[...]
    z = xf + attn                                               # shortcut + attn

    # ---- LayerNorm 2 + MLP + residual --------------------------------------
    mu2 = jnp.mean(z, axis=-1, keepdims=True)
    var2 = jnp.mean((z - mu2) ** 2, axis=-1, keepdims=True)
    zn = (z - mu2) * jax.lax.rsqrt(var2 + LN_EPS) * g2_ref[...] + b2_ref[...]
    hdn = jnp.dot(zn, w1_ref[...], preferred_element_type=jnp.float32) + b1m_ref[...]
    # exact (erf) GELU, matching nn.GELU default
    hdn = 0.5 * hdn * (1.0 + jax.lax.erf(hdn * (1.0 / math.sqrt(2.0))))
    y = jnp.dot(hdn, w2_ref[...], preferred_element_type=jnp.float32) + b2m_ref[...]
    o_ref[...] = (z + y).reshape(wt, n_tok, C)


def _pick_wt(n_win, n_group, has_mask, n_tok, C):
    """Largest window batch WT s.t. WT | n_win, WT | nG (if masked), grid >= 2
    (keeps both v7x TensorCores busy) and the block stays small vs VMEM
    (budgeted conservatively against v7x's 64 MiB)."""
    best = 1
    for wt in range(1, n_win + 1):
        if n_win % wt:
            continue
        if has_mask and n_group % wt:
            continue
        if wt * n_tok * C * 4 > (2 << 20):
            continue
        if n_win // wt >= 2:
            best = wt
    return best


def fused_block_windows(x_win, rpb, attn_mask, p, *, num_heads, scale, n_group):
    nWB, N, C = x_win.shape
    hidden = p['w1'].shape[1]
    has_mask = attn_mask is not None
    WT = _pick_wt(nWB, n_group, has_mask, N, C)
    H = num_heads
    D = C // num_heads

    const2 = lambda shp: pl.BlockSpec(shp, lambda i: (0, 0))
    const3 = lambda shp: pl.BlockSpec(shp, lambda i: (0, 0, 0))

    kern = functools.partial(_fused_block_kernel, num_heads=H, head_dim=D,
                             scale=scale, wt=WT, n_tok=N, has_mask=has_mask)

    in_specs = [pl.BlockSpec((WT, N, C), lambda i: (i, 0, 0))]
    inputs = [x_win]
    if has_mask:
        nblk = n_group // WT
        # mask repeats with period nG over the window index -> modulo index_map
        in_specs.append(pl.BlockSpec((WT, N, N), lambda i: (i % nblk, 0, 0)))
        inputs.append(attn_mask)
    in_specs += [
        const3((H, N, N)),                                   # relative pos bias
        const2((1, C)), const2((1, C)),                      # norm1 gamma/beta
        const2((C, 3 * C)), const2((1, 3 * C)),              # fused qkv (pre-transposed)
        const2((C, C)), const2((1, C)),                      # proj
        const2((1, C)), const2((1, C)),                      # norm2 gamma/beta
        const2((C, hidden)), const2((1, hidden)),            # fc1
        const2((hidden, C)), const2((1, C)),                 # fc2
    ]
    inputs += [rpb, p['g1'], p['b1'], p['wqkv'], p['bqkv'], p['wproj'], p['bproj'],
               p['g2'], p['b2'], p['w1'], p['b1m'], p['w2'], p['b2m']]

    return pl.pallas_call(
        kern,
        out_shape=jax.ShapeDtypeStruct((nWB, N, C), jnp.float32),
        grid=(nWB // WT,),
        in_specs=in_specs,
        out_specs=pl.BlockSpec((WT, N, C), lambda i: (i, 0, 0)),
        scratch_shapes=[pltpu.VMEM((WT, N, 3 * C), jnp.float32),   # qkv staging
                        pltpu.VMEM((WT, N, C), jnp.float32)],      # concat'd head outputs
        compiler_params=pltpu.CompilerParams(dimension_semantics=("parallel",)),
    )(*inputs)


# ---------------------------------------------------------------------------
# DynamicPosBias (tiny, data-independent) + relative position index  -- JAX glue
# ---------------------------------------------------------------------------
def _layernorm(x, g, b):
    mu = x.mean(-1, keepdims=True)
    var = ((x - mu) ** 2).mean(-1, keepdims=True)
    return (x - mu) * jax.lax.rsqrt(var + LN_EPS) * g + b


def dynamic_pos_bias(pb, Gh, Gw, num_heads):
    ph = jnp.arange(1 - Gh, Gh, dtype=jnp.float32)
    pw = jnp.arange(1 - Gw, Gw, dtype=jnp.float32)
    bh, bw = jnp.meshgrid(ph, pw, indexing='ij')
    biases = jnp.stack([bh.reshape(-1), bw.reshape(-1)], axis=1)     # (M, 2)

    pos = biases @ pb['proj_w'].T + pb['proj_b']
    pos = jax.nn.relu(_layernorm(pos, pb['ln1_g'], pb['ln1_b'])) @ pb['l1_w'].T + pb['l1_b']
    pos = jax.nn.relu(_layernorm(pos, pb['ln2_g'], pb['ln2_b'])) @ pb['l2_w'].T + pb['l2_b']
    pos = jax.nn.relu(_layernorm(pos, pb['ln3_g'], pb['ln3_b'])) @ pb['l3_w'].T + pb['l3_b']
    # pos: (M, num_heads)

    # relative position index (static numpy)
    ch, cw = np.meshgrid(np.arange(Gh), np.arange(Gw), indexing='ij')
    coords = np.stack([ch.reshape(-1), cw.reshape(-1)])              # (2, N)
    rel = coords[:, :, None] - coords[:, None, :]                    # (2, N, N)
    rel = rel.transpose(1, 2, 0).astype(np.int64)
    rel[:, :, 0] += Gh - 1
    rel[:, :, 1] += Gw - 1
    rel[:, :, 0] *= 2 * Gw - 1
    idx = rel.sum(-1)                                                # (N, N)

    N = Gh * Gw
    rpb = pos[jnp.asarray(idx.reshape(-1))].reshape(N, N, num_heads)
    return jnp.transpose(rpb, (2, 0, 1))                             # (H, N, N)


# ---------------------------------------------------------------------------
# Full block forward
# ---------------------------------------------------------------------------
def crossformer_block(x, H, W, params, *, num_heads, group_size, interval, lsda_flag):
    B, L, C = x.shape
    assert L == H * W
    if min(H, W) <= group_size:
        lsda_flag = 0
        group_size = min(H, W)
    scale = (C // num_heads) ** (-0.5)

    size_div = interval if lsda_flag == 1 else group_size
    pad_r = (size_div - W % size_div) % size_div
    pad_b = (size_div - H % size_div) % size_div

    xg = x.reshape(B, H, W, C)
    if pad_r > 0 or pad_b > 0:
        xg = jnp.pad(xg, ((0, 0), (0, pad_b), (0, pad_r), (0, 0)))
    Hp, Wp = H + pad_b, W + pad_r

    # window partition (pure token permutation; XLA glue)
    if lsda_flag == 0:
        G = Gh = Gw = group_size
        nG = (Hp // G) * (Wp // G)
        xw = xg.reshape(B, Hp // G, G, Wp // G, G, C).transpose(0, 1, 3, 2, 4, 5)
        xw = xw.reshape(B * nG, G * G, C)
    else:
        I = interval
        Gh, Gw = Hp // I, Wp // I
        nG = I * I
        xw = xg.reshape(B, Gh, I, Gw, I, C).transpose(0, 2, 4, 1, 3, 5)
        xw = xw.reshape(B * nG, Gh * Gw, C)
    N = Gh * Gw

    # additive key mask only when padding exists; kept (nG, N, N), never tiled over B.
    # NOTE: if an entire window were padding, its rows are garbage but get sliced off below.
    attn_mask = None
    if pad_r > 0 or pad_b > 0:
        mask2d = jnp.zeros((Hp, Wp), jnp.float32)
        if pad_b > 0:
            mask2d = mask2d.at[-pad_b:, :].set(-1.0)
        if pad_r > 0:
            mask2d = mask2d.at[:, -pad_r:].set(-1.0)
        if lsda_flag == 0:
            G = group_size
            mw = mask2d.reshape(Hp // G, G, Wp // G, G).transpose(0, 2, 1, 3).reshape(nG, N)
        else:
            I = interval
            mw = mask2d.reshape(Gh, I, Gw, I).transpose(1, 3, 0, 2).reshape(nG, N)
        attn_mask = jnp.broadcast_to(
            jnp.where(mw[:, None, :] < 0, NEG_INF, 0.0), (nG, N, N))

    rpb = dynamic_pos_bias(params['pos'], Gh, Gw, num_heads)         # (H, N, N)

    out_win = fused_block_windows(xw, rpb, attn_mask, params['blk'],
                                  num_heads=num_heads, scale=scale, n_group=nG)

    # reverse window partition, drop padding
    if lsda_flag == 0:
        G = group_size
        xo = out_win.reshape(B, Hp // G, Wp // G, G, G, C).transpose(0, 1, 3, 2, 4, 5)
    else:
        I = interval
        xo = out_win.reshape(B, I, I, Gh, Gw, C).transpose(0, 3, 1, 4, 2, 5)
    xo = xo.reshape(B, Hp, Wp, C)
    if pad_r > 0 or pad_b > 0:
        xo = xo[:, :H, :W, :]
    return xo.reshape(B, L, C)


# ---------------------------------------------------------------------------
# Deterministic parameter construction (torch-layout weights, pre-transposed
# for in-kernel jnp.dot)
# ---------------------------------------------------------------------------
def make_params(key, dim, num_heads, mlp_ratio):
    hidden = int(dim * mlp_ratio)
    pb_dim = dim // 4
    pos_dim = pb_dim // 4

    ks = jax.random.split(key, 16)
    nrm = lambda k, shape, s=0.02: jax.random.normal(k, shape, jnp.float32) * s

    wqkv = nrm(ks[0], (3 * dim, dim))        # torch layout (out, in)
    bqkv = nrm(ks[1], (3 * dim,))
    wproj = nrm(ks[2], (dim, dim))
    bproj = nrm(ks[3], (dim,))
    w1 = nrm(ks[12], (hidden, dim))
    b1 = nrm(ks[13], (hidden,))
    w2 = nrm(ks[14], (dim, hidden))
    b2 = nrm(ks[15], (dim,))

    blk = dict(
        g1=jnp.ones((1, dim), jnp.float32), b1=jnp.zeros((1, dim), jnp.float32),
        wqkv=wqkv.T, bqkv=bqkv.reshape(1, 3 * dim),
        wproj=wproj.T, bproj=bproj.reshape(1, dim),
        g2=jnp.ones((1, dim), jnp.float32), b2=jnp.zeros((1, dim), jnp.float32),
        w1=w1.T, b1m=b1.reshape(1, hidden),
        w2=w2.T, b2m=b2.reshape(1, dim),
    )

    pos = dict(
        proj_w=nrm(ks[4], (pos_dim, 2)), proj_b=nrm(ks[5], (pos_dim,)),
        ln1_g=jnp.ones((pos_dim,), jnp.float32), ln1_b=jnp.zeros((pos_dim,), jnp.float32),
        l1_w=nrm(ks[6], (pos_dim, pos_dim)), l1_b=nrm(ks[7], (pos_dim,)),
        ln2_g=jnp.ones((pos_dim,), jnp.float32), ln2_b=jnp.zeros((pos_dim,), jnp.float32),
        l2_w=nrm(ks[8], (pos_dim, pos_dim)), l2_b=nrm(ks[9], (pos_dim,)),
        ln3_g=jnp.ones((pos_dim,), jnp.float32), ln3_b=jnp.zeros((pos_dim,), jnp.float32),
        l3_w=nrm(ks[10], (num_heads, pos_dim)), l3_b=nrm(ks[11], (num_heads,)),
    )
    return dict(blk=blk, pos=pos)


if __name__ == "__main__":
    # Config: dim=32, heads=4, group_size=4, H=W=8, B=2 (SDA path, no padding)
    B, H, W, C = 2, 8, 8, 32
    num_heads = 4
    group_size = 4
    interval = 8
    lsda_flag = 0
    mlp_ratio = 4.0

    key = jax.random.PRNGKey(0)
    pkey, xkey = jax.random.split(key)
    params = make_params(pkey, C, num_heads, mlp_ratio)
    x = jax.random.normal(xkey, (B, H * W, C), jnp.float32)

    fwd = jax.jit(functools.partial(
        crossformer_block, num_heads=num_heads, group_size=group_size,
        interval=interval, lsda_flag=lsda_flag), static_argnums=(1, 2))
    out = fwd(x, H, W, params)
    jax.block_until_ready(out)
    assert out.shape == (B, H * W, C)
    print("KERNEL_OK")
</pallas_src>

<mosaic_0001>
module attributes {stable_mosaic.version = 11 : i64} {
  func.func @_fused_block_kernel(%arg0: i32, %arg1: memref<4x16x32xf32, #tpu.memory_space<vmem>>, %arg2: memref<4x16x16xf32, #tpu.memory_space<vmem>>, %arg3: memref<1x32xf32, #tpu.memory_space<vmem>>, %arg4: memref<1x32xf32, #tpu.memory_space<vmem>>, %arg5: memref<32x96xf32, #tpu.memory_space<vmem>>, %arg6: memref<1x96xf32, #tpu.memory_space<vmem>>, %arg7: memref<32x32xf32, #tpu.memory_space<vmem>>, %arg8: memref<1x32xf32, #tpu.memory_space<vmem>>, %arg9: memref<1x32xf32, #tpu.memory_space<vmem>>, %arg10: memref<1x32xf32, #tpu.memory_space<vmem>>, %arg11: memref<32x128xf32, #tpu.memory_space<vmem>>, %arg12: memref<1x128xf32, #tpu.memory_space<vmem>>, %arg13: memref<128x32xf32, #tpu.memory_space<vmem>>, %arg14: memref<1x32xf32, #tpu.memory_space<vmem>>, %arg15: memref<4x16x32xf32, #tpu.memory_space<vmem>>, %arg16: memref<4x16x96xf32, #tpu.memory_space<vmem>>, %arg17: memref<4x16x32xf32, #tpu.memory_space<vmem>>) attributes {dimension_semantics = [#tpu.dimension_semantics<parallel>], iteration_bounds = array<i64: 2>, scalar_prefetch = 0 : i64, scratch_operands = 2 : i64, tpu.core_type = #tpu.core_type<tc>, window_params = [{transform_indices = @transform_0, window_bounds = array<i64: 4, 16, 32>}, {pipeline_mode = #tpu.pipeline_mode<synchronous>, transform_indices = @transform_1, window_bounds = array<i64: 4, 16, 16>}, {pipeline_mode = #tpu.pipeline_mode<synchronous>, transform_indices = @transform_2, window_bounds = array<i64: 1, 32>}, {pipeline_mode = #tpu.pipeline_mode<synchronous>, transform_indices = @transform_3, window_bounds = array<i64: 1, 32>}, {pipeline_mode = #tpu.pipeline_mode<synchronous>, transform_indices = @transform_4, window_bounds = array<i64: 32, 96>}, {pipeline_mode = #tpu.pipeline_mode<synchronous>, transform_indices = @transform_5, window_bounds = array<i64: 1, 96>}, {pipeline_mode = #tpu.pipeline_mode<synchronous>, transform_indices = @transform_6, window_bounds = array<i64: 32, 32>}, {pipeline_mode = #tpu.pipeline_mode<synchronous>, transform_indices = @transform_7, window_bounds = array<i64: 1, 32>}, {pipeline_mode = #tpu.pipeline_mode<synchronous>, transform_indices = @transform_8, window_bounds = array<i64: 1, 32>}, {pipeline_mode = #tpu.pipeline_mode<synchronous>, transform_indices = @transform_9, window_bounds = array<i64: 1, 32>}, {pipeline_mode = #tpu.pipeline_mode<synchronous>, transform_indices = @transform_10, window_bounds = array<i64: 32, 128>}, {pipeline_mode = #tpu.pipeline_mode<synchronous>, transform_indices = @transform_11, window_bounds = array<i64: 1, 128>}, {pipeline_mode = #tpu.pipeline_mode<synchronous>, transform_indices = @transform_12, window_bounds = array<i64: 128, 32>}, {pipeline_mode = #tpu.pipeline_mode<synchronous>, transform_indices = @transform_13, window_bounds = array<i64: 1, 32>}, {transform_indices = @transform_14, window_bounds = array<i64: 4, 16, 32>}]} {
    %c0 = arith.constant 0 : index
    %c0_0 = arith.constant 0 : index
    %c0_1 = arith.constant 0 : index
    %0 = vector.load %arg1[%c0, %c0_0, %c0_1] : memref<4x16x32xf32, #tpu.memory_space<vmem>>, vector<4x16x32xf32>
    %1 = vector.shape_cast %0 : vector<4x16x32xf32> to vector<64x32xf32>
    %cst = arith.constant dense<0.000000e+00> : vector<64xf32>
    %2 = vector.multi_reduction <add>, %1, %cst [1] : vector<64x32xf32> to vector<64xf32>
    %3 = vector.shape_cast %2 : vector<64xf32> to vector<64x1xf32>
    %cst_2 = arith.constant 3.200000e+01 : f32
    %4 = vector.broadcast %cst_2 : f32 to vector<64x1xf32>
    %5 = arith.divf %3, %4 : vector<64x1xf32>
    %6 = vector.broadcast %5 : vector<64x1xf32> to vector<64x32xf32>
    %7 = arith.subf %1, %6 : vector<64x32xf32>
    %8 = arith.mulf %7, %7 : vector<64x32xf32>
    %cst_3 = arith.constant dense<0.000000e+00> : vector<64xf32>
    %9 = vector.multi_reduction <add>, %8, %cst_3 [1] : vector<64x32xf32> to vector<64xf32>
    %10 = vector.shape_cast %9 : vector<64xf32> to vector<64x1xf32>
    %cst_4 = arith.constant 3.200000e+01 : f32
    %11 = vector.broadcast %cst_4 : f32 to vector<64x1xf32>
    %12 = arith.divf %10, %11 : vector<64x1xf32>
    %13 = vector.broadcast %5 : vector<64x1xf32> to vector<64x32xf32>
    %14 = arith.subf %1, %13 : vector<64x32xf32>
    %cst_5 = arith.constant 9.99999974E-6 : f32
    %15 = vector.broadcast %cst_5 : f32 to vector<64x1xf32>
    %16 = arith.addf %12, %15 : vector<64x1xf32>
    %17 = math.rsqrt %16 : vector<64x1xf32>
    %18 = vector.broadcast %17 : vector<64x1xf32> to vector<64x32xf32>
    %19 = arith.mulf %14, %18 : vector<64x32xf32>
    %c0_6 = arith.constant 0 : index
    %c0_7 = arith.constant 0 : index
    %20 = vector.load %arg3[%c0_6, %c0_7] : memref<1x32xf32, #tpu.memory_space<vmem>>, vector<1x32xf32>
    %21 = vector.broadcast %20 : vector<1x32xf32> to vector<64x32xf32>
    %22 = arith.mulf %19, %21 : vector<64x32xf32>
    %c0_8 = arith.constant 0 : index
    %c0_9 = arith.constant 0 : index
    %23 = vector.load %arg4[%c0_8, %c0_9] : memref<1x32xf32, #tpu.memory_space<vmem>>, vector<1x32xf32>
    %24 = vector.broadcast %23 : vector<1x32xf32> to vector<64x32xf32>
    %25 = arith.addf %22, %24 : vector<64x32xf32>
    %c0_10 = arith.constant 0 : index
    %c0_11 = arith.constant 0 : index
    %26 = vector.load %arg5[%c0_10, %c0_11] : memref<32x96xf32, #tpu.memory_space<vmem>>, vector<32x96xf32>
    %cst_12 = arith.constant dense<0.000000e+00> : vector<64x96xf32>
    %27 = tpu.matmul %25, %26, %cst_12 {dimension_numbers = #tpu.dot_dimension_numbers<[1], [0], [0], [1], [0, 0, 1, 1], [], []>} : vector<64x32xf32>, vector<32x96xf32>, vector<64x96xf32> -> vector<64x96xf32>
    %c0_13 = arith.constant 0 : index
    %c0_14 = arith.constant 0 : index
    %28 = vector.load %arg6[%c0_13, %c0_14] : memref<1x96xf32, #tpu.memory_space<vmem>>, vector<1x96xf32>
    %29 = vector.broadcast %28 : vector<1x96xf32> to vector<64x96xf32>
    %30 = arith.addf %27, %29 : vector<64x96xf32>
    %31 = vector.shape_cast %30 : vector<64x96xf32> to vector<4x16x96xf32>
    %c0_15 = arith.constant 0 : index
    %c0_16 = arith.constant 0 : index
    %c0_17 = arith.constant 0 : index
    %32 = vector.load %arg16[%c0_15, %c0_16, %c0_17] : memref<4x16x96xf32, #tpu.memory_space<vmem>>, vector<4x16x96xf32>
    tpu.vector_store %arg16[%c0_15, %c0_16, %c0_17], %31 {strides = array<i32>} : memref<4x16x96xf32, #tpu.memory_space<vmem>>, vector<4x16x96xf32>,
    %c0_18 = arith.constant 0 : index
    %c0_19 = arith.constant 0 : index
    %c0_20 = arith.constant 0 : index
    %33 = vector.load %arg2[%c0_18, %c0_19, %c0_20] : memref<4x16x16xf32, #tpu.memory_space<vmem>>, vector<4x16x16xf32>
    %c0_21 = arith.constant 0 : index
    %c0_22 = arith.constant 0 : index
    %c0_23 = arith.constant 0 : index
    %34 = vector.load %arg16[%c0_21, %c0_22, %c0_23] : memref<4x16x96xf32, #tpu.memory_space<vmem>>, vector<4x16x8xf32>
    %cst_24 = arith.constant 0.353553385 : f32
    %35 = vector.broadcast %cst_24 : f32 to vector<4x16x8xf32>
    %36 = arith.mulf %34, %35 : vector<4x16x8xf32>
    %c0_25 = arith.constant 0 : index
    %c0_26 = arith.constant 0 : index
    %c32 = arith.constant 32 : index
    %37 = vector.load %arg16[%c0_25, %c0_26, %c32] : memref<4x16x96xf32, #tpu.memory_space<vmem>>, vector<4x16x8xf32>
    %c0_27 = arith.constant 0 : index
    %c0_28 = arith.constant 0 : index
    %c64 = arith.constant 64 : index
    %38 = vector.load %arg16[%c0_27, %c0_28, %c64] : memref<4x16x96xf32, #tpu.memory_space<vmem>>, vector<4x16x8xf32>
    "tpu.trace_start"() <{level = 10 : i32, message = "wnd,wmd->wnm"}> : () -> ()
    %cst_29 = arith.constant dense<0.000000e+00> : vector<4x16x16xf32>
    %39 = tpu.matmul %36, %37, %cst_29 {dimension_numbers = #tpu.dot_dimension_numbers<[2], [2], [1], [1], [0, 0, 0, 1, 1, 1], [0], [0]>} : vector<4x16x8xf32>, vector<4x16x8xf32>, vector<4x16x16xf32> -> vector<4x16x16xf32>
    "tpu.trace_stop"() : () -> ()
    %40 = vector.extract_strided_slice %33 {offsets = [0, 0, 0], sizes = [1, 16, 16], strides = [1, 1, 1]} : vector<4x16x16xf32> to vector<1x16x16xf32>
    %41 = vector.shape_cast %40 : vector<1x16x16xf32> to vector<16x16xf32>
    %42 = vector.shape_cast %41 : vector<16x16xf32> to vector<1x16x16xf32>
    %43 = vector.broadcast %42 : vector<1x16x16xf32> to vector<4x16x16xf32>
    %44 = arith.addf %39, %43 : vector<4x16x16xf32>
    %cst_30 = arith.constant dense<0xFF800000> : vector<4x16xf32>
    %45 = vector.multi_reduction <maximumf>, %44, %cst_30 [2] : vector<4x16x16xf32> to vector<4x16xf32>
    %46 = vector.shape_cast %45 : vector<4x16xf32> to vector<4x16x1xf32>
    %47 = vector.broadcast %46 : vector<4x16x1xf32> to vector<4x16x16xf32>
    %48 = arith.subf %44, %47 : vector<4x16x16xf32>
    %49 = math.exp %48 : vector<4x16x16xf32>
    %cst_31 = arith.constant dense<0.000000e+00> : vector<4x16xf32>
    %50 = vector.multi_reduction <add>, %49, %cst_31 [2] : vector<4x16x16xf32> to vector<4x16xf32>
    %51 = vector.shape_cast %50 : vector<4x16xf32> to vector<4x16x1xf32>
    %52 = tpu.reciprocal %51 {approx = true} : vector<4x16x1xf32> -> vector<4x16x1xf32>
    %53 = vector.broadcast %52 : vector<4x16x1xf32> to vector<4x16x16xf32>
    %54 = arith.mulf %49, %53 : vector<4x16x16xf32>
    "tpu.trace_start"() <{level = 10 : i32, message = "wnm,wmd->wnd"}> : () -> ()
    %cst_32 = arith.constant dense<0.000000e+00> : vector<4x16x8xf32>
    %55 = tpu.matmul %54, %38, %cst_32 {dimension_numbers = #tpu.dot_dimension_numbers<[2], [1], [1], [2], [0, 0, 0, 1, 1, 2], [0], [0]>} : vector<4x16x16xf32>, vector<4x16x8xf32>, vector<4x16x8xf32> -> vector<4x16x8xf32>
    "tpu.trace_stop"() : () -> ()
    %c0_33 = arith.constant 0 : index
    %c0_34 = arith.constant 0 : index
    %c0_35 = arith.constant 0 : index
    %56 = vector.load %arg17[%c0_33, %c0_34, %c0_35] : memref<4x16x32xf32, #tpu.memory_space<vmem>>, vector<4x16x8xf32>
    tpu.vector_store %arg17[%c0_33, %c0_34, %c0_35], %55 {strides = array<i32>} : memref<4x16x32xf32, #tpu.memory_space<vmem>>, vector<4x16x8xf32>,
    %c0_36 = arith.constant 0 : index
    %c0_37 = arith.constant 0 : index
    %c8 = arith.constant 8 : index
    %57 = vector.load %arg16[%c0_36, %c0_37, %c8] : memref<4x16x96xf32, #tpu.memory_space<vmem>>, vector<4x16x8xf32>
    %cst_38 = arith.constant 0.353553385 : f32
    %58 = vector.broadcast %cst_38 : f32 to vector<4x16x8xf32>
    %59 = arith.mulf %57, %58 : vector<4x16x8xf32>
    %c0_39 = arith.constant 0 : index
    %c0_40 = arith.constant 0 : index
    %c40 = arith.constant 40 : index
    %60 = vector.load %arg16[%c0_39, %c0_40, %c40] : memref<4x16x96xf32, #tpu.memory_space<vmem>>, vector<4x16x8xf32>
    %c0_41 = arith.constant 0 : index
    %c0_42 = arith.constant 0 : index
    %c72 = arith.constant 72 : index
    %61 = vector.load %arg16[%c0_41, %c0_42, %c72] : memref<4x16x96xf32, #tpu.memory_space<vmem>>, vector<4x16x8xf32>
    "tpu.trace_start"() <{level = 10 : i32, message = "wnd,wmd->wnm"}> : () -> ()
    %cst_43 = arith.constant dense<0.000000e+00> : vector<4x16x16xf32>
    %62 = tpu.matmul %59, %60, %cst_43 {dimension_numbers = #tpu.dot_dimension_numbers<[2], [2], [1], [1], [0, 0, 0, 1, 1, 1], [0], [0]>} : vector<4x16x8xf32>, vector<4x16x8xf32>, vector<4x16x16xf32> -> vector<4x16x16xf32>
    "tpu.trace_stop"() : () -> ()
    %63 = vector.extract_strided_slice %33 {offsets = [1, 0, 0], sizes = [1, 16, 16], strides = [1, 1, 1]} : vector<4x16x16xf32> to vector<1x16x16xf32>
    %64 = vector.shape_cast %63 : vector<1x16x16xf32> to vector<16x16xf32>
    %65 = vector.shape_cast %64 : vector<16x16xf32> to vector<1x16x16xf32>
    %66 = vector.broadcast %65 : vector<1x16x16xf32> to vector<4x16x16xf32>
    %67 = arith.addf %62, %66 : vector<4x16x16xf32>
    %cst_44 = arith.constant dense<0xFF800000> : vector<4x16xf32>
    %68 = vector.multi_reduction <maximumf>, %67, %cst_44 [2] : vector<4x16x16xf32> to vector<4x16xf32>
    %69 = vector.shape_cast %68 : vector<4x16xf32> to vector<4x16x1xf32>
    %70 = vector.broadcast %69 : vector<4x16x1xf32> to vector<4x16x16xf32>
    %71 = arith.subf %67, %70 : vector<4x16x16xf32>
    %72 = math.exp %71 : vector<4x16x16xf32>
    %cst_45 = arith.constant dense<0.000000e+00> : vector<4x16xf32>
    %73 = vector.multi_reduction <add>, %72, %cst_45 [2] : vector<4x16x16xf32> to vector<4x16xf32>
    %74 = vector.shape_cast %73 : vector<4x16xf32> to vector<4x16x1xf32>
    %75 = tpu.reciprocal %74 {approx = true} : vector<4x16x1xf32> -> vector<4x16x1xf32>
    %76 = vector.broadcast %75 : vector<4x16x1xf32> to vector<4x16x16xf32>
    %77 = arith.mulf %72, %76 : vector<4x16x16xf32>
    "tpu.trace_start"() <{level = 10 : i32, message = "wnm,wmd->wnd"}> : () -> ()
    %cst_46 = arith.constant dense<0.000000e+00> : vector<4x16x8xf32>
    %78 = tpu.matmul %77, %61, %cst_46 {dimension_numbers = #tpu.dot_dimension_numbers<[2], [1], [1], [2], [0, 0, 0, 1, 1, 2], [0], [0]>} : vector<4x16x16xf32>, vector<4x16x8xf32>, vector<4x16x8xf32> -> vector<4x16x8xf32>
    "tpu.trace_stop"() : () -> ()
    %c0_47 = arith.constant 0 : index
    %c0_48 = arith.constant 0 : index
    %c8_49 = arith.constant 8 : index
    %79 = vector.load %arg17[%c0_47, %c0_48, %c8_49] : memref<4x16x32xf32, #tpu.memory_space<vmem>>, vector<4x16x8xf32>
    tpu.vector_store %arg17[%c0_47, %c0_48, %c8_49], %78 {strides = array<i32>} : memref<4x16x32xf32, #tpu.memory_space<vmem>>, vector<4x16x8xf32>,
    %c0_50 = arith.constant 0 : index
    %c0_51 = arith.constant 0 : index
    %c16 = arith.constant 16 : index
    %80 = vector.load %arg16[%c0_50, %c0_51, %c16] : memref<4x16x96xf32, #tpu.memory_space<vmem>>, vector<4x16x8xf32>
    %cst_52 = arith.constant 0.353553385 : f32
    %81 = vector.broadcast %cst_52 : f32 to vector<4x16x8xf32>
    %82 = arith.mulf %80, %81 : vector<4x16x8xf32>
    %c0_53 = arith.constant 0 : index
    %c0_54 = arith.constant 0 : index
    %c48 = arith.constant 48 : index
    %83 = vector.load %arg16[%c0_53, %c0_54, %c48] : memref<4x16x96xf32, #tpu.memory_space<vmem>>, vector<4x16x8xf32>
    %c0_55 = arith.constant 0 : index
    %c0_56 = arith.constant 0 : index
    %c80 = arith.constant 80 : index
    %84 = vector.load %arg16[%c0_55, %c0_56, %c80] : memref<4x16x96xf32, #tpu.memory_space<vmem>>, vector<4x16x8xf32>
    "tpu.trace_start"() <{level = 10 : i32, message = "wnd,wmd->wnm"}> : () -> ()
    %cst_57 = arith.constant dense<0.000000e+00> : vector<4x16x16xf32>
    %85 = tpu.matmul %82, %83, %cst_57 {dimension_numbers = #tpu.dot_dimension_numbers<[2], [2], [1], [1], [0, 0, 0, 1, 1, 1], [0], [0]>} : vector<4x16x8xf32>, vector<4x16x8xf32>, vector<4x16x16xf32> -> vector<4x16x16xf32>
    "tpu.trace_stop"() : () -> ()
    %86 = vector.extract_strided_slice %33 {offsets = [2, 0, 0], sizes = [1, 16, 16], strides = [1, 1, 1]} : vector<4x16x16xf32> to vector<1x16x16xf32>
    %87 = vector.shape_cast %86 : vector<1x16x16xf32> to vector<16x16xf32>
    %88 = vector.shape_cast %87 : vector<16x16xf32> to vector<1x16x16xf32>
    %89 = vector.broadcast %88 : vector<1x16x16xf32> to vector<4x16x16xf32>
    %90 = arith.addf %85, %89 : vector<4x16x16xf32>
    %cst_58 = arith.constant dense<0xFF800000> : vector<4x16xf32>
    %91 = vector.multi_reduction <maximumf>, %90, %cst_58 [2] : vector<4x16x16xf32> to vector<4x16xf32>
    %92 = vector.shape_cast %91 : vector<4x16xf32> to vector<4x16x1xf32>
    %93 = vector.broadcast %92 : vector<4x16x1xf32> to vector<4x16x16xf32>
    %94 = arith.subf %90, %93 : vector<4x16x16xf32>
    %95 = math.exp %94 : vector<4x16x16xf32>
    %cst_59 = arith.constant dense<0.000000e+00> : vector<4x16xf32>
    %96 = vector.multi_reduction <add>, %95, %cst_59 [2] : vector<4x16x16xf32> to vector<4x16xf32>
    %97 = vector.shape_cast %96 : vector<4x16xf32> to vector<4x16x1xf32>
    %98 = tpu.reciprocal %97 {approx = true} : vector<4x16x1xf32> -> vector<4x16x1xf32>
    %99 = vector.broadcast %98 : vector<4x16x1xf32> to vector<4x16x16xf32>
    %100 = arith.mulf %95, %99 : vector<4x16x16xf32>
    "tpu.trace_start"() <{level = 10 : i32, message = "wnm,wmd->wnd"}> : () -> ()
    %cst_60 = arith.constant dense<0.000000e+00> : vector<4x16x8xf32>
    %101 = tpu.matmul %100, %84, %cst_60 {dimension_numbers = #tpu.dot_dimension_numbers<[2], [1], [1], [2], [0, 0, 0, 1, 1, 2], [0], [0]>} : vector<4x16x16xf32>, vector<4x16x8xf32>, vector<4x16x8xf32> -> vector<4x16x8xf32>
    "tpu.trace_stop"() : () -> ()
    %c0_61 = arith.constant 0 : index
    %c0_62 = arith.constant 0 : index
    %c16_63 = arith.constant 16 : index
    %102 = vector.load %arg17[%c0_61, %c0_62, %c16_63] : memref<4x16x32xf32, #tpu.memory_space<vmem>>, vector<4x16x8xf32>
    tpu.vector_store %arg17[%c0_61, %c0_62, %c16_63], %101 {strides = array<i32>} : memref<4x16x32xf32, #tpu.memory_space<vmem>>, vector<4x16x8xf32>,
    %c0_64 = arith.constant 0 : index
    %c0_65 = arith.constant 0 : index
    %c24 = arith.constant 24 : index
    %103 = vector.load %arg16[%c0_64, %c0_65, %c24] : memref<4x16x96xf32, #tpu.memory_space<vmem>>, vector<4x16x8xf32>
    %cst_66 = arith.constant 0.353553385 : f32
    %104 = vector.broadcast %cst_66 : f32 to vector<4x16x8xf32>
    %105 = arith.mulf %103, %104 : vector<4x16x8xf32>
    %c0_67 = arith.constant 0 : index
    %c0_68 = arith.constant 0 : index
    %c56 = arith.constant 56 : index
    %106 = vector.load %arg16[%c0_67, %c0_68, %c56] : memref<4x16x96xf32, #tpu.memory_space<vmem>>, vector<4x16x8xf32>
    %c0_69 = arith.constant 0 : index
    %c0_70 = arith.constant 0 : index
    %c88 = arith.constant 88 : index
    %107 = vector.load %arg16[%c0_69, %c0_70, %c88] : memref<4x16x96xf32, #tpu.memory_space<vmem>>, vector<4x16x8xf32>
    "tpu.trace_start"() <{level = 10 : i32, message = "wnd,wmd->wnm"}> : () -> ()
    %cst_71 = arith.constant dense<0.000000e+00> : vector<4x16x16xf32>
    %108 = tpu.matmul %105, %106, %cst_71 {dimension_numbers = #tpu.dot_dimension_numbers<[2], [2], [1], [1], [0, 0, 0, 1, 1, 1], [0], [0]>} : vector<4x16x8xf32>, vector<4x16x8xf32>, vector<4x16x16xf32> -> vector<4x16x16xf32>
    "tpu.trace_stop"() : () -> ()
    %109 = vector.extract_strided_slice %33 {offsets = [3, 0, 0], sizes = [1, 16, 16], strides = [1, 1, 1]} : vector<4x16x16xf32> to vector<1x16x16xf32>
    %110 = vector.shape_cast %109 : vector<1x16x16xf32> to vector<16x16xf32>
    %111 = vector.shape_cast %110 : vector<16x16xf32> to vector<1x16x16xf32>
    %112 = vector.broadcast %111 : vector<1x16x16xf32> to vector<4x16x16xf32>
    %113 = arith.addf %108, %112 : vector<4x16x16xf32>
    %cst_72 = arith.constant dense<0xFF800000> : vector<4x16xf32>
    %114 = vector.multi_reduction <maximumf>, %113, %cst_72 [2] : vector<4x16x16xf32> to vector<4x16xf32>
    %115 = vector.shape_cast %114 : vector<4x16xf32> to vector<4x16x1xf32>
    %116 = vector.broadcast %115 : vector<4x16x1xf32> to vector<4x16x16xf32>
    %117 = arith.subf %113, %116 : vector<4x16x16xf32>
    %118 = math.exp %117 : vector<4x16x16xf32>
    %cst_73 = arith.constant dense<0.000000e+00> : vector<4x16xf32>
    %119 = vector.multi_reduction <add>, %118, %cst_73 [2] : vector<4x16x16xf32> to vector<4x16xf32>
    %120 = vector.shape_cast %119 : vector<4x16xf32> to vector<4x16x1xf32>
    %121 = tpu.reciprocal %120 {approx = true} : vector<4x16x1xf32> -> vector<4x16x1xf32>
    %122 = vector.broadcast %121 : vector<4x16x1xf32> to vector<4x16x16xf32>
    %123 = arith.mulf %118, %122 : vector<4x16x16xf32>
    "tpu.trace_start"() <{level = 10 : i32, message = "wnm,wmd->wnd"}> : () -> ()
    %cst_74 = arith.constant dense<0.000000e+00> : vector<4x16x8xf32>
    %124 = tpu.matmul %123, %107, %cst_74 {dimension_numbers = #tpu.dot_dimension_numbers<[2], [1], [1], [2], [0, 0, 0, 1, 1, 2], [0], [0]>} : vector<4x16x16xf32>, vector<4x16x8xf32>, vector<4x16x8xf32> -> vector<4x16x8xf32>
    "tpu.trace_stop"() : () -> ()
    %c0_75 = arith.constant 0 : index
    %c0_76 = arith.constant 0 : index
    %c24_77 = arith.constant 24 : index
    %125 = vector.load %arg17[%c0_75, %c0_76, %c24_77] : memref<4x16x32xf32, #tpu.memory_space<vmem>>, vector<4x16x8xf32>
    tpu.vector_store %arg17[%c0_75, %c0_76, %c24_77], %124 {strides = array<i32>} : memref<4x16x32xf32, #tpu.memory_space<vmem>>, vector<4x16x8xf32>,
    %c0_78 = arith.constant 0 : index
    %c0_79 = arith.constant 0 : index
    %c0_80 = arith.constant 0 : index
    %126 = vector.load %arg17[%c0_78, %c0_79, %c0_80] : memref<4x16x32xf32, #tpu.memory_space<vmem>>, vector<4x16x32xf32>
    %127 = vector.shape_cast %126 : vector<4x16x32xf32> to vector<64x32xf32>
    %c0_81 = arith.constant 0 : index
    %c0_82 = arith.constant 0 : index
    %128 = vector.load %arg7[%c0_81, %c0_82] : memref<32x32xf32, #tpu.memory_space<vmem>>, vector<32x32xf32>
    %cst_83 = arith.constant dense<0.000000e+00> : vector<64x32xf32>
    %129 = tpu.matmul %127, %128, %cst_83 {dimension_numbers = #tpu.dot_dimension_numbers<[1], [0], [0], [1], [0, 0, 1, 1], [], []>} : vector<64x32xf32>, vector<32x32xf32>, vector<64x32xf32> -> vector<64x32xf32>
    %c0_84 = arith.constant 0 : index
    %c0_85 = arith.constant 0 : index
    %130 = vector.load %arg8[%c0_84, %c0_85] : memref<1x32xf32, #tpu.memory_space<vmem>>, vector<1x32xf32>
    %131 = vector.broadcast %130 : vector<1x32xf32> to vector<64x32xf32>
    %132 = arith.addf %129, %131 : vector<64x32xf32>
    %133 = arith.addf %1, %132 : vector<64x32xf32>
    %cst_86 = arith.constant dense<0.000000e+00> : vector<64xf32>
    %134 = vector.multi_reduction <add>, %133, %cst_86 [1] : vector<64x32xf32> to vector<64xf32>
    %135 = vector.shape_cast %134 : vector<64xf32> to vector<64x1xf32>
    %cst_87 = arith.constant 3.200000e+01 : f32
    %136 = vector.broadcast %cst_87 : f32 to vector<64x1xf32>
    %137 = arith.divf %135, %136 : vector<64x1xf32>
    %138 = vector.broadcast %137 : vector<64x1xf32> to vector<64x32xf32>
    %139 = arith.subf %133, %138 : vector<64x32xf32>
    %140 = arith.mulf %139, %139 : vector<64x32xf32>
    %cst_88 = arith.constant dense<0.000000e+00> : vector<64xf32>
    %141 = vector.multi_reduction <add>, %140, %cst_88 [1] : vector<64x32xf32> to vector<64xf32>
    %142 = vector.shape_cast %141 : vector<64xf32> to vector<64x1xf32>
    %cst_89 = arith.constant 3.200000e+01 : f32
    %143 = vector.broadcast %cst_89 : f32 to vector<64x1xf32>
    %144 = arith.divf %142, %143 : vector<64x1xf32>
    %145 = vector.broadcast %137 : vector<64x1xf32> to vector<64x32xf32>
    %146 = arith.subf %133, %145 : vector<64x32xf32>
    %cst_90 = arith.constant 9.99999974E-6 : f32
    %147 = vector.broadcast %cst_90 : f32 to vector<64x1xf32>
    %148 = arith.addf %144, %147 : vector<64x1xf32>
    %149 = math.rsqrt %148 : vector<64x1xf32>
    %150 = vector.broadcast %149 : vector<64x1xf32> to vector<64x32xf32>
    %151 = arith.mulf %146, %150 : vector<64x32xf32>
    %c0_91 = arith.constant 0 : index
    %c0_92 = arith.constant 0 : index
    %152 = vector.load %arg9[%c0_91, %c0_92] : memref<1x32xf32, #tpu.memory_space<vmem>>, vector<1x32xf32>
    %153 = vector.broadcast %152 : vector<1x32xf32> to vector<64x32xf32>
    %154 = arith.mulf %151, %153 : vector<64x32xf32>
    %c0_93 = arith.constant 0 : index
    %c0_94 = arith.constant 0 : index
    %155 = vector.load %arg10[%c0_93, %c0_94] : memref<1x32xf32, #tpu.memory_space<vmem>>, vector<1x32xf32>
    %156 = vector.broadcast %155 : vector<1x32xf32> to vector<64x32xf32>
    %157 = arith.addf %154, %156 : vector<64x32xf32>
    %c0_95 = arith.constant 0 : index
    %c0_96 = arith.constant 0 : index
    %158 = vector.load %arg11[%c0_95, %c0_96] : memref<32x128xf32, #tpu.memory_space<vmem>>, vector<32x128xf32>
    %cst_97 = arith.constant dense<0.000000e+00> : vector<64x128xf32>
    %159 = tpu.matmul %157, %158, %cst_97 {dimension_numbers = #tpu.dot_dimension_numbers<[1], [0], [0], [1], [0, 0, 1, 1], [], []>} : vector<64x32xf32>, vector<32x128xf32>, vector<64x128xf32> -> vector<64x128xf32>
    %c0_98 = arith.constant 0 : index
    %c0_99 = arith.constant 0 : index
    %160 = vector.load %arg12[%c0_98, %c0_99] : memref<1x128xf32, #tpu.memory_space<vmem>>, vector<1x128xf32>
    %161 = vector.broadcast %160 : vector<1x128xf32> to vector<64x128xf32>
    %162 = arith.addf %159, %161 : vector<64x128xf32>
    %cst_100 = arith.constant 5.000000e-01 : f32
    %163 = vector.broadcast %cst_100 : f32 to vector<64x128xf32>
    %164 = arith.mulf %163, %162 : vector<64x128xf32>
    %cst_101 = arith.constant 0.707106769 : f32
    %165 = vector.broadcast %cst_101 : f32 to vector<64x128xf32>
    %166 = arith.mulf %162, %165 : vector<64x128xf32>
    %167 = math.erf %166 : vector<64x128xf32>
    %cst_102 = arith.constant 1.000000e+00 : f32
    %168 = vector.broadcast %cst_102 : f32 to vector<64x128xf32>
    %169 = arith.addf %168, %167 : vector<64x128xf32>
    %170 = arith.mulf %164, %169 : vector<64x128xf32>
    %c0_103 = arith.constant 0 : index
    %c0_104 = arith.constant 0 : index
    %171 = vector.load %arg13[%c0_103, %c0_104] : memref<128x32xf32, #tpu.memory_space<vmem>>, vector<128x32xf32>
    %cst_105 = arith.constant dense<0.000000e+00> : vector<64x32xf32>
    %172 = tpu.matmul %170, %171, %cst_105 {dimension_numbers = #tpu.dot_dimension_numbers<[1], [0], [0], [1], [0, 0, 1, 1], [], []>} : vector<64x128xf32>, vector<128x32xf32>, vector<64x32xf32> -> vector<64x32xf32>
    %c0_106 = arith.constant 0 : index
    %c0_107 = arith.constant 0 : index
    %173 = vector.load %arg14[%c0_106, %c0_107] : memref<1x32xf32, #tpu.memory_space<vmem>>, vector<1x32xf32>
    %174 = vector.broadcast %173 : vector<1x32xf32> to vector<64x32xf32>
    %175 = arith.addf %172, %174 : vector<64x32xf32>
    %176 = arith.addf %133, %175 : vector<64x32xf32>
    %177 = vector.shape_cast %176 : vector<64x32xf32> to vector<4x16x32xf32>
    %c0_108 = arith.constant 0 : index
    %c0_109 = arith.constant 0 : index
    %c0_110 = arith.constant 0 : index
    %178 = vector.load %arg15[%c0_108, %c0_109, %c0_110] : memref<4x16x32xf32, #tpu.memory_space<vmem>>, vector<4x16x32xf32>
    tpu.vector_store %arg15[%c0_108, %c0_109, %c0_110], %177 {strides = array<i32>} : memref<4x16x32xf32, #tpu.memory_space<vmem>>, vector<4x16x32xf32>,
    return
  }
  func.func @transform_0(%arg0: i32) -> (i32, i32, i32) {
    %c0_i32 = arith.constant 0 : i32
    %c0_i32_0 = arith.constant 0 : i32
    %c0_i32_1 = arith.constant 0 : i32
    return %arg0, %c0_i32, %c0_i32_0 : i32, i32, i32
  }
  func.func @transform_1(%arg0: i32) -> (i32, i32, i32) {
    %c0_i32 = arith.constant 0 : i32
    %c0_i32_0 = arith.constant 0 : i32
    %c0_i32_1 = arith.constant 0 : i32
    %c0_i32_2 = arith.constant 0 : i32
    return %c0_i32, %c0_i32_0, %c0_i32_1 : i32, i32, i32
  }
  func.func @transform_2(%arg0: i32) -> (i32, i32) {
    %c0_i32 = arith.constant 0 : i32
    %c0_i32_0 = arith.constant 0 : i32
    %c0_i32_1 = arith.constant 0 : i32
    return %c0_i32, %c0_i32_0 : i32, i32
  }
  func.func @transform_3(%arg0: i32) -> (i32, i32) {
    %c0_i32 = arith.constant 0 : i32
    %c0_i32_0 = arith.constant 0 : i32
    %c0_i32_1 = arith.constant 0 : i32
    return %c0_i32, %c0_i32_0 : i32, i32
  }
  func.func @transform_4(%arg0: i32) -> (i32, i32) {
    %c0_i32 = arith.constant 0 : i32
    %c0_i32_0 = arith.constant 0 : i32
    %c0_i32_1 = arith.constant 0 : i32
    return %c0_i32, %c0_i32_0 : i32, i32
  }
  func.func @transform_5(%arg0: i32) -> (i32, i32) {
    %c0_i32 = arith.constant 0 : i32
    %c0_i32_0 = arith.constant 0 : i32
    %c0_i32_1 = arith.constant 0 : i32
    return %c0_i32, %c0_i32_0 : i32, i32
  }
  func.func @transform_6(%arg0: i32) -> (i32, i32) {
    %c0_i32 = arith.constant 0 : i32
    %c0_i32_0 = arith.constant 0 : i32
    %c0_i32_1 = arith.constant 0 : i32
    return %c0_i32, %c0_i32_0 : i32, i32
  }
  func.func @transform_7(%arg0: i32) -> (i32, i32) {
    %c0_i32 = arith.constant 0 : i32
    %c0_i32_0 = arith.constant 0 : i32
    %c0_i32_1 = arith.constant 0 : i32
    return %c0_i32, %c0_i32_0 : i32, i32
  }
  func.func @transform_8(%arg0: i32) -> (i32, i32) {
    %c0_i32 = arith.constant 0 : i32
    %c0_i32_0 = arith.constant 0 : i32
    %c0_i32_1 = arith.constant 0 : i32
    return %c0_i32, %c0_i32_0 : i32, i32
  }
  func.func @transform_9(%arg0: i32) -> (i32, i32) {
    %c0_i32 = arith.constant 0 : i32
    %c0_i32_0 = arith.constant 0 : i32
    %c0_i32_1 = arith.constant 0 : i32
    return %c0_i32, %c0_i32_0 : i32, i32
  }
  func.func @transform_10(%arg0: i32) -> (i32, i32) {
    %c0_i32 = arith.constant 0 : i32
    %c0_i32_0 = arith.constant 0 : i32
    %c0_i32_1 = arith.constant 0 : i32
    return %c0_i32, %c0_i32_0 : i32, i32
  }
  func.func @transform_11(%arg0: i32) -> (i32, i32) {
    %c0_i32 = arith.constant 0 : i32
    %c0_i32_0 = arith.constant 0 : i32
    %c0_i32_1 = arith.constant 0 : i32
    return %c0_i32, %c0_i32_0 : i32, i32
  }
  func.func @transform_12(%arg0: i32) -> (i32, i32) {
    %c0_i32 = arith.constant 0 : i32
    %c0_i32_0 = arith.constant 0 : i32
    %c0_i32_1 = arith.constant 0 : i32
    return %c0_i32, %c0_i32_0 : i32, i32
  }
  func.func @transform_13(%arg0: i32) -> (i32, i32) {
    %c0_i32 = arith.constant 0 : i32
    %c0_i32_0 = arith.constant 0 : i32
    %c0_i32_1 = arith.constant 0 : i32
    return %c0_i32, %c0_i32_0 : i32, i32
  }
  func.func @transform_14(%arg0: i32) -> (i32, i32, i32) {
    %c0_i32 = arith.constant 0 : i32
    %c0_i32_0 = arith.constant 0 : i32
    %c0_i32_1 = arith.constant 0 : i32
    return %arg0, %c0_i32, %c0_i32_0 : i32, i32, i32
  }
}

</mosaic_0001>

<llo_original>
// kernel: crossformer_block.1
$region0: #{crossformer_block.1}
  #allocation0 [shape = 'u32[]', space=smem, size = 0x4, offset = 0x4, fixed_abs, tag = 'smem constant byte address 0x4 - core index']
  #allocation1 [shape = 'u32[144,128]{1,0:T(1,128)}', space=vmem, size = 0x12000, scoped, tag = 'internal scratch']
  #allocation2 [shape = 'f32[4,16,96]{2,1,0:T(8,128)}', space=vmem, size = 0x8000, scoped, tag = 'scratch operand']
  #allocation3 [shape = 'f32[4,16,32]{2,1,0:T(8,128)}', space=vmem, size = 0x8000, scoped, tag = 'scratch operand']
  %s0 = inlined_call_operand.vmem [shape: f32[8,16,32], index: 0, kind: input, shape index: {}]
  %s1 = inlined_call_operand.vmem [shape: f32[4,16,16], index: 1, kind: input, shape index: {}]
  %s2 = inlined_call_operand.vmem [shape: f32[1,32], index: 2, kind: input, shape index: {}]
  %s3 = inlined_call_operand.vmem [shape: f32[1,32], index: 3, kind: input, shape index: {}]
  %s4 = inlined_call_operand.vmem [shape: f32[32,96], index: 4, kind: input, shape index: {}]
  %s5 = inlined_call_operand.vmem [shape: f32[1,96], index: 5, kind: input, shape index: {}]
  %s6 = inlined_call_operand.vmem [shape: f32[32,32], index: 6, kind: input, shape index: {}]
  %s7 = inlined_call_operand.vmem [shape: f32[1,32], index: 7, kind: input, shape index: {}]
  %s8 = inlined_call_operand.vmem [shape: f32[1,32], index: 8, kind: input, shape index: {}]
  %s9 = inlined_call_operand.vmem [shape: f32[1,32], index: 9, kind: input, shape index: {}]
  %s10 = inlined_call_operand.vmem [shape: f32[32,128], index: 10, kind: input, shape index: {}]
  %s11 = inlined_call_operand.vmem [shape: f32[1,128], index: 11, kind: input, shape index: {}]
  %s12 = inlined_call_operand.vmem [shape: f32[128,32], index: 12, kind: input, shape index: {}]
  %s13 = inlined_call_operand.vmem [shape: f32[1,32], index: 13, kind: input, shape index: {}]
  %s14 = inlined_call_operand.vmem [shape: f32[8,16,32], index: 14, kind: output, shape index: {}]
  %s15 = sld [smem:[#allocation0]]
  $region89: #{crossformer_block.1} parent=0
    _
  %s17 = ssub.s32 1, %s15
  %s18 = scalar_select 0, %s17, %s15
  loop: start=0, step=1, limit=4
  $region2: #{crossformer_block.1} parent=0 // loop_pre_header
    _
  $region3: #{crossformer_block.1} parent=0 // loop_header
    %s20 = sphi 0, %s24
    %p21 = scmp.ge.s32.totalorder %s20, 4
    %s30 = sphi 0, %s32
    %s33 = sphi 0, %s30
    %s34 = sphi 0, %s33
    %s50 = sphi 0, %s34
    %s54 = sphi 0, %s54
    %s56 = sphi 0, %s54
    %s57 = sphi 0, %s56
    %s71 = sphi 0, %s57
    %s75 = sphi 0, %s75
    %s77 = sphi 0, %s75
    %s78 = sphi 0, %s77
    %s92 = sphi 0, %s78
    %s96 = sphi 0, %s96
    %s98 = sphi 0, %s96
    %s99 = sphi 0, %s98
    %s113 = sphi 0, %s99
    %s117 = sphi 0, %s117
    %s119 = sphi 0, %s117
    %s120 = sphi 0, %s119
    %s134 = sphi 0, %s120
    %s138 = sphi 0, %s138
    %s140 = sphi 0, %s138
    %s141 = sphi 0, %s140
    %s155 = sphi 0, %s141
    %s159 = sphi 0, %s159
    %s161 = sphi 0, %s159
    %s162 = sphi 0, %s161
    %s176 = sphi 0, %s162
    %s180 = sphi 0, %s180
    %s182 = sphi 0, %s180
    %s183 = sphi 0, %s182
    %s197 = sphi 0, %s183
    %s201 = sphi 0, %s201
    %s203 = sphi 0, %s201
    %s204 = sphi 0, %s203
    %s218 = sphi 0, %s204
    %s222 = sphi 0, %s222
    %s224 = sphi 0, %s222
    %s225 = sphi 0, %s224
    %s239 = sphi 0, %s225
    %s243 = sphi 0, %s243
    %s245 = sphi 0, %s243
    %s246 = sphi 0, %s245
    %s260 = sphi 0, %s246
    %s264 = sphi 0, %s264
    %s266 = sphi 0, %s264
    %s267 = sphi 0, %s266
    %s281 = sphi 0, %s267
    %s285 = sphi 0, %s285
    %s287 = sphi 0, %s285
    %s288 = sphi 0, %s287
    %s302 = sphi 0, %s288
    %s306 = sphi 0, %s306
    %s308 = sphi 0, %s306
    %s309 = sphi 0, %s308
    %s323 = sphi 0, %s309
    %s329 = sphi 0, %s331
    %s332 = sphi 0, %s329
    %s333 = sphi 0, %s332
    %s349 = sphi 0, %s333
  $region4: #{crossformer_block.1} parent=0 // loop_header_branch
    %23 = sbr.rel (%p21) target = $region8
  $region5: #{crossformer_block.1} parent=0 // loop_body
    %s25 = ssub.s32 %s20, 1
    %s26 = ssub.s32 %s20, 2
    %s27 = sadd.s32 %s20, 1
    %s28 = ssub.s32 %s20, %s27
    %p29 = scmp.eq.s32.totalorder %s28, 0
    %s31 = sadd.s32 %s30, 1
    %s32 = scalar_select %p29, %s30, %s31
    %p35 = pneg %p29
    %p36 = scmp.eq.s32.totalorder %s20, 1
    %p37 = por %p35, %p36
    %p38 = scmp.ne.s32.totalorder %s30, %s33
    %p39 = scmp.eq.s32.totalorder %s20, 0
    %p40 = por %p38, %p39
    %p41 = scmp.ne.s32.totalorder %s30, %s33
    %p42 = scmp.eq.s32.totalorder %s25, 1
    %p43 = por %p41, %p42
    %p44 = scmp.ne.s32.totalorder %s33, %s34
    %p45 = scmp.eq.s32.totalorder %s25, 0
    %p46 = por %p44, %p45
    %p47 = scmp.ne.s32.totalorder %s33, %s34
    %p48 = scmp.eq.s32.totalorder %s26, 1
    %p49 = por %p47, %p48
    %p51 = scmp.ne.s32.totalorder %s34, %s50
    %p52 = scmp.eq.s32.totalorder %s26, 0
    %p53 = por %p51, %p52
    %s55 = sadd.s32 %s54, 1
    %p58 = scmp.eq.s32.totalorder %s20, 1
    %p59 = scmp.ne.s32.totalorder %s54, %s56
    %p60 = scmp.eq.s32.totalorder %s20, 0
    %p61 = por %p59, %p60
    %p62 = scmp.ne.s32.totalorder %s54, %s56
    %p63 = scmp.eq.s32.totalorder %s25, 1
    %p64 = por %p62, %p63
    %p65 = scmp.ne.s32.totalorder %s56, %s57
    %p66 = scmp.eq.s32.totalorder %s25, 0
    %p67 = por %p65, %p66
    %p68 = scmp.ne.s32.totalorder %s56, %s57
    %p69 = scmp.eq.s32.totalorder %s26, 1
    %p70 = por %p68, %p69
    %p72 = scmp.ne.s32.totalorder %s57, %s71
    %p73 = scmp.eq.s32.totalorder %s26, 0
    %p74 = por %p72, %p73
    %s76 = sadd.s32 %s75, 1
    %p79 = scmp.eq.s32.totalorder %s20, 1
    %p80 = scmp.ne.s32.totalorder %s75, %s77
    %p81 = scmp.eq.s32.totalorder %s20, 0
    %p82 = por %p80, %p81
    %p83 = scmp.ne.s32.totalorder %s75, %s77
    %p84 = scmp.eq.s32.totalorder %s25, 1
    %p85 = por %p83, %p84
    %p86 = scmp.ne.s32.totalorder %s77, %s78
    %p87 = scmp.eq.s32.totalorder %s25, 0
    %p88 = por %p86, %p87
    %p89 = scmp.ne.s32.totalorder %s77, %s78
    %p90 = scmp.eq.s32.totalorder %s26, 1
    %p91 = por %p89, %p90
    %p93 = scmp.ne.s32.totalorder %s78, %s92
    %p94 = scmp.eq.s32.totalorder %s26, 0
    %p95 = por %p93, %p94
    %s97 = sadd.s32 %s96, 1
    %p100 = scmp.eq.s32.totalorder %s20, 1
    %p101 = scmp.ne.s32.totalorder %s96, %s98
    %p102 = scmp.eq.s32.totalorder %s20, 0
    %p103 = por %p101, %p102
    %p104 = scmp.ne.s32.totalorder %s96, %s98
    %p105 = scmp.eq.s32.totalorder %s25, 1
    %p106 = por %p104, %p105
    %p107 = scmp.ne.s32.totalorder %s98, %s99
    %p108 = scmp.eq.s32.totalorder %s25, 0
    %p109 = por %p107, %p108
    %p110 = scmp.ne.s32.totalorder %s98, %s99
    %p111 = scmp.eq.s32.totalorder %s26, 1
    %p112 = por %p110, %p111
    %p114 = scmp.ne.s32.totalorder %s99, %s113
    %p115 = scmp.eq.s32.totalorder %s26, 0
    %p116 = por %p114, %p115
    %s118 = sadd.s32 %s117, 1
    %p121 = scmp.eq.s32.totalorder %s20, 1
    %p122 = scmp.ne.s32.totalorder %s117, %s119
    %p123 = scmp.eq.s32.totalorder %s20, 0
    %p124 = por %p122, %p123
    %p125 = scmp.ne.s32.totalorder %s117, %s119
    %p126 = scmp.eq.s32.totalorder %s25, 1
    %p127 = por %p125, %p126
    %p128 = scmp.ne.s32.totalorder %s119, %s120
    %p129 = scmp.eq.s32.totalorder %s25, 0
    %p130 = por %p128, %p129
    %p131 = scmp.ne.s32.totalorder %s119, %s120
    %p132 = scmp.eq.s32.totalorder %s26, 1
    %p133 = por %p131, %p132
    %p135 = scmp.ne.s32.totalorder %s120, %s134
    %p136 = scmp.eq.s32.totalorder %s26, 0
    %p137 = por %p135, %p136
    %s139 = sadd.s32 %s138, 1
    %p142 = scmp.eq.s32.totalorder %s20, 1
    %p143 = scmp.ne.s32.totalorder %s138, %s140
    %p144 = scmp.eq.s32.totalorder %s20, 0
    %p145 = por %p143, %p144
    %p146 = scmp.ne.s32.totalorder %s138, %s140
    %p147 = scmp.eq.s32.totalorder %s25, 1
    %p148 = por %p146, %p147
    %p149 = scmp.ne.s32.totalorder %s140, %s141
    %p150 = scmp.eq.s32.totalorder %s25, 0
    %p151 = por %p149, %p150
    %p152 = scmp.ne.s32.totalorder %s140, %s141
    %p153 = scmp.eq.s32.totalorder %s26, 1
    %p154 = por %p152, %p153
    %p156 = scmp.ne.s32.totalorder %s141, %s155
    %p157 = scmp.eq.s32.totalorder %s26, 0
    %p158 = por %p156, %p157
    %s160 = sadd.s32 %s159, 1
    %p163 = scmp.eq.s32.totalorder %s20, 1
    %p164 = scmp.ne.s32.totalorder %s159, %s161
    %p165 = scmp.eq.s32.totalorder %s20, 0
    %p166 = por %p164, %p165
    %p167 = scmp.ne.s32.totalorder %s159, %s161
    %p168 = scmp.eq.s32.totalorder %s25, 1
    %p169 = por %p167, %p168
    %p170 = scmp.ne.s32.totalorder %s161, %s162
    %p171 = scmp.eq.s32.totalorder %s25, 0
    %p172 = por %p170, %p171
    %p173 = scmp.ne.s32.totalorder %s161, %s162
    %p174 = scmp.eq.s32.totalorder %s26, 1
    %p175 = por %p173, %p174
    %p177 = scmp.ne.s32.totalorder %s162, %s176
    %p178 = scmp.eq.s32.totalorder %s26, 0
    %p179 = por %p177, %p178
    %s181 = sadd.s32 %s180, 1
    %p184 = scmp.eq.s32.totalorder %s20, 1
    %p185 = scmp.ne.s32.totalorder %s180, %s182
    %p186 = scmp.eq.s32.totalorder %s20, 0
    %p187 = por %p185, %p186
    %p188 = scmp.ne.s32.totalorder %s180, %s182
    %p189 = scmp.eq.s32.totalorder %s25, 1
    %p190 = por %p188, %p189
    %p191 = scmp.ne.s32.totalorder %s182, %s183
    %p192 = scmp.eq.s32.totalorder %s25, 0
    %p193 = por %p191, %p192
    %p194 = scmp.ne.s32.totalorder %s182, %s183
    %p195 = scmp.eq.s32.totalorder %s26, 1
    %p196 = por %p194, %p195
    %p198 = scmp.ne.s32.totalorder %s183, %s197
    %p199 = scmp.eq.s32.totalorder %s26, 0
    %p200 = por %p198, %p199
    %s202 = sadd.s32 %s201, 1
    %p205 = scmp.eq.s32.totalorder %s20, 1
    %p206 = scmp.ne.s32.totalorder %s201, %s203
    %p207 = scmp.eq.s32.totalorder %s20, 0
    %p208 = por %p206, %p207
    %p209 = scmp.ne.s32.totalorder %s201, %s203
    %p210 = scmp.eq.s32.totalorder %s25, 1
    %p211 = por %p209, %p210
    %p212 = scmp.ne.s32.totalorder %s203, %s204
    %p213 = scmp.eq.s32.totalorder %s25, 0
    %p214 = por %p212, %p213
    %p215 = scmp.ne.s32.totalorder %s203, %s204
    %p216 = scmp.eq.s32.totalorder %s26, 1
    %p217 = por %p215, %p216
    %p219 = scmp.ne.s32.totalorder %s204, %s218
    %p220 = scmp.eq.s32.totalorder %s26, 0
    %p221 = por %p219, %p220
    %s223 = sadd.s32 %s222, 1
    %p226 = scmp.eq.s32.totalorder %s20, 1
    %p227 = scmp.ne.s32.totalorder %s222, %s224
    %p228 = scmp.eq.s32.totalorder %s20, 0
    %p229 = por %p227, %p228
    %p230 = scmp.ne.s32.totalorder %s222, %s224
    %p231 = scmp.eq.s32.totalorder %s25, 1
    %p232 = por %p230, %p231
    %p233 = scmp.ne.s32.totalorder %s224, %s225
    %p234 = scmp.eq.s32.totalorder %s25, 0
    %p235 = por %p233, %p234
    %p236 = scmp.ne.s32.totalorder %s224, %s225
    %p237 = scmp.eq.s32.totalorder %s26, 1
    %p238 = por %p236, %p237
    %p240 = scmp.ne.s32.totalorder %s225, %s239
    %p241 = scmp.eq.s32.totalorder %s26, 0
    %p242 = por %p240, %p241
    %s244 = sadd.s32 %s243, 1
    %p247 = scmp.eq.s32.totalorder %s20, 1
    %p248 = scmp.ne.s32.totalorder %s243, %s245
    %p249 = scmp.eq.s32.totalorder %s20, 0
    %p250 = por %p248, %p249
    %p251 = scmp.ne.s32.totalorder %s243, %s245
    %p252 = scmp.eq.s32.totalorder %s25, 1
    %p253 = por %p251, %p252
    %p254 = scmp.ne.s32.totalorder %s245, %s246
    %p255 = scmp.eq.s32.totalorder %s25, 0
    %p256 = por %p254, %p255
    %p257 = scmp.ne.s32.totalorder %s245, %s246
    %p258 = scmp.eq.s32.totalorder %s26, 1
    %p259 = por %p257, %p258
    %p261 = scmp.ne.s32.totalorder %s246, %s260
    %p262 = scmp.eq.s32.totalorder %s26, 0
    %p263 = por %p261, %p262
    %s265 = sadd.s32 %s264, 1
    %p268 = scmp.eq.s32.totalorder %s20, 1
    %p269 = scmp.ne.s32.totalorder %s264, %s266
    %p270 = scmp.eq.s32.totalorder %s20, 0
    %p271 = por %p269, %p270
    %p272 = scmp.ne.s32.totalorder %s264, %s266
    %p273 = scmp.eq.s32.totalorder %s25, 1
    %p274 = por %p272, %p273
    %p275 = scmp.ne.s32.totalorder %s266, %s267
    %p276 = scmp.eq.s32.totalorder %s25, 0
    %p277 = por %p275, %p276
    %p278 = scmp.ne.s32.totalorder %s266, %s267
    %p279 = scmp.eq.s32.totalorder %s26, 1
    %p280 = por %p278, %p279
    %p282 = scmp.ne.s32.totalorder %s267, %s281
    %p283 = scmp.eq.s32.totalorder %s26, 0
    %p284 = por %p282, %p283
    %s286 = sadd.s32 %s285, 1
    %p289 = scmp.eq.s32.totalorder %s20, 1
    %p290 = scmp.ne.s32.totalorder %s285, %s287
    %p291 = scmp.eq.s32.totalorder %s20, 0
    %p292 = por %p290, %p291
    %p293 = scmp.ne.s32.totalorder %s285, %s287
    %p294 = scmp.eq.s32.totalorder %s25, 1
    %p295 = por %p293, %p294
    %p296 = scmp.ne.s32.totalorder %s287, %s288
    %p297 = scmp.eq.s32.totalorder %s25, 0
    %p298 = por %p296, %p297
    %p299 = scmp.ne.s32.totalorder %s287, %s288
    %p300 = scmp.eq.s32.totalorder %s26, 1
    %p301 = por %p299, %p300
    %p303 = scmp.ne.s32.totalorder %s288, %s302
    %p304 = scmp.eq.s32.totalorder %s26, 0
    %p305 = por %p303, %p304
    %s307 = sadd.s32 %s306, 1
    %p310 = scmp.eq.s32.totalorder %s20, 1
    %p311 = scmp.ne.s32.totalorder %s306, %s308
    %p312 = scmp.eq.s32.totalorder %s20, 0
    %p313 = por %p311, %p312
    %p314 = scmp.ne.s32.totalorder %s306, %s308
    %p315 = scmp.eq.s32.totalorder %s25, 1
    %p316 = por %p314, %p315
    %p317 = scmp.ne.s32.totalorder %s308, %s309
    %p318 = scmp.eq.s32.totalorder %s25, 0
    %p319 = por %p317, %p318
    %p320 = scmp.ne.s32.totalorder %s308, %s309
    %p321 = scmp.eq.s32.totalorder %s26, 1
    %p322 = por %p320, %p321
    %p324 = scmp.ne.s32.totalorder %s309, %s323
    %p325 = scmp.eq.s32.totalorder %s26, 0
    %p326 = por %p324, %p325
    %s327 = ssub.s32 %s20, %s27
    %p328 = scmp.eq.s32.totalorder %s327, 0
    %s330 = sadd.s32 %s329, 1
    %s331 = scalar_select %p328, %s329, %s330
    %p334 = pneg %p328
    %p335 = scmp.eq.s32.totalorder %s20, 1
    %p336 = por %p334, %p335
    %p337 = scmp.ne.s32.totalorder %s329, %s332
    %p338 = scmp.eq.s32.totalorder %s20, 0
    %p339 = por %p337, %p338
    %p340 = scmp.ne.s32.totalorder %s329, %s332
    %p341 = scmp.eq.s32.totalorder %s25, 1
    %p342 = por %p340, %p341
    %p343 = scmp.ne.s32.totalorder %s332, %s333
    %p344 = scmp.eq.s32.totalorder %s25, 0
    %p345 = por %p343, %p344
    %p346 = scmp.ne.s32.totalorder %s332, %s333
    %p347 = scmp.eq.s32.totalorder %s26, 1
    %p348 = por %p346, %p347
    %p350 = scmp.ne.s32.totalorder %s333, %s349
    %p351 = scmp.eq.s32.totalorder %s26, 0
    %p352 = por %p350, %p351
    %p353 = scmp.le.s32.totalorder 1, %s20
    %p354 = scmp.lt.s32.totalorder %s20, 3
    %p355 = pnand %p353, %p354
    %p356 = pneg %p355
    // Predicated region
    $region9: #{crossformer_block.1} parent=5 // pred_check
      _
    $region10: #{crossformer_block.1} parent=5 // pred_check_branch
      %358 = sbr.rel (%p355) target = $region12
    $region11: #{crossformer_block.1} parent=5 // pred_region
      %s359 = ssub.s32 %s20, 1
      // Predicated region
      $region13: #{crossformer_block.1} parent=11 // pred_check
        %p360 = pneg %p67
      $region14: #{crossformer_block.1} parent=11 // pred_check_branch
        %362 = sbr.rel (%p360) target = $region16
      $region15: #{crossformer_block.1} parent=11 // pred_region
        _
      $region16: #{crossformer_block.1} parent=11 // pred_fallthru
        _
      // Predicated region
      $region17: #{crossformer_block.1} parent=11 // pred_check
        %p363 = pneg %p88
      $region18: #{crossformer_block.1} parent=11 // pred_check_branch
        %365 = sbr.rel (%p363) target = $region20
      $region19: #{crossformer_block.1} parent=11 // pred_region
        _
      $region20: #{crossformer_block.1} parent=11 // pred_fallthru
        _
      // Predicated region
      $region21: #{crossformer_block.1} parent=11 // pred_check
        %p366 = pneg %p109
      $region22: #{crossformer_block.1} parent=11 // pred_check_branch
        %368 = sbr.rel (%p366) target = $region24
      $region23: #{crossformer_block.1} parent=11 // pred_region
        _
      $region24: #{crossformer_block.1} parent=11 // pred_fallthru
        _
      // Predicated region
      $region25: #{crossformer_block.1} parent=11 // pred_check
        %p369 = pneg %p130
      $region26: #{crossformer_block.1} parent=11 // pred_check_branch
        %371 = sbr.rel (%p369) target = $region28
      $region27: #{crossformer_block.1} parent=11 // pred_region
        _
      $region28: #{crossformer_block.1} parent=11 // pred_fallthru
        _
      // Predicated region
      $region29: #{crossformer_block.1} parent=11 // pred_check
        %p372 = pneg %p151
      $region30: #{crossformer_block.1} parent=11 // pred_check_branch
        %374 = sbr.rel (%p372) target = $region32
      $region31: #{crossformer_block.1} parent=11 // pred_region
        _
      $region32: #{crossformer_block.1} parent=11 // pred_fallthru
        _
      // Predicated region
      $region33: #{crossformer_block.1} parent=11 // pred_check
        %p375 = pneg %p172
      $region34: #{crossformer_block.1} parent=11 // pred_check_branch
        %377 = sbr.rel (%p375) target = $region36
      $region35: #{crossformer_block.1} parent=11 // pred_region
        _
      $region36: #{crossformer_block.1} parent=11 // pred_fallthru
        _
      // Predicated region
      $region37: #{crossformer_block.1} parent=11 // pred_check
        %p378 = pneg %p193
      $region38: #{crossformer_block.1} parent=11 // pred_check_branch
        %380 = sbr.rel (%p378) target = $region40
      $region39: #{crossformer_block.1} parent=11 // pred_region
        _
      $region40: #{crossformer_block.1} parent=11 // pred_fallthru
        _
      // Predicated region
      $region41: #{crossformer_block.1} parent=11 // pred_check
        %p381 = pneg %p214
      $region42: #{crossformer_block.1} parent=11 // pred_check_branch
        %383 = sbr.rel (%p381) target = $region44
      $region43: #{crossformer_block.1} parent=11 // pred_region
        _
      $region44: #{crossformer_block.1} parent=11 // pred_fallthru
        _
      // Predicated region
      $region45: #{crossformer_block.1} parent=11 // pred_check
        %p384 = pneg %p235
      $region46: #{crossformer_block.1} parent=11 // pred_check_branch
        %386 = sbr.rel (%p384) target = $region48
      $region47: #{crossformer_block.1} parent=11 // pred_region
        _
      $region48: #{crossformer_block.1} parent=11 // pred_fallthru
        _
      // Predicated region
      $region49: #{crossformer_block.1} parent=11 // pred_check
        %p387 = pneg %p256
      $region50: #{crossformer_block.1} parent=11 // pred_check_branch
        %389 = sbr.rel (%p387) target = $region52
      $region51: #{crossformer_block.1} parent=11 // pred_region
        _
      $region52: #{crossformer_block.1} parent=11 // pred_fallthru
        _
      // Predicated region
      $region53: #{crossformer_block.1} parent=11 // pred_check
        %p390 = pneg %p277
      $region54: #{crossformer_block.1} parent=11 // pred_check_branch
        %392 = sbr.rel (%p390) target = $region56
      $region55: #{crossformer_block.1} parent=11 // pred_region
        _
      $region56: #{crossformer_block.1} parent=11 // pred_fallthru
        _
      // Predicated region
      $region57: #{crossformer_block.1} parent=11 // pred_check
        %p393 = pneg %p298
      $region58: #{crossformer_block.1} parent=11 // pred_check_branch
        %395 = sbr.rel (%p393) target = $region60
      $region59: #{crossformer_block.1} parent=11 // pred_region
        _
      $region60: #{crossformer_block.1} parent=11 // pred_fallthru
        _
      // Predicated region
      $region61: #{crossformer_block.1} parent=11 // pred_check
        %p396 = pneg %p319
      $region62: #{crossformer_block.1} parent=11 // pred_check_branch
        %398 = sbr.rel (%p396) target = $region64
      $region63: #{crossformer_block.1} parent=11 // pred_region
        _
      $region64: #{crossformer_block.1} parent=11 // pred_fallthru
        _
    $region12: #{crossformer_block.1} parent=5 // pred_fallthru
      _
    %p399 = scmp.lt.s32.totalorder %s20, 2
    // Predicated region
    $region65: #{crossformer_block.1} parent=5 // pred_check
      %p400 = pneg %p399
    $region66: #{crossformer_block.1} parent=5 // pred_check_branch
      %402 = sbr.rel (%p400) target = $region68
    $region67: #{crossformer_block.1} parent=5 // pred_region
      // Predicated region
      $region69: #{crossformer_block.1} parent=67 // pred_check
        %p403 = pneg %p40
      $region70: #{crossformer_block.1} parent=67 // pred_check_branch
        %405 = sbr.rel (%p403) target = $region72
      $region71: #{crossformer_block.1} parent=67 // pred_region
        %s406 = smul.u32 4, %s20
        %p407 = scmp.lt.s32.totalorder %s406, 7
        %s408 = scalar_select %p407, %s406, 7
        %s409 = smul.addr %s408, 2
        %s410 = smul.addr %s409, 8
        %s411 = scalar_lea.vmem %s0, %s410
        %s412 = smul.u32 4, %s20
      $region72: #{crossformer_block.1} parent=67 // pred_fallthru
        _
    $region68: #{crossformer_block.1} parent=5 // pred_fallthru
      _
    %p413 = scmp.le.s32.totalorder 1, %s20
    %p414 = scmp.lt.s32.totalorder %s20, 3
    %p415 = pnand %p413, %p414
    %p416 = pneg %p415
    // Predicated region
    $region73: #{crossformer_block.1} parent=5 // pred_check
      _
    $region74: #{crossformer_block.1} parent=5 // pred_check_branch
      %418 = sbr.rel (%p415) target = $region76
    $region75: #{crossformer_block.1} parent=5 // pred_region
      %s419 = ssub.s32 %s20, 1
      %s420 = smul.u32 4, %s25
      %p421 = scmp.lt.s32.totalorder %s420, 7
      %s422 = scalar_select %p421, %s420, 7
      %s423 = smul.addr %s422, 2
      %s424 = smul.addr %s423, 8
      %s425 = scalar_lea.vmem %s0, %s424
      %p426 = pneg %p46
      %p427 = pneg %p43
      %p428 = pneg %p67
      %p429 = pneg %p64
      %p430 = pneg %p88
      %p431 = pneg %p85
      %p432 = pneg %p109
      %p433 = pneg %p106
      %p434 = pneg %p130
      %p435 = pneg %p127
      %p436 = pneg %p151
      %p437 = pneg %p148
      %p438 = pneg %p172
      %p439 = pneg %p169
      %p440 = pneg %p193
      %p441 = pneg %p190
      %p442 = pneg %p214
      %p443 = pneg %p211
      %p444 = pneg %p235
      %p445 = pneg %p232
      %p446 = pneg %p256
      %p447 = pneg %p253
      %p448 = pneg %p277
      %p449 = pneg %p274
      %p450 = pneg %p298
      %p451 = pneg %p295
      %p452 = pneg %p319
      %p453 = pneg %p316
      %p454 = pneg %p345
      %p455 = pneg %p342
      %s456 = smul.u32 4, %s25
      %p457 = scmp.lt.s32.totalorder %s456, 7
      %s458 = scalar_select %p457, %s456, 7
      %s459 = smul.addr %s458, 2
      %s460 = smul.addr %s459, 8
      %s461 = scalar_lea.vmem %s14, %s460
      %s462 = smul.u32 4, %s25
      %p463 = scmp.lt.s32.totalorder %s462, 7
      %s464 = scalar_select %p463, %s462, 7
      %s465 = smul.addr %s464, 2
      %s466 = smul.addr %s465, 8
      %s467 = scalar_lea.vmem %s0, %s466
      %s468 = smul.u32 4, %s25
      %s469 = smul.u32 4, %s25
      %p470 = scmp.lt.s32.totalorder %s469, 7
      %s471 = scalar_select %p470, %s469, 7
      %s472 = smul.addr %s471, 2
      %s473 = smul.addr %s472, 8
      %s474 = scalar_lea.vmem %s14, %s473
      %s475 = smul.u32 4, %s25
      %v476 = vld [vmem:[%s467] sm:$0xff]
      %v477 = vld [vmem:[%s467 + $0x8] sm:$0xff]
      %v478 = vld [vmem:[%s467 + $0x10] sm:$0xff]
      %v479 = vld [vmem:[%s467 + $0x18] sm:$0xff]
      %v480 = vld [vmem:[%s467 + $0x20] sm:$0xff]
      %v481 = vld [vmem:[%s467 + $0x28] sm:$0xff]
      %v482 = vld [vmem:[%s467 + $0x30] sm:$0xff]
      %v483 = vld [vmem:[%s467 + $0x38] sm:$0xff]
      %vm484 = vcmask 261120
      %v485 = vsel %vm484, %v476, 0.0
      %486 = vadd.xlane.f32.xlu0 %v485
      %v487 = vpop.xlane.xlu0 %486
      %v488 = vsel %vm484, %v477, 0.0
      %489 = vadd.xlane.f32.xlu0 %v488
      %v490 = vpop.xlane.xlu0 %489
      %v491 = vsel %vm484, %v478, 0.0
      %492 = vadd.xlane.f32.xlu0 %v491
      %v493 = vpop.xlane.xlu0 %492
      %v494 = vsel %vm484, %v479, 0.0
      %495 = vadd.xlane.f32.xlu0 %v494
      %v496 = vpop.xlane.xlu0 %495
      %v497 = vsel %vm484, %v480, 0.0
      %498 = vadd.xlane.f32.xlu0 %v497
      %v499 = vpop.xlane.xlu0 %498
      %v500 = vsel %vm484, %v481, 0.0
      %501 = vadd.xlane.f32.xlu0 %v500
      %v502 = vpop.xlane.xlu0 %501
      %v503 = vsel %vm484, %v482, 0.0
      %504 = vadd.xlane.f32.xlu0 %v503
      %v505 = vpop.xlane.xlu0 %504
      %v506 = vsel %vm484, %v483, 0.0
      %507 = vadd.xlane.f32.xlu0 %v506
      %v508 = vpop.xlane.xlu0 %507
      %v509 = vrcp.pop 32.0
      %v510 = vmul.f32 %v487, %v509
      %v511 = vmul.f32 %v490, %v509
      %v512 = vmul.f32 %v493, %v509
      %v513 = vmul.f32 %v496, %v509
      %v514 = vmul.f32 %v499, %v509
      %v515 = vmul.f32 %v502, %v509
      %v516 = vmul.f32 %v505, %v509
      %v517 = vmul.f32 %v508, %v509
      %v518 = vsub.f32 %v476, %v510
      %v519 = vsub.f32 %v477, %v511
      %v520 = vsub.f32 %v478, %v512
      %v521 = vsub.f32 %v479, %v513
      %v522 = vsub.f32 %v480, %v514
      %v523 = vsub.f32 %v481, %v515
      %v524 = vsub.f32 %v482, %v516
      %v525 = vsub.f32 %v483, %v517
      %v526 = vmul.f32 %v518, %v518
      %v527 = vmul.f32 %v519, %v519
      %v528 = vmul.f32 %v520, %v520
      %v529 = vmul.f32 %v521, %v521
      %v530 = vmul.f32 %v522, %v522
      %v531 = vmul.f32 %v523, %v523
      %v532 = vmul.f32 %v524, %v524
      %v533 = vmul.f32 %v525, %v525
      %v534 = vsel %vm484, %v526, 0.0
      %535 = vadd.xlane.f32.xlu0 %v534
      %v536 = vpop.xlane.xlu0 %535
      %v537 = vsel %vm484, %v527, 0.0
      %538 = vadd.xlane.f32.xlu0 %v537
      %v539 = vpop.xlane.xlu0 %538
      %v540 = vsel %vm484, %v528, 0.0
      %541 = vadd.xlane.f32.xlu0 %v540
      %v542 = vpop.xlane.xlu0 %541
      %v543 = vsel %vm484, %v529, 0.0
      %544 = vadd.xlane.f32.xlu0 %v543
      %v545 = vpop.xlane.xlu0 %544
      %v546 = vsel %vm484, %v530, 0.0
      %547 = vadd.xlane.f32.xlu0 %v546
      %v548 = vpop.xlane.xlu0 %547
      %v549 = vsel %vm484, %v531, 0.0
      %550 = vadd.xlane.f32.xlu0 %v549
      %v551 = vpop.xlane.xlu0 %550
      %v552 = vsel %vm484, %v532, 0.0
      %553 = vadd.xlane.f32.xlu0 %v552
      %v554 = vpop.xlane.xlu0 %553
      %v555 = vsel %vm484, %v533, 0.0
      %556 = vadd.xlane.f32.xlu0 %v555
      %v557 = vpop.xlane.xlu0 %556
      %v558 = vmul.f32 %v536, %v509
      %v559 = vmul.f32 %v539, %v509
      %v560 = vmul.f32 %v542, %v509
      %v561 = vmul.f32 %v545, %v509
      %v562 = vmul.f32 %v548, %v509
      %v563 = vmul.f32 %v551, %v509
      %v564 = vmul.f32 %v554, %v509
      %v565 = vmul.f32 %v557, %v509
      %v566 = vadd.f32 %v558, 1e-05
      %v567 = vadd.f32 %v559, 1e-05
      %v568 = vadd.f32 %v560, 1e-05
      %v569 = vadd.f32 %v561, 1e-05
      %v570 = vadd.f32 %v562, 1e-05
      %v571 = vadd.f32 %v563, 1e-05
      %v572 = vadd.f32 %v564, 1e-05
      %v573 = vadd.f32 %v565, 1e-05
      %v574 = vrsqrt.pop %v566
      %v575 = vrsqrt.pop %v567
      %v576 = vrsqrt.pop %v568
      %v577 = vrsqrt.pop %v569
      %v578 = vrsqrt.pop %v570
      %v579 = vrsqrt.pop %v571
      %v580 = vrsqrt.pop %v572
      %v581 = vrsqrt.pop %v573
      %v582 = vmul.f32 %v518, %v574
      %v583 = vmul.f32 %v519, %v575
      %v584 = vmul.f32 %v520, %v576
      %v585 = vmul.f32 %v521, %v577
      %v586 = vmul.f32 %v522, %v578
      %v587 = vmul.f32 %v523, %v579
      %v588 = vmul.f32 %v524, %v580
      %v589 = vmul.f32 %v525, %v581
      %v590 = vld [vmem:[%s2] sm:$0x1]
      %v592 = vlaneseq
      %v593 = vshrl.u32 %v592, 7
      %v594 = vsub.s32 0, %v593
      %v595 = vrot.slane %v590, %v594
      %v597 = vmul.f32 %v582, %v595
      %v598 = vmul.f32 %v583, %v595
      %v599 = vmul.f32 %v584, %v595
      %v600 = vmul.f32 %v585, %v595
      %v601 = vmul.f32 %v586, %v595
      %v602 = vmul.f32 %v587, %v595
      %v603 = vmul.f32 %v588, %v595
      %v604 = vmul.f32 %v589, %v595
      %v605 = vld [vmem:[%s3] sm:$0x1]
      %v607 = vlaneseq
      %v608 = vshrl.u32 %v607, 7
      %v609 = vsub.s32 0, %v608
      %v610 = vrot.slane %v605, %v609
      %v612 = vadd.f32 %v597, %v610
      %v613 = vadd.f32 %v598, %v610
      %v614 = vadd.f32 %v599, %v610
      %v615 = vadd.f32 %v600, %v610
      %v616 = vadd.f32 %v601, %v610
      %v617 = vadd.f32 %v602, %v610
      %v618 = vadd.f32 %v603, %v610
      %v619 = vadd.f32 %v604, %v610
      %v620 = vld [vmem:[%s4] sm:$0xff]
      %v621 = vld [vmem:[%s4 + $0x8] sm:$0xff]
      %v622 = vld [vmem:[%s4 + $0x10] sm:$0xff]
      %v623 = vld [vmem:[%s4 + $0x18] sm:$0xff]
      %v624 = vld [vmem:[%s5] sm:$0x1]
      %v626 = vlaneseq
      %v627 = vshrl.u32 %v626, 7
      %v628 = vsub.s32 0, %v627
      %v629 = vrot.slane %v624, %v628
      %v632 = vsel %vm484, %v612, 0
      %v635 = vsel %vm484, %v613, 0
      %v638 = vsel %vm484, %v614, 0
      %v641 = vsel %vm484, %v615, 0
      %v644 = vsel %vm484, %v616, 0
      %v647 = vsel %vm484, %v617, 0
      %v650 = vsel %vm484, %v618, 0
      %v653 = vsel %vm484, %v619, 0
      %655 = vmatprep.subr.mxu0 0.0
      %656 = vmatpush1.msra.mxu0 0.0
      %657 = vmatprep.subr.mxu0 0.0
      %658 = vmatpush1.msra.mxu0 0.0
      %659 = vmatprep.subr.mxu0 0.0
      %660 = vmatpush1.msra.mxu0 0.0
      %661 = vmatprep.subr.mxu0 0.0
      %662 = vmatpush1.msra.mxu0 0.0
      %663 = vmatprep.subr.mxu0 0.0
      %664 = vmatpush1.msra.mxu0 0.0
      %665 = vmatprep.subr.mxu0 0.0
      %666 = vmatpush1.msra.mxu0 0.0
      %667 = vmatprep.subr.mxu0 0.0
      %668 = vmatpush1.msra.mxu0 0.0
      %669 = vmatprep.subr.mxu0 0.0
      %670 = vmatpush1.msra.mxu0 0.0
      %671 = vmatprep.subr.mxu0 0.0
      %672 = vmatpush1.msra.mxu0 0.0
      %673 = vmatprep.subr.mxu0 0.0
      %674 = vmatpush1.msra.mxu0 0.0
      %675 = vmatprep.subr.mxu0 0.0
      %676 = vmatpush1.msra.mxu0 0.0
      %677 = vmatprep.subr.mxu0 0.0
      %678 = vmatpush1.msra.mxu0 0.0
      %679 = vmatprep.subr.mxu0 0.0
      %680 = vmatpush1.msra.mxu0 %v623
      %681 = vmatprep.subr.mxu0 0.0
      %682 = vmatpush1.msra.mxu0 %v622
      %683 = vmatprep.subr.mxu0 0.0
      %684 = vmatpush1.msra.mxu0 %v621
      %685 = vmatprep.subr.mxu0 0.0
      %686 = vmatpush1.msra.mxu0 %v620
      %687 = vmatprep.subr.mxu0 0.0
      %688 = vmatpush2.msra.mxu0 0.0
      %689 = vmatprep.subr.mxu0 0.0
      %690 = vmatpush2.msra.mxu0 0.0
      %691 = vmatprep.subr.mxu0 0.0
      %692 = vmatpush2.msra.mxu0 0.0
      %693 = vmatprep.subr.mxu0 0.0
      %694 = vmatpush2.msra.mxu0 0.0
      %695 = vmatprep.subr.mxu0 0.0
      %696 = vmatpush2.msra.mxu0 0.0
      %697 = vmatprep.subr.mxu0 0.0
      %698 = vmatpush2.msra.mxu0 0.0
      %699 = vmatprep.subr.mxu0 0.0
      %700 = vmatpush2.msra.mxu0 0.0
      %701 = vmatprep.subr.mxu0 0.0
      %702 = vmatpush2.msra.mxu0 0.0
      %703 = vmatprep.subr.mxu0 0.0
      %704 = vmatpush2.msra.mxu0 0.0
      %705 = vmatprep.subr.mxu0 0.0
      %706 = vmatpush2.msra.mxu0 0.0
      %707 = vmatprep.subr.mxu0 0.0
      %708 = vmatpush2.msra.mxu0 0.0
      %709 = vmatprep.subr.mxu0 0.0
      %710 = vmatpush2.msra.mxu0 0.0
      %711 = vmatprep.subr.mxu0 0.0
      %712 = vmatpush2.msra.mxu0 0.0
      %713 = vmatprep.subr.mxu0 0.0
      %714 = vmatpush2.msra.mxu0 0.0
      %715 = vmatprep.subr.mxu0 0.0
      %716 = vmatpush2.msra.mxu0 0.0
      %717 = vmatprep.subr.mxu0 0.0
      %718 = vmatpush2.msra.mxu0 0.0
      %719 = vmatprep.mubr.f32.mxu0 0.0
      %720 = vmatmul.mubr.f32.gmra.mxu0 %v632
      %v721 = vpop.f32.mrf.mxu0
      %v722 = vadd.f32 %v629, %v721
      %v723 = vpop.f32.mrf.mxu0
      %724 = vmatprep.mubr.f32.mxu0 0.0
      %725 = vmatmul.mubr.f32.gmra.mxu0 %v635
      %v726 = vpop.f32.mrf.mxu0
      %v727 = vadd.f32 %v629, %v726
      %v728 = vpop.f32.mrf.mxu0
      %729 = vmatprep.mubr.f32.mxu0 0.0
      %730 = vmatmul.mubr.f32.gmra.mxu0 %v638
      %v731 = vpop.f32.mrf.mxu0
      %v732 = vadd.f32 %v629, %v731
      %v733 = vpop.f32.mrf.mxu0
      %734 = vmatprep.mubr.f32.mxu0 0.0
      %735 = vmatmul.mubr.f32.gmra.mxu0 %v641
      %v736 = vpop.f32.mrf.mxu0
      %v737 = vadd.f32 %v629, %v736
      %v738 = vpop.f32.mrf.mxu0
      %739 = vmatprep.mubr.f32.mxu0 0.0
      %740 = vmatmul.mubr.f32.gmra.mxu0 %v644
      %v741 = vpop.f32.mrf.mxu0
      %v742 = vadd.f32 %v629, %v741
      %v743 = vpop.f32.mrf.mxu0
      %744 = vmatprep.mubr.f32.mxu0 0.0
      %745 = vmatmul.mubr.f32.gmra.mxu0 %v647
      %v746 = vpop.f32.mrf.mxu0
      %v747 = vadd.f32 %v629, %v746
      %v748 = vpop.f32.mrf.mxu0
      %749 = vmatprep.mubr.f32.mxu0 0.0
      %750 = vmatmul.mubr.f32.gmra.mxu0 %v650
      %v751 = vpop.f32.mrf.mxu0
      %v752 = vadd.f32 %v629, %v751
      %v753 = vpop.f32.mrf.mxu0
      %754 = vmatprep.mubr.f32.mxu0 0.0
      %755 = vmatmul.mubr.f32.gmra.mxu0 %v653
      %v756 = vpop.f32.mrf.mxu0
      %v757 = vadd.f32 %v629, %v756
      %v758 = vpop.f32.mrf.mxu0
      %759 = vdwg.mxu0
      %vm760 = vcmask 785408
      %761 = vst.msk [vmem:[#allocation2] sm:$0xff] %vm760, %v722
      %762 = vst.msk [vmem:[#allocation2 + $0x8] sm:$0xff] %vm760, %v727
      %763 = vst.msk [vmem:[#allocation2 + $0x10] sm:$0xff] %vm760, %v732
      %764 = vst.msk [vmem:[#allocation2 + $0x18] sm:$0xff] %vm760, %v737
      %765 = vst.msk [vmem:[#allocation2 + $0x20] sm:$0xff] %vm760, %v742
      %766 = vst.msk [vmem:[#allocation2 + $0x28] sm:$0xff] %vm760, %v747
      %767 = vst.msk [vmem:[#allocation2 + $0x30] sm:$0xff] %vm760, %v752
      %768 = vst.msk [vmem:[#allocation2 + $0x38] sm:$0xff] %vm760, %v757
      %v769 = vld [vmem:[%s1] sm:$0xff]
      %v770 = vld [vmem:[%s1 + $0x8] sm:$0xff]
      %v771 = vld [vmem:[%s1 + $0x10] sm:$0xff]
      %v772 = vld [vmem:[%s1 + $0x18] sm:$0xff]
      %v773 = vld [vmem:[%s1 + $0x20] sm:$0xff]
      %v774 = vld [vmem:[%s1 + $0x28] sm:$0xff]
      %v775 = vld [vmem:[%s1 + $0x30] sm:$0xff]
      %v776 = vld [vmem:[%s1 + $0x38] sm:$0xff]
      %v777 = vld [vmem:[#allocation2] sm:$0xff]
      %v778 = vld [vmem:[#allocation2 + $0x8] sm:$0xff]
      %v779 = vld [vmem:[#allocation2 + $0x10] sm:$0xff]
      %v780 = vld [vmem:[#allocation2 + $0x18] sm:$0xff]
      %v781 = vld [vmem:[#allocation2 + $0x20] sm:$0xff]
      %v782 = vld [vmem:[#allocation2 + $0x28] sm:$0xff]
      %v783 = vld [vmem:[#allocation2 + $0x30] sm:$0xff]
      %v784 = vld [vmem:[#allocation2 + $0x38] sm:$0xff]
      %v785 = vmul.f32 %v777, 0.35355338
      %v786 = vmul.f32 %v778, 0.35355338
      %v787 = vmul.f32 %v779, 0.35355338
      %v788 = vmul.f32 %v780, 0.35355338
      %v789 = vmul.f32 %v781, 0.35355338
      %v790 = vmul.f32 %v782, 0.35355338
      %v791 = vmul.f32 %v783, 0.35355338
      %v792 = vmul.f32 %v784, 0.35355338
      %795 = vrot.lane.b32.xlu0 %v777, 96
      %v796 = vpop.permute.xlu0 %795
      %797 = vrot.lane.b32.xlu0 %v778, 96
      %v798 = vpop.permute.xlu0 %797
      %vm799 = vcmask 64512
      %v801 = vsel %vm799, %v785, 0
      %v804 = vsel %vm799, %v786, 0
      %v806 = vsel %vm799, %v796, 0
      %v808 = vsel %vm799, %v798, 0
      %810 = vmatprep.subr.mxu0 0.0
      %811 = vmatpush1.xpose.msra.mxu0 0.0
      %812 = vmatprep.subr.mxu0 0.0
      %813 = vmatpush1.xpose.msra.mxu0 0.0
      %814 = vmatprep.subr.mxu0 0.0
      %815 = vmatpush1.xpose.msra.mxu0 0.0
      %816 = vmatprep.subr.mxu0 0.0
      %817 = vmatpush1.xpose.msra.mxu0 0.0
      %818 = vmatprep.subr.mxu0 0.0
      %819 = vmatpush1.xpose.msra.mxu0 0.0
      %820 = vmatprep.subr.mxu0 0.0
      %821 = vmatpush1.xpose.msra.mxu0 0.0
      %822 = vmatprep.subr.mxu0 0.0
      %823 = vmatpush1.xpose.msra.mxu0 0.0
      %824 = vmatprep.subr.mxu0 0.0
      %825 = vmatpush1.xpose.msra.mxu0 0.0
      %826 = vmatprep.subr.mxu0 0.0
      %827 = vmatpush1.xpose.msra.mxu0 0.0
      %828 = vmatprep.subr.mxu0 0.0
      %829 = vmatpush1.xpose.msra.mxu0 0.0
      %830 = vmatprep.subr.mxu0 0.0
      %831 = vmatpush1.xpose.msra.mxu0 0.0
      %832 = vmatprep.subr.mxu0 0.0
      %833 = vmatpush1.xpose.msra.mxu0 0.0
      %834 = vmatprep.subr.mxu0 0.0
      %835 = vmatpush1.xpose.msra.mxu0 0.0
      %836 = vmatprep.subr.mxu0 0.0
      %837 = vmatpush1.xpose.msra.mxu0 0.0
      %838 = vmatprep.subr.mxu0 0.0
      %839 = vmatpush1.xpose.msra.mxu0 %v808
      %840 = vmatprep.subr.mxu0 0.0
      %841 = vmatpush1.xpose.msra.mxu0 %v806
      %842 = vmatprep.subr.mxu0 0.0
      %843 = vmatpush2.xpose.msra.mxu0 0.0
      %844 = vmatprep.subr.mxu0 0.0
      %845 = vmatpush2.xpose.msra.mxu0 0.0
      %846 = vmatprep.subr.mxu0 0.0
      %847 = vmatpush2.xpose.msra.mxu0 0.0
      %848 = vmatprep.subr.mxu0 0.0
      %849 = vmatpush2.xpose.msra.mxu0 0.0
      %850 = vmatprep.subr.mxu0 0.0
      %851 = vmatpush2.xpose.msra.mxu0 0.0
      %852 = vmatprep.subr.mxu0 0.0
      %853 = vmatpush2.xpose.msra.mxu0 0.0
      %854 = vmatprep.subr.mxu0 0.0
      %855 = vmatpush2.xpose.msra.mxu0 0.0
      %856 = vmatprep.subr.mxu0 0.0
      %857 = vmatpush2.xpose.msra.mxu0 0.0
      %858 = vmatprep.subr.mxu0 0.0
      %859 = vmatpush2.xpose.msra.mxu0 0.0
      %860 = vmatprep.subr.mxu0 0.0
      %861 = vmatpush2.xpose.msra.mxu0 0.0
      %862 = vmatprep.subr.mxu0 0.0
      %863 = vmatpush2.xpose.msra.mxu0 0.0
      %864 = vmatprep.subr.mxu0 0.0
      %865 = vmatpush2.xpose.msra.mxu0 0.0
      %866 = vmatprep.subr.mxu0 0.0
      %867 = vmatpush2.xpose.msra.mxu0 0.0
      %868 = vmatprep.subr.mxu0 0.0
      %869 = vmatpush2.xpose.msra.mxu0 0.0
      %870 = vmatprep.subr.mxu0 0.0
      %871 = vmatpush2.xpose.msra.mxu0 0.0
      %872 = vmatprep.subr.mxu0 0.0
      %873 = vmatpush2.xpose.msra.mxu0 0.0
      %874 = vmatprep.mubr.f32.mxu0 0.0
      %875 = vmatmul.mubr.f32.gmra.mxu0 %v801
      %v876 = vpop.f32.mrf.mxu0
      %v877 = vadd.f32 %v769, %v876
      %v878 = vpop.f32.mrf.mxu0
      %879 = vmatprep.mubr.f32.mxu0 0.0
      %880 = vmatmul.mubr.f32.gmra.mxu0 %v804
      %v881 = vpop.f32.mrf.mxu0
      %v882 = vadd.f32 %v770, %v881
      %v883 = vpop.f32.mrf.mxu0
      %884 = vdwg.mxu0
      %887 = vrot.lane.b32.xlu0 %v779, 96
      %v888 = vpop.permute.xlu0 %887
      %889 = vrot.lane.b32.xlu0 %v780, 96
      %v890 = vpop.permute.xlu0 %889
      %v892 = vsel %vm799, %v787, 0
      %v895 = vsel %vm799, %v788, 0
      %v897 = vsel %vm799, %v888, 0
      %v899 = vsel %vm799, %v890, 0
      %901 = vmatprep.subr.mxu0 0.0
      %902 = vmatpush1.xpose.msra.mxu0 0.0
      %903 = vmatprep.subr.mxu0 0.0
      %904 = vmatpush1.xpose.msra.mxu0 0.0
      %905 = vmatprep.subr.mxu0 0.0
      %906 = vmatpush1.xpose.msra.mxu0 0.0
      %907 = vmatprep.subr.mxu0 0.0
      %908 = vmatpush1.xpose.msra.mxu0 0.0
      %909 = vmatprep.subr.mxu0 0.0
      %910 = vmatpush1.xpose.msra.mxu0 0.0
      %911 = vmatprep.subr.mxu0 0.0
      %912 = vmatpush1.xpose.msra.mxu0 0.0
      %913 = vmatprep.subr.mxu0 0.0
      %914 = vmatpush1.xpose.msra.mxu0 0.0
      %915 = vmatprep.subr.mxu0 0.0
      %916 = vmatpush1.xpose.msra.mxu0 0.0
      %917 = vmatprep.subr.mxu0 0.0
      %918 = vmatpush1.xpose.msra.mxu0 0.0
      %919 = vmatprep.subr.mxu0 0.0
      %920 = vmatpush1.xpose.msra.mxu0 0.0
      %921 = vmatprep.subr.mxu0 0.0
      %922 = vmatpush1.xpose.msra.mxu0 0.0
      %923 = vmatprep.subr.mxu0 0.0
      %924 = vmatpush1.xpose.msra.mxu0 0.0
      %925 = vmatprep.subr.mxu0 0.0
      %926 = vmatpush1.xpose.msra.mxu0 0.0
      %927 = vmatprep.subr.mxu0 0.0
      %928 = vmatpush1.xpose.msra.mxu0 0.0
      %929 = vmatprep.subr.mxu0 0.0
      %930 = vmatpush1.xpose.msra.mxu0 %v899
      %931 = vmatprep.subr.mxu0 0.0
      %932 = vmatpush1.xpose.msra.mxu0 %v897
      %933 = vmatprep.subr.mxu0 0.0
      %934 = vmatpush2.xpose.msra.mxu0 0.0
      %935 = vmatprep.subr.mxu0 0.0
      %936 = vmatpush2.xpose.msra.mxu0 0.0
      %937 = vmatprep.subr.mxu0 0.0
      %938 = vmatpush2.xpose.msra.mxu0 0.0
      %939 = vmatprep.subr.mxu0 0.0
      %940 = vmatpush2.xpose.msra.mxu0 0.0
      %941 = vmatprep.subr.mxu0 0.0
      %942 = vmatpush2.xpose.msra.mxu0 0.0
      %943 = vmatprep.subr.mxu0 0.0
      %944 = vmatpush2.xpose.msra.mxu0 0.0
      %945 = vmatprep.subr.mxu0 0.0
      %946 = vmatpush2.xpose.msra.mxu0 0.0
      %947 = vmatprep.subr.mxu0 0.0
      %948 = vmatpush2.xpose.msra.mxu0 0.0
      %949 = vmatprep.subr.mxu0 0.0
      %950 = vmatpush2.xpose.msra.mxu0 0.0
      %951 = vmatprep.subr.mxu0 0.0
      %952 = vmatpush2.xpose.msra.mxu0 0.0
      %953 = vmatprep.subr.mxu0 0.0
      %954 = vmatpush2.xpose.msra.mxu0 0.0
      %955 = vmatprep.subr.mxu0 0.0
      %956 = vmatpush2.xpose.msra.mxu0 0.0
      %957 = vmatprep.subr.mxu0 0.0
      %958 = vmatpush2.xpose.msra.mxu0 0.0
      %959 = vmatprep.subr.mxu0 0.0
      %960 = vmatpush2.xpose.msra.mxu0 0.0
      %961 = vmatprep.subr.mxu0 0.0
      %962 = vmatpush2.xpose.msra.mxu0 0.0
      %963 = vmatprep.subr.mxu0 0.0
      %964 = vmatpush2.xpose.msra.mxu0 0.0
      %965 = vmatprep.mubr.f32.mxu0 0.0
      %966 = vmatmul.mubr.f32.gmra.mxu0 %v892
      %v967 = vpop.f32.mrf.mxu0
      %v968 = vadd.f32 %v769, %v967
      %v969 = vpop.f32.mrf.mxu0
      %970 = vmatprep.mubr.f32.mxu0 0.0
      %971 = vmatmul.mubr.f32.gmra.mxu0 %v895
      %v972 = vpop.f32.mrf.mxu0
      %v973 = vadd.f32 %v770, %v972
      %v974 = vpop.f32.mrf.mxu0
      %975 = vdwg.mxu0
      %978 = vrot.lane.b32.xlu0 %v781, 96
      %v979 = vpop.permute.xlu0 %978
      %980 = vrot.lane.b32.xlu0 %v782, 96
      %v981 = vpop.permute.xlu0 %980
      %v983 = vsel %vm799, %v789, 0
      %v986 = vsel %vm799, %v790, 0
      %v988 = vsel %vm799, %v979, 0
      %v990 = vsel %vm799, %v981, 0
      %992 = vmatprep.subr.mxu0 0.0
      %993 = vmatpush1.xpose.msra.mxu0 0.0
      %994 = vmatprep.subr.mxu0 0.0
      %995 = vmatpush1.xpose.msra.mxu0 0.0
      %996 = vmatprep.subr.mxu0 0.0
      %997 = vmatpush1.xpose.msra.mxu0 0.0
      %998 = vmatprep.subr.mxu0 0.0
      %999 = vmatpush1.xpose.msra.mxu0 0.0
      %1000 = vmatprep.subr.mxu0 0.0
      %1001 = vmatpush1.xpose.msra.mxu0 0.0
      %1002 = vmatprep.subr.mxu0 0.0
      %1003 = vmatpush1.xpose.msra.mxu0 0.0
      %1004 = vmatprep.subr.mxu0 0.0
      %1005 = vmatpush1.xpose.msra.mxu0 0.0
      %1006 = vmatprep.subr.mxu0 0.0
      %1007 = vmatpush1.xpose.msra.mxu0 0.0
      %1008 = vmatprep.subr.mxu0 0.0
      %1009 = vmatpush1.xpose.msra.mxu0 0.0
      %1010 = vmatprep.subr.mxu0 0.0
      %1011 = vmatpush1.xpose.msra.mxu0 0.0
      %1012 = vmatprep.subr.mxu0 0.0
      %1013 = vmatpush1.xpose.msra.mxu0 0.0
      %1014 = vmatprep.subr.mxu0 0.0
      %1015 = vmatpush1.xpose.msra.mxu0 0.0
      %1016 = vmatprep.subr.mxu0 0.0
      %1017 = vmatpush1.xpose.msra.mxu0 0.0
      %1018 = vmatprep.subr.mxu0 0.0
      %1019 = vmatpush1.xpose.msra.mxu0 0.0
      %1020 = vmatprep.subr.mxu0 0.0
      %1021 = vmatpush1.xpose.msra.mxu0 %v990
      %1022 = vmatprep.subr.mxu0 0.0
      %1023 = vmatpush1.xpose.msra.mxu0 %v988
      %1024 = vmatprep.subr.mxu0 0.0
      %1025 = vmatpush2.xpose.msra.mxu0 0.0
      %1026 = vmatprep.subr.mxu0 0.0
      %1027 = vmatpush2.xpose.msra.mxu0 0.0
      %1028 = vmatprep.subr.mxu0 0.0
      %1029 = vmatpush2.xpose.msra.mxu0 0.0
      %1030 = vmatprep.subr.mxu0 0.0
      %1031 = vmatpush2.xpose.msra.mxu0 0.0
      %1032 = vmatprep.subr.mxu0 0.0
      %1033 = vmatpush2.xpose.msra.mxu0 0.0
      %1034 = vmatprep.subr.mxu0 0.0
      %1035 = vmatpush2.xpose.msra.mxu0 0.0
      %1036 = vmatprep.subr.mxu0 0.0
      %1037 = vmatpush2.xpose.msra.mxu0 0.0
      %1038 = vmatprep.subr.mxu0 0.0
      %1039 = vmatpush2.xpose.msra.mxu0 0.0
      %1040 = vmatprep.subr.mxu0 0.0
      %1041 = vmatpush2.xpose.msra.mxu0 0.0
      %1042 = vmatprep.subr.mxu0 0.0
      %1043 = vmatpush2.xpose.msra.mxu0 0.0
      %1044 = vmatprep.subr.mxu0 0.0
      %1045 = vmatpush2.xpose.msra.mxu0 0.0
      %1046 = vmatprep.subr.mxu0 0.0
      %1047 = vmatpush2.xpose.msra.mxu0 0.0
      %1048 = vmatprep.subr.mxu0 0.0
      %1049 = vmatpush2.xpose.msra.mxu0 0.0
      %1050 = vmatprep.subr.mxu0 0.0
      %1051 = vmatpush2.xpose.msra.mxu0 0.0
      %1052 = vmatprep.subr.mxu0 0.0
      %1053 = vmatpush2.xpose.msra.mxu0 0.0
      %1054 = vmatprep.subr.mxu0 0.0
      %1055 = vmatpush2.xpose.msra.mxu0 0.0
      %1056 = vmatprep.mubr.f32.mxu0 0.0
      %1057 = vmatmul.mubr.f32.gmra.mxu0 %v983
      %v1058 = vpop.f32.mrf.mxu0
      %v1059 = vadd.f32 %v769, %v1058
      %v1060 = vpop.f32.mrf.mxu0
      %1061 = vmatprep.mubr.f32.mxu0 0.0
      %1062 = vmatmul.mubr.f32.gmra.mxu0 %v986
      %v1063 = vpop.f32.mrf.mxu0
      %v1064 = vadd.f32 %v770, %v1063
      %v1065 = vpop.f32.mrf.mxu0
      %1066 = vdwg.mxu0
      %1069 = vrot.lane.b32.xlu0 %v783, 96
      %v1070 = vpop.permute.xlu0 %1069
      %1071 = vrot.lane.b32.xlu0 %v784, 96
      %v1072 = vpop.permute.xlu0 %1071
      %v1074 = vsel %vm799, %v791, 0
      %v1077 = vsel %vm799, %v792, 0
      %v1079 = vsel %vm799, %v1070, 0
      %v1081 = vsel %vm799, %v1072, 0
      %1083 = vmatprep.subr.mxu0 0.0
      %1084 = vmatpush1.xpose.msra.mxu0 0.0
      %1085 = vmatprep.subr.mxu0 0.0
      %1086 = vmatpush1.xpose.msra.mxu0 0.0
      %1087 = vmatprep.subr.mxu0 0.0
      %1088 = vmatpush1.xpose.msra.mxu0 0.0
      %1089 = vmatprep.subr.mxu0 0.0
      %1090 = vmatpush1.xpose.msra.mxu0 0.0
      %1091 = vmatprep.subr.mxu0 0.0
      %1092 = vmatpush1.xpose.msra.mxu0 0.0
      %1093 = vmatprep.subr.mxu0 0.0
      %1094 = vmatpush1.xpose.msra.mxu0 0.0
      %1095 = vmatprep.subr.mxu0 0.0
      %1096 = vmatpush1.xpose.msra.mxu0 0.0
      %1097 = vmatprep.subr.mxu0 0.0
      %1098 = vmatpush1.xpose.msra.mxu0 0.0
      %1099 = vmatprep.subr.mxu0 0.0
      %1100 = vmatpush1.xpose.msra.mxu0 0.0
      %1101 = vmatprep.subr.mxu0 0.0
      %1102 = vmatpush1.xpose.msra.mxu0 0.0
      %1103 = vmatprep.subr.mxu0 0.0
      %1104 = vmatpush1.xpose.msra.mxu0 0.0
      %1105 = vmatprep.subr.mxu0 0.0
      %1106 = vmatpush1.xpose.msra.mxu0 0.0
      %1107 = vmatprep.subr.mxu0 0.0
      %1108 = vmatpush1.xpose.msra.mxu0 0.0
      %1109 = vmatprep.subr.mxu0 0.0
      %1110 = vmatpush1.xpose.msra.mxu0 0.0
      %1111 = vmatprep.subr.mxu0 0.0
      %1112 = vmatpush1.xpose.msra.mxu0 %v1081
      %1113 = vmatprep.subr.mxu0 0.0
      %1114 = vmatpush1.xpose.msra.mxu0 %v1079
      %1115 = vmatprep.subr.mxu0 0.0
      %1116 = vmatpush2.xpose.msra.mxu0 0.0
      %1117 = vmatprep.subr.mxu0 0.0
      %1118 = vmatpush2.xpose.msra.mxu0 0.0
      %1119 = vmatprep.subr.mxu0 0.0
      %1120 = vmatpush2.xpose.msra.mxu0 0.0
      %1121 = vmatprep.subr.mxu0 0.0
      %1122 = vmatpush2.xpose.msra.mxu0 0.0
      %1123 = vmatprep.subr.mxu0 0.0
      %1124 = vmatpush2.xpose.msra.mxu0 0.0
      %1125 = vmatprep.subr.mxu0 0.0
      %1126 = vmatpush2.xpose.msra.mxu0 0.0
      %1127 = vmatprep.subr.mxu0 0.0
      %1128 = vmatpush2.xpose.msra.mxu0 0.0
      %1129 = vmatprep.subr.mxu0 0.0
      %1130 = vmatpush2.xpose.msra.mxu0 0.0
      %1131 = vmatprep.subr.mxu0 0.0
      %1132 = vmatpush2.xpose.msra.mxu0 0.0
      %1133 = vmatprep.subr.mxu0 0.0
      %1134 = vmatpush2.xpose.msra.mxu0 0.0
      %1135 = vmatprep.subr.mxu0 0.0
      %1136 = vmatpush2.xpose.msra.mxu0 0.0
      %1137 = vmatprep.subr.mxu0 0.0
      %1138 = vmatpush2.xpose.msra.mxu0 0.0
      %1139 = vmatprep.subr.mxu0 0.0
      %1140 = vmatpush2.xpose.msra.mxu0 0.0
      %1141 = vmatprep.subr.mxu0 0.0
      %1142 = vmatpush2.xpose.msra.mxu0 0.0
      %1143 = vmatprep.subr.mxu0 0.0
      %1144 = vmatpush2.xpose.msra.mxu0 0.0
      %1145 = vmatprep.subr.mxu0 0.0
      %1146 = vmatpush2.xpose.msra.mxu0 0.0
      %1147 = vmatprep.mubr.f32.mxu0 0.0
      %1148 = vmatmul.mubr.f32.gmra.mxu0 %v1074
      %v1149 = vpop.f32.mrf.mxu0
      %v1150 = vadd.f32 %v769, %v1149
      %v1151 = vpop.f32.mrf.mxu0
      %1152 = vmatprep.mubr.f32.mxu0 0.0
      %1153 = vmatmul.mubr.f32.gmra.mxu0 %v1077
      %v1154 = vpop.f32.mrf.mxu0
      %v1155 = vadd.f32 %v770, %v1154
      %v1156 = vpop.f32.mrf.mxu0
      %1157 = vdwg.mxu0
      %vm1158 = vcmask 130048
      %v1159 = vsel %vm1158, %v877, -inf
      %1160 = vmax.xlane.f32.xlu0 %v1159
      %v1161 = vpop.xlane.xlu0 %1160
      %v1162 = vsel %vm1158, %v882, -inf
      %1163 = vmax.xlane.f32.xlu0 %v1162
      %v1164 = vpop.xlane.xlu0 %1163
      %v1165 = vsel %vm1158, %v968, -inf
      %1166 = vmax.xlane.f32.xlu0 %v1165
      %v1167 = vpop.xlane.xlu0 %1166
      %v1168 = vsel %vm1158, %v973, -inf
      %1169 = vmax.xlane.f32.xlu0 %v1168
      %v1170 = vpop.xlane.xlu0 %1169
      %v1171 = vsel %vm1158, %v1059, -inf
      %1172 = vmax.xlane.f32.xlu0 %v1171
      %v1173 = vpop.xlane.xlu0 %1172
      %v1174 = vsel %vm1158, %v1064, -inf
      %1175 = vmax.xlane.f32.xlu0 %v1174
      %v1176 = vpop.xlane.xlu0 %1175
      %v1177 = vsel %vm1158, %v1150, -inf
      %1178 = vmax.xlane.f32.xlu0 %v1177
      %v1179 = vpop.xlane.xlu0 %1178
      %v1180 = vsel %vm1158, %v1155, -inf
      %1181 = vmax.xlane.f32.xlu0 %v1180
      %v1182 = vpop.xlane.xlu0 %1181
      %v1183 = vsub.f32 %v877, %v1161
      %v1184 = vsub.f32 %v882, %v1164
      %v1185 = vsub.f32 %v968, %v1167
      %v1186 = vsub.f32 %v973, %v1170
      %v1187 = vsub.f32 %v1059, %v1173
      %v1188 = vsub.f32 %v1064, %v1176
      %v1189 = vsub.f32 %v1150, %v1179
      %v1190 = vsub.f32 %v1155, %v1182
      %v1191 = vmul.f32 %v1183, 1.442695
      %v1192 = vpow.pop %v1191
      %v1193 = vmul.f32 %v1184, 1.442695
      %v1194 = vpow.pop %v1193
      %v1195 = vmul.f32 %v1185, 1.442695
      %v1196 = vpow.pop %v1195
      %v1197 = vmul.f32 %v1186, 1.442695
      %v1198 = vpow.pop %v1197
      %v1199 = vmul.f32 %v1187, 1.442695
      %v1200 = vpow.pop %v1199
      %v1201 = vmul.f32 %v1188, 1.442695
      %v1202 = vpow.pop %v1201
      %v1203 = vmul.f32 %v1189, 1.442695
      %v1204 = vpow.pop %v1203
      %v1205 = vmul.f32 %v1190, 1.442695
      %v1206 = vpow.pop %v1205
      %v1207 = vsel %vm1158, %v1192, 0.0
      %1208 = vadd.xlane.f32.xlu0 %v1207
      %v1209 = vpop.xlane.xlu0 %1208
      %v1210 = vsel %vm1158, %v1194, 0.0
      %1211 = vadd.xlane.f32.xlu0 %v1210
      %v1212 = vpop.xlane.xlu0 %1211
      %v1213 = vsel %vm1158, %v1196, 0.0
      %1214 = vadd.xlane.f32.xlu0 %v1213
      %v1215 = vpop.xlane.xlu0 %1214
      %v1216 = vsel %vm1158, %v1198, 0.0
      %1217 = vadd.xlane.f32.xlu0 %v1216
      %v1218 = vpop.xlane.xlu0 %1217
      %v1219 = vsel %vm1158, %v1200, 0.0
      %1220 = vadd.xlane.f32.xlu0 %v1219
      %v1221 = vpop.xlane.xlu0 %1220
      %v1222 = vsel %vm1158, %v1202, 0.0
      %1223 = vadd.xlane.f32.xlu0 %v1222
      %v1224 = vpop.xlane.xlu0 %1223
      %v1225 = vsel %vm1158, %v1204, 0.0
      %1226 = vadd.xlane.f32.xlu0 %v1225
      %v1227 = vpop.xlane.xlu0 %1226
      %v1228 = vsel %vm1158, %v1206, 0.0
      %1229 = vadd.xlane.f32.xlu0 %v1228
      %v1230 = vpop.xlane.xlu0 %1229
      %v1231 = vrcp.pop %v1209
      %v1232 = vrcp.pop %v1212
      %v1233 = vrcp.pop %v1215
      %v1234 = vrcp.pop %v1218
      %v1235 = vrcp.pop %v1221
      %v1236 = vrcp.pop %v1224
      %v1237 = vrcp.pop %v1227
      %v1238 = vrcp.pop %v1230
      %v1239 = vmul.f32 %v1192, %v1231
      %v1240 = vmul.f32 %v1194, %v1232
      %v1241 = vmul.f32 %v1196, %v1233
      %v1242 = vmul.f32 %v1198, %v1234
      %v1243 = vmul.f32 %v1200, %v1235
      %v1244 = vmul.f32 %v1202, %v1236
      %v1245 = vmul.f32 %v1204, %v1237
      %v1246 = vmul.f32 %v1206, %v1238
      %1247 = vrot.lane.b32.xlu0 %v777, 64
      %v1248 = vpop.permute.xlu0 %1247
      %1249 = vrot.lane.b32.xlu0 %v778, 64
      %v1250 = vpop.permute.xlu0 %1249
      %v1254 = vsel %vm1158, %v1239, 0
      %v1257 = vsel %vm1158, %v1240, 0
      %1259 = vmatprep.subr.mxu0 0.0
      %1260 = vmatpush1.msra.mxu0 0.0
      %1261 = vmatprep.subr.mxu0 0.0
      %1262 = vmatpush1.msra.mxu0 0.0
      %1263 = vmatprep.subr.mxu0 0.0
      %1264 = vmatpush1.msra.mxu0 0.0
      %1265 = vmatprep.subr.mxu0 0.0
      %1266 = vmatpush1.msra.mxu0 0.0
      %1267 = vmatprep.subr.mxu0 0.0
      %1268 = vmatpush1.msra.mxu0 0.0
      %1269 = vmatprep.subr.mxu0 0.0
      %1270 = vmatpush1.msra.mxu0 0.0
      %1271 = vmatprep.subr.mxu0 0.0
      %1272 = vmatpush1.msra.mxu0 0.0
      %1273 = vmatprep.subr.mxu0 0.0
      %1274 = vmatpush1.msra.mxu0 0.0
      %1275 = vmatprep.subr.mxu0 0.0
      %1276 = vmatpush1.msra.mxu0 0.0
      %1277 = vmatprep.subr.mxu0 0.0
      %1278 = vmatpush1.msra.mxu0 0.0
      %1279 = vmatprep.subr.mxu0 0.0
      %1280 = vmatpush1.msra.mxu0 0.0
      %1281 = vmatprep.subr.mxu0 0.0
      %1282 = vmatpush1.msra.mxu0 0.0
      %1283 = vmatprep.subr.mxu0 0.0
      %1284 = vmatpush1.msra.mxu0 0.0
      %1285 = vmatprep.subr.mxu0 0.0
      %1286 = vmatpush1.msra.mxu0 0.0
      %1287 = vmatprep.subr.mxu0 0.0
      %1288 = vmatpush1.msra.mxu0 %v1250
      %1289 = vmatprep.subr.mxu0 0.0
      %1290 = vmatpush1.msra.mxu0 %v1248
      %1291 = vmatprep.subr.mxu0 0.0
      %1292 = vmatpush2.msra.mxu0 0.0
      %1293 = vmatprep.subr.mxu0 0.0
      %1294 = vmatpush2.msra.mxu0 0.0
      %1295 = vmatprep.subr.mxu0 0.0
      %1296 = vmatpush2.msra.mxu0 0.0
      %1297 = vmatprep.subr.mxu0 0.0
      %1298 = vmatpush2.msra.mxu0 0.0
      %1299 = vmatprep.subr.mxu0 0.0
      %1300 = vmatpush2.msra.mxu0 0.0
      %1301 = vmatprep.subr.mxu0 0.0
      %1302 = vmatpush2.msra.mxu0 0.0
      %1303 = vmatprep.subr.mxu0 0.0
      %1304 = vmatpush2.msra.mxu0 0.0
      %1305 = vmatprep.subr.mxu0 0.0
      %1306 = vmatpush2.msra.mxu0 0.0
      %1307 = vmatprep.subr.mxu0 0.0
      %1308 = vmatpush2.msra.mxu0 0.0
      %1309 = vmatprep.subr.mxu0 0.0
      %1310 = vmatpush2.msra.mxu0 0.0
      %1311 = vmatprep.subr.mxu0 0.0
      %1312 = vmatpush2.msra.mxu0 0.0
      %1313 = vmatprep.subr.mxu0 0.0
      %1314 = vmatpush2.msra.mxu0 0.0
      %1315 = vmatprep.subr.mxu0 0.0
      %1316 = vmatpush2.msra.mxu0 0.0
      %1317 = vmatprep.subr.mxu0 0.0
      %1318 = vmatpush2.msra.mxu0 0.0
      %1319 = vmatprep.subr.mxu0 0.0
      %1320 = vmatpush2.msra.mxu0 0.0
      %1321 = vmatprep.subr.mxu0 0.0
      %1322 = vmatpush2.msra.mxu0 0.0
      %1323 = vmatprep.mubr.f32.mxu0 0.0
      %1324 = vmatmul.mubr.f32.gmra.mxu0 %v1254
      %v1325 = vpop.f32.mrf.mxu0
      %v1326 = vadd.f32 0.0, %v1325
      %v1327 = vpop.f32.mrf.mxu0
      %1328 = vmatprep.mubr.f32.mxu0 0.0
      %1329 = vmatmul.mubr.f32.gmra.mxu0 %v1257
      %v1330 = vpop.f32.mrf.mxu0
      %v1331 = vadd.f32 0.0, %v1330
      %v1332 = vpop.f32.mrf.mxu0
      %1333 = vdwg.mxu0
      %1334 = vrot.lane.b32.xlu0 %v779, 64
      %v1335 = vpop.permute.xlu0 %1334
      %1336 = vrot.lane.b32.xlu0 %v780, 64
      %v1337 = vpop.permute.xlu0 %1336
      %v1341 = vsel %vm1158, %v1241, 0
      %v1344 = vsel %vm1158, %v1242, 0
      %1346 = vmatprep.subr.mxu0 0.0
      %1347 = vmatpush1.msra.mxu0 0.0
      %1348 = vmatprep.subr.mxu0 0.0
      %1349 = vmatpush1.msra.mxu0 0.0
      %1350 = vmatprep.subr.mxu0 0.0
      %1351 = vmatpush1.msra.mxu0 0.0
      %1352 = vmatprep.subr.mxu0 0.0
      %1353 = vmatpush1.msra.mxu0 0.0
      %1354 = vmatprep.subr.mxu0 0.0
      %1355 = vmatpush1.msra.mxu0 0.0
      %1356 = vmatprep.subr.mxu0 0.0
      %1357 = vmatpush1.msra.mxu0 0.0
      %1358 = vmatprep.subr.mxu0 0.0
      %1359 = vmatpush1.msra.mxu0 0.0
      %1360 = vmatprep.subr.mxu0 0.0
      %1361 = vmatpush1.msra.mxu0 0.0
      %1362 = vmatprep.subr.mxu0 0.0
      %1363 = vmatpush1.msra.mxu0 0.0
      %1364 = vmatprep.subr.mxu0 0.0
      %1365 = vmatpush1.msra.mxu0 0.0
      %1366 = vmatprep.subr.mxu0 0.0
      %1367 = vmatpush1.msra.mxu0 0.0
      %1368 = vmatprep.subr.mxu0 0.0
      %1369 = vmatpush1.msra.mxu0 0.0
      %1370 = vmatprep.subr.mxu0 0.0
      %1371 = vmatpush1.msra.mxu0 0.0
      %1372 = vmatprep.subr.mxu0 0.0
      %1373 = vmatpush1.msra.mxu0 0.0
      %1374 = vmatprep.subr.mxu0 0.0
      %1375 = vmatpush1.msra.mxu0 %v1337
      %1376 = vmatprep.subr.mxu0 0.0
      %1377 = vmatpush1.msra.mxu0 %v1335
      %1378 = vmatprep.subr.mxu0 0.0
      %1379 = vmatpush2.msra.mxu0 0.0
      %1380 = vmatprep.subr.mxu0 0.0
      %1381 = vmatpush2.msra.mxu0 0.0
      %1382 = vmatprep.subr.mxu0 0.0
      %1383 = vmatpush2.msra.mxu0 0.0
      %1384 = vmatprep.subr.mxu0 0.0
      %1385 = vmatpush2.msra.mxu0 0.0
      %1386 = vmatprep.subr.mxu0 0.0
      %1387 = vmatpush2.msra.mxu0 0.0
      %1388 = vmatprep.subr.mxu0 0.0
      %1389 = vmatpush2.msra.mxu0 0.0
      %1390 = vmatprep.subr.mxu0 0.0
      %1391 = vmatpush2.msra.mxu0 0.0
      %1392 = vmatprep.subr.mxu0 0.0
      %1393 = vmatpush2.msra.mxu0 0.0
      %1394 = vmatprep.subr.mxu0 0.0
      %1395 = vmatpush2.msra.mxu0 0.0
      %1396 = vmatprep.subr.mxu0 0.0
      %1397 = vmatpush2.msra.mxu0 0.0
      %1398 = vmatprep.subr.mxu0 0.0
      %1399 = vmatpush2.msra.mxu0 0.0
      %1400 = vmatprep.subr.mxu0 0.0
      %1401 = vmatpush2.msra.mxu0 0.0
      %1402 = vmatprep.subr.mxu0 0.0
      %1403 = vmatpush2.msra.mxu0 0.0
      %1404 = vmatprep.subr.mxu0 0.0
      %1405 = vmatpush2.msra.mxu0 0.0
      %1406 = vmatprep.subr.mxu0 0.0
      %1407 = vmatpush2.msra.mxu0 0.0
      %1408 = vmatprep.subr.mxu0 0.0
      %1409 = vmatpush2.msra.mxu0 0.0
      %1410 = vmatprep.mubr.f32.mxu0 0.0
      %1411 = vmatmul.mubr.f32.gmra.mxu0 %v1341
      %v1412 = vpop.f32.mrf.mxu0
      %v1413 = vadd.f32 0.0, %v1412
      %v1414 = vpop.f32.mrf.mxu0
      %1415 = vmatprep.mubr.f32.mxu0 0.0
      %1416 = vmatmul.mubr.f32.gmra.mxu0 %v1344
      %v1417 = vpop.f32.mrf.mxu0
      %v1418 = vadd.f32 0.0, %v1417
      %v1419 = vpop.f32.mrf.mxu0
      %1420 = vdwg.mxu0
      %1421 = vrot.lane.b32.xlu0 %v781, 64
      %v1422 = vpop.permute.xlu0 %1421
      %1423 = vrot.lane.b32.xlu0 %v782, 64
      %v1424 = vpop.permute.xlu0 %1423
      %v1428 = vsel %vm1158, %v1243, 0
      %v1431 = vsel %vm1158, %v1244, 0
      %1433 = vmatprep.subr.mxu0 0.0
      %1434 = vmatpush1.msra.mxu0 0.0
      %1435 = vmatprep.subr.mxu0 0.0
      %1436 = vmatpush1.msra.mxu0 0.0
      %1437 = vmatprep.subr.mxu0 0.0
      %1438 = vmatpush1.msra.mxu0 0.0
      %1439 = vmatprep.subr.mxu0 0.0
      %1440 = vmatpush1.msra.mxu0 0.0
      %1441 = vmatprep.subr.mxu0 0.0
      %1442 = vmatpush1.msra.mxu0 0.0
      %1443 = vmatprep.subr.mxu0 0.0
      %1444 = vmatpush1.msra.mxu0 0.0
      %1445 = vmatprep.subr.mxu0 0.0
      %1446 = vmatpush1.msra.mxu0 0.0
      %1447 = vmatprep.subr.mxu0 0.0
      %1448 = vmatpush1.msra.mxu0 0.0
      %1449 = vmatprep.subr.mxu0 0.0
      %1450 = vmatpush1.msra.mxu0 0.0
      %1451 = vmatprep.subr.mxu0 0.0
      %1452 = vmatpush1.msra.mxu0 0.0
      %1453 = vmatprep.subr.mxu0 0.0
      %1454 = vmatpush1.msra.mxu0 0.0
      %1455 = vmatprep.subr.mxu0 0.0
      %1456 = vmatpush1.msra.mxu0 0.0
      %1457 = vmatprep.subr.mxu0 0.0
      %1458 = vmatpush1.msra.mxu0 0.0
      %1459 = vmatprep.subr.mxu0 0.0
      %1460 = vmatpush1.msra.mxu0 0.0
      %1461 = vmatprep.subr.mxu0 0.0
      %1462 = vmatpush1.msra.mxu0 %v1424
      %1463 = vmatprep.subr.mxu0 0.0
      %1464 = vmatpush1.msra.mxu0 %v1422
      %1465 = vmatprep.subr.mxu0 0.0
      %1466 = vmatpush2.msra.mxu0 0.0
      %1467 = vmatprep.subr.mxu0 0.0
      %1468 = vmatpush2.msra.mxu0 0.0
      %1469 = vmatprep.subr.mxu0 0.0
      %1470 = vmatpush2.msra.mxu0 0.0
      %1471 = vmatprep.subr.mxu0 0.0
      %1472 = vmatpush2.msra.mxu0 0.0
      %1473 = vmatprep.subr.mxu0 0.0
      %1474 = vmatpush2.msra.mxu0 0.0
      %1475 = vmatprep.subr.mxu0 0.0
      %1476 = vmatpush2.msra.mxu0 0.0
      %1477 = vmatprep.subr.mxu0 0.0
      %1478 = vmatpush2.msra.mxu0 0.0
      %1479 = vmatprep.subr.mxu0 0.0
      %1480 = vmatpush2.msra.mxu0 0.0
      %1481 = vmatprep.subr.mxu0 0.0
      %1482 = vmatpush2.msra.mxu0 0.0
      %1483 = vmatprep.subr.mxu0 0.0
      %1484 = vmatpush2.msra.mxu0 0.0
      %1485 = vmatprep.subr.mxu0 0.0
      %1486 = vmatpush2.msra.mxu0 0.0
      %1487 = vmatprep.subr.mxu0 0.0
      %1488 = vmatpush2.msra.mxu0 0.0
      %1489 = vmatprep.subr.mxu0 0.0
      %1490 = vmatpush2.msra.mxu0 0.0
      %1491 = vmatprep.subr.mxu0 0.0
      %1492 = vmatpush2.msra.mxu0 0.0
      %1493 = vmatprep.subr.mxu0 0.0
      %1494 = vmatpush2.msra.mxu0 0.0
      %1495 = vmatprep.subr.mxu0 0.0
      %1496 = vmatpush2.msra.mxu0 0.0
      %1497 = vmatprep.mubr.f32.mxu0 0.0
      %1498 = vmatmul.mubr.f32.gmra.mxu0 %v1428
      %v1499 = vpop.f32.mrf.mxu0
      %v1500 = vadd.f32 0.0, %v1499
      %v1501 = vpop.f32.mrf.mxu0
      %1502 = vmatprep.mubr.f32.mxu0 0.0
      %1503 = vmatmul.mubr.f32.gmra.mxu0 %v1431
      %v1504 = vpop.f32.mrf.mxu0
      %v1505 = vadd.f32 0.0, %v1504
      %v1506 = vpop.f32.mrf.mxu0
      %1507 = vdwg.mxu0
      %1508 = vrot.lane.b32.xlu0 %v783, 64
      %v1509 = vpop.permute.xlu0 %1508
      %1510 = vrot.lane.b32.xlu0 %v784, 64
      %v1511 = vpop.permute.xlu0 %1510
      %v1515 = vsel %vm1158, %v1245, 0
      %v1518 = vsel %vm1158, %v1246, 0
      %1520 = vmatprep.subr.mxu0 0.0
      %1521 = vmatpush1.msra.mxu0 0.0
      %1522 = vmatprep.subr.mxu0 0.0
      %1523 = vmatpush1.msra.mxu0 0.0
      %1524 = vmatprep.subr.mxu0 0.0
      %1525 = vmatpush1.msra.mxu0 0.0
      %1526 = vmatprep.subr.mxu0 0.0
      %1527 = vmatpush1.msra.mxu0 0.0
      %1528 = vmatprep.subr.mxu0 0.0
      %1529 = vmatpush1.msra.mxu0 0.0
      %1530 = vmatprep.subr.mxu0 0.0
      %1531 = vmatpush1.msra.mxu0 0.0
      %1532 = vmatprep.subr.mxu0 0.0
      %1533 = vmatpush1.msra.mxu0 0.0
      %1534 = vmatprep.subr.mxu0 0.0
      %1535 = vmatpush1.msra.mxu0 0.0
      %1536 = vmatprep.subr.mxu0 0.0
      %1537 = vmatpush1.msra.mxu0 0.0
      %1538 = vmatprep.subr.mxu0 0.0
      %1539 = vmatpush1.msra.mxu0 0.0
      %1540 = vmatprep.subr.mxu0 0.0
      %1541 = vmatpush1.msra.mxu0 0.0
      %1542 = vmatprep.subr.mxu0 0.0
      %1543 = vmatpush1.msra.mxu0 0.0
      %1544 = vmatprep.subr.mxu0 0.0
      %1545 = vmatpush1.msra.mxu0 0.0
      %1546 = vmatprep.subr.mxu0 0.0
      %1547 = vmatpush1.msra.mxu0 0.0
      %1548 = vmatprep.subr.mxu0 0.0
      %1549 = vmatpush1.msra.mxu0 %v1511
      %1550 = vmatprep.subr.mxu0 0.0
      %1551 = vmatpush1.msra.mxu0 %v1509
      %1552 = vmatprep.subr.mxu0 0.0
      %1553 = vmatpush2.msra.mxu0 0.0
      %1554 = vmatprep.subr.mxu0 0.0
      %1555 = vmatpush2.msra.mxu0 0.0
      %1556 = vmatprep.subr.mxu0 0.0
      %1557 = vmatpush2.msra.mxu0 0.0
      %1558 = vmatprep.subr.mxu0 0.0
      %1559 = vmatpush2.msra.mxu0 0.0
      %1560 = vmatprep.subr.mxu0 0.0
      %1561 = vmatpush2.msra.mxu0 0.0
      %1562 = vmatprep.subr.mxu0 0.0
      %1563 = vmatpush2.msra.mxu0 0.0
      %1564 = vmatprep.subr.mxu0 0.0
      %1565 = vmatpush2.msra.mxu0 0.0
      %1566 = vmatprep.subr.mxu0 0.0
      %1567 = vmatpush2.msra.mxu0 0.0
      %1568 = vmatprep.subr.mxu0 0.0
      %1569 = vmatpush2.msra.mxu0 0.0
      %1570 = vmatprep.subr.mxu0 0.0
      %1571 = vmatpush2.msra.mxu0 0.0
      %1572 = vmatprep.subr.mxu0 0.0
      %1573 = vmatpush2.msra.mxu0 0.0
      %1574 = vmatprep.subr.mxu0 0.0
      %1575 = vmatpush2.msra.mxu0 0.0
      %1576 = vmatprep.subr.mxu0 0.0
      %1577 = vmatpush2.msra.mxu0 0.0
      %1578 = vmatprep.subr.mxu0 0.0
      %1579 = vmatpush2.msra.mxu0 0.0
      %1580 = vmatprep.subr.mxu0 0.0
      %1581 = vmatpush2.msra.mxu0 0.0
      %1582 = vmatprep.subr.mxu0 0.0
      %1583 = vmatpush2.msra.mxu0 0.0
      %1584 = vmatprep.mubr.f32.mxu0 0.0
      %1585 = vmatmul.mubr.f32.gmra.mxu0 %v1515
      %v1586 = vpop.f32.mrf.mxu0
      %v1587 = vadd.f32 0.0, %v1586
      %v1588 = vpop.f32.mrf.mxu0
      %1589 = vmatprep.mubr.f32.mxu0 0.0
      %1590 = vmatmul.mubr.f32.gmra.mxu0 %v1518
      %v1591 = vpop.f32.mrf.mxu0
      %v1592 = vadd.f32 0.0, %v1591
      %v1593 = vpop.f32.mrf.mxu0
      %1594 = vdwg.mxu0
      %1595 = vst.msk [vmem:[#allocation3] sm:$0xff] %vm799, %v1326
      %1596 = vst.msk [vmem:[#allocation3 + $0x8] sm:$0xff] %vm799, %v1331
      %1597 = vst.msk [vmem:[#allocation3 + $0x10] sm:$0xff] %vm799, %v1413
      %1598 = vst.msk [vmem:[#allocation3 + $0x18] sm:$0xff] %vm799, %v1418
      %1599 = vst.msk [vmem:[#allocation3 + $0x20] sm:$0xff] %vm799, %v1500
      %1600 = vst.msk [vmem:[#allocation3 + $0x28] sm:$0xff] %vm799, %v1505
      %1601 = vst.msk [vmem:[#allocation3 + $0x30] sm:$0xff] %vm799, %v1587
      %1602 = vst.msk [vmem:[#allocation3 + $0x38] sm:$0xff] %vm799, %v1592
      %v1603 = vld [vmem:[#allocation2] sm:$0xff]
      %v1604 = vld [vmem:[#allocation2 + $0x8] sm:$0xff]
      %v1605 = vld [vmem:[#allocation2 + $0x10] sm:$0xff]
      %v1606 = vld [vmem:[#allocation2 + $0x18] sm:$0xff]
      %v1607 = vld [vmem:[#allocation2 + $0x20] sm:$0xff]
      %v1608 = vld [vmem:[#allocation2 + $0x28] sm:$0xff]
      %v1609 = vld [vmem:[#allocation2 + $0x30] sm:$0xff]
      %v1610 = vld [vmem:[#allocation2 + $0x38] sm:$0xff]
      %v1611 = vmul.f32 %v1603, 0.35355338
      %v1612 = vmul.f32 %v1604, 0.35355338
      %v1613 = vmul.f32 %v1605, 0.35355338
      %v1614 = vmul.f32 %v1606, 0.35355338
      %v1615 = vmul.f32 %v1607, 0.35355338
      %v1616 = vmul.f32 %v1608, 0.35355338
      %v1617 = vmul.f32 %v1609, 0.35355338
      %v1618 = vmul.f32 %v1610, 0.35355338
      %1621 = vrot.lane.b32.xlu0 %v1611, 120
      %v1622 = vpop.permute.xlu0 %1621
      %1623 = vrot.lane.b32.xlu0 %v1612, 120
      %v1624 = vpop.permute.xlu0 %1623
      %1627 = vrot.lane.b32.xlu0 %v1603, 88
      %v1628 = vpop.permute.xlu0 %1627
      %1629 = vrot.lane.b32.xlu0 %v1604, 88
      %v1630 = vpop.permute.xlu0 %1629
      %v1631 = vsel %vm799, %v1622, 0
      %v1633 = vsel %vm799, %v1624, 0
      %v1635 = vsel %vm799, %v1628, 0
      %v1637 = vsel %vm799, %v1630, 0
      %1639 = vmatprep.subr.mxu0 0.0
      %1640 = vmatpush1.xpose.msra.mxu0 0.0
      %1641 = vmatprep.subr.mxu0 0.0
      %1642 = vmatpush1.xpose.msra.mxu0 0.0
      %1643 = vmatprep.subr.mxu0 0.0
      %1644 = vmatpush1.xpose.msra.mxu0 0.0
      %1645 = vmatprep.subr.mxu0 0.0
      %1646 = vmatpush1.xpose.msra.mxu0 0.0
      %1647 = vmatprep.subr.mxu0 0.0
      %1648 = vmatpush1.xpose.msra.mxu0 0.0
      %1649 = vmatprep.subr.mxu0 0.0
      %1650 = vmatpush1.xpose.msra.mxu0 0.0
      %1651 = vmatprep.subr.mxu0 0.0
      %1652 = vmatpush1.xpose.msra.mxu0 0.0
      %1653 = vmatprep.subr.mxu0 0.0
      %1654 = vmatpush1.xpose.msra.mxu0 0.0
      %1655 = vmatprep.subr.mxu0 0.0
      %1656 = vmatpush1.xpose.msra.mxu0 0.0
      %1657 = vmatprep.subr.mxu0 0.0
      %1658 = vmatpush1.xpose.msra.mxu0 0.0
      %1659 = vmatprep.subr.mxu0 0.0
      %1660 = vmatpush1.xpose.msra.mxu0 0.0
      %1661 = vmatprep.subr.mxu0 0.0
      %1662 = vmatpush1.xpose.msra.mxu0 0.0
      %1663 = vmatprep.subr.mxu0 0.0
      %1664 = vmatpush1.xpose.msra.mxu0 0.0
      %1665 = vmatprep.subr.mxu0 0.0
      %1666 = vmatpush1.xpose.msra.mxu0 0.0
      %1667 = vmatprep.subr.mxu0 0.0
      %1668 = vmatpush1.xpose.msra.mxu0 %v1637
      %1669 = vmatprep.subr.mxu0 0.0
      %1670 = vmatpush1.xpose.msra.mxu0 %v1635
      %1671 = vmatprep.subr.mxu0 0.0
      %1672 = vmatpush2.xpose.msra.mxu0 0.0
      %1673 = vmatprep.subr.mxu0 0.0
      %1674 = vmatpush2.xpose.msra.mxu0 0.0
      %1675 = vmatprep.subr.mxu0 0.0
      %1676 = vmatpush2.xpose.msra.mxu0 0.0
      %1677 = vmatprep.subr.mxu0 0.0
      %1678 = vmatpush2.xpose.msra.mxu0 0.0
      %1679 = vmatprep.subr.mxu0 0.0
      %1680 = vmatpush2.xpose.msra.mxu0 0.0
      %1681 = vmatprep.subr.mxu0 0.0
      %1682 = vmatpush2.xpose.msra.mxu0 0.0
      %1683 = vmatprep.subr.mxu0 0.0
      %1684 = vmatpush2.xpose.msra.mxu0 0.0
      %1685 = vmatprep.subr.mxu0 0.0
      %1686 = vmatpush2.xpose.msra.mxu0 0.0
      %1687 = vmatprep.subr.mxu0 0.0
      %1688 = vmatpush2.xpose.msra.mxu0 0.0
      %1689 = vmatprep.subr.mxu0 0.0
      %1690 = vmatpush2.xpose.msra.mxu0 0.0
      %1691 = vmatprep.subr.mxu0 0.0
      %1692 = vmatpush2.xpose.msra.mxu0 0.0
      %1693 = vmatprep.subr.mxu0 0.0
      %1694 = vmatpush2.xpose.msra.mxu0 0.0
      %1695 = vmatprep.subr.mxu0 0.0
      %1696 = vmatpush2.xpose.msra.mxu0 0.0
      %1697 = vmatprep.subr.mxu0 0.0
      %1698 = vmatpush2.xpose.msra.mxu0 0.0
      %1699 = vmatprep.subr.mxu0 0.0
      %1700 = vmatpush2.xpose.msra.mxu0 0.0
      %1701 = vmatprep.subr.mxu0 0.0
      %1702 = vmatpush2.xpose.msra.mxu0 0.0
      %1703 = vmatprep.mubr.f32.mxu0 0.0
      %1704 = vmatmul.mubr.f32.gmra.mxu0 %v1631
      %v1705 = vpop.f32.mrf.mxu0
      %v1706 = vadd.f32 %v771, %v1705
      %v1707 = vpop.f32.mrf.mxu0
      %1708 = vmatprep.mubr.f32.mxu0 0.0
      %1709 = vmatmul.mubr.f32.gmra.mxu0 %v1633
      %v1710 = vpop.f32.mrf.mxu0
      %v1711 = vadd.f32 %v772, %v1710
      %v1712 = vpop.f32.mrf.mxu0
      %1713 = vdwg.mxu0
      %1716 = vrot.lane.b32.xlu0 %v1613, 120
      %v1717 = vpop.permute.xlu0 %1716
      %1718 = vrot.lane.b32.xlu0 %v1614, 120
      %v1719 = vpop.permute.xlu0 %1718
      %1722 = vrot.lane.b32.xlu0 %v1605, 88
      %v1723 = vpop.permute.xlu0 %1722
      %1724 = vrot.lane.b32.xlu0 %v1606, 88
      %v1725 = vpop.permute.xlu0 %1724
      %v1726 = vsel %vm799, %v1717, 0
      %v1728 = vsel %vm799, %v1719, 0
      %v1730 = vsel %vm799, %v1723, 0
      %v1732 = vsel %vm799, %v1725, 0
      %1734 = vmatprep.subr.mxu0 0.0
      %1735 = vmatpush1.xpose.msra.mxu0 0.0
      %1736 = vmatprep.subr.mxu0 0.0
      %1737 = vmatpush1.xpose.msra.mxu0 0.0
      %1738 = vmatprep.subr.mxu0 0.0
      %1739 = vmatpush1.xpose.msra.mxu0 0.0
      %1740 = vmatprep.subr.mxu0 0.0
      %1741 = vmatpush1.xpose.msra.mxu0 0.0
      %1742 = vmatprep.subr.mxu0 0.0
      %1743 = vmatpush1.xpose.msra.mxu0 0.0
      %1744 = vmatprep.subr.mxu0 0.0
      %1745 = vmatpush1.xpose.msra.mxu0 0.0
      %1746 = vmatprep.subr.mxu0 0.0
      %1747 = vmatpush1.xpose.msra.mxu0 0.0
      %1748 = vmatprep.subr.mxu0 0.0
      %1749 = vmatpush1.xpose.msra.mxu0 0.0
      %1750 = vmatprep.subr.mxu0 0.0
      %1751 = vmatpush1.xpose.msra.mxu0 0.0
      %1752 = vmatprep.subr.mxu0 0.0
      %1753 = vmatpush1.xpose.msra.mxu0 0.0
      %1754 = vmatprep.subr.mxu0 0.0
      %1755 = vmatpush1.xpose.msra.mxu0 0.0
      %1756 = vmatprep.subr.mxu0 0.0
      %1757 = vmatpush1.xpose.msra.mxu0 0.0
      %1758 = vmatprep.subr.mxu0 0.0
      %1759 = vmatpush1.xpose.msra.mxu0 0.0
      %1760 = vmatprep.subr.mxu0 0.0
      %1761 = vmatpush1.xpose.msra.mxu0 0.0
      %1762 = vmatprep.subr.mxu0 0.0
      %1763 = vmatpush1.xpose.msra.mxu0 %v1732
      %1764 = vmatprep.subr.mxu0 0.0
      %1765 = vmatpush1.xpose.msra.mxu0 %v1730
      %1766 = vmatprep.subr.mxu0 0.0
      %1767 = vmatpush2.xpose.msra.mxu0 0.0
      %1768 = vmatprep.subr.mxu0 0.0
      %1769 = vmatpush2.xpose.msra.mxu0 0.0
      %1770 = vmatprep.subr.mxu0 0.0
      %1771 = vmatpush2.xpose.msra.mxu0 0.0
      %1772 = vmatprep.subr.mxu0 0.0
      %1773 = vmatpush2.xpose.msra.mxu0 0.0
      %1774 = vmatprep.subr.mxu0 0.0
      %1775 = vmatpush2.xpose.msra.mxu0 0.0
      %1776 = vmatprep.subr.mxu0 0.0
      %1777 = vmatpush2.xpose.msra.mxu0 0.0
      %1778 = vmatprep.subr.mxu0 0.0
      %1779 = vmatpush2.xpose.msra.mxu0 0.0
      %1780 = vmatprep.subr.mxu0 0.0
      %1781 = vmatpush2.xpose.msra.mxu0 0.0
      %1782 = vmatprep.subr.mxu0 0.0
      %1783 = vmatpush2.xpose.msra.mxu0 0.0
      %1784 = vmatprep.subr.mxu0 0.0
      %1785 = vmatpush2.xpose.msra.mxu0 0.0
      %1786 = vmatprep.subr.mxu0 0.0
      %1787 = vmatpush2.xpose.msra.mxu0 0.0
      %1788 = vmatprep.subr.mxu0 0.0
      %1789 = vmatpush2.xpose.msra.mxu0 0.0
      %1790 = vmatprep.subr.mxu0 0.0
      %1791 = vmatpush2.xpose.msra.mxu0 0.0
      %1792 = vmatprep.subr.mxu0 0.0
      %1793 = vmatpush2.xpose.msra.mxu0 0.0
      %1794 = vmatprep.subr.mxu0 0.0
      %1795 = vmatpush2.xpose.msra.mxu0 0.0
      %1796 = vmatprep.subr.mxu0 0.0
      %1797 = vmatpush2.xpose.msra.mxu0 0.0
      %1798 = vmatprep.mubr.f32.mxu0 0.0
      %1799 = vmatmul.mubr.f32.gmra.mxu0 %v1726
      %v1800 = vpop.f32.mrf.mxu0
      %v1801 = vadd.f32 %v771, %v1800
      %v1802 = vpop.f32.mrf.mxu0
      %1803 = vmatprep.mubr.f32.mxu0 0.0
      %1804 = vmatmul.mubr.f32.gmra.mxu0 %v1728
      %v1805 = vpop.f32.mrf.mxu0
      %v1806 = vadd.f32 %v772, %v1805
      %v1807 = vpop.f32.mrf.mxu0
      %1808 = vdwg.mxu0
      %1811 = vrot.lane.b32.xlu0 %v1615, 120
      %v1812 = vpop.permute.xlu0 %1811
      %1813 = vrot.lane.b32.xlu0 %v1616, 120
      %v1814 = vpop.permute.xlu0 %1813
      %1817 = vrot.lane.b32.xlu0 %v1607, 88
      %v1818 = vpop.permute.xlu0 %1817
      %1819 = vrot.lane.b32.xlu0 %v1608, 88
      %v1820 = vpop.permute.xlu0 %1819
      %v1821 = vsel %vm799, %v1812, 0
      %v1823 = vsel %vm799, %v1814, 0
      %v1825 = vsel %vm799, %v1818, 0
      %v1827 = vsel %vm799, %v1820, 0
      %1829 = vmatprep.subr.mxu0 0.0
      %1830 = vmatpush1.xpose.msra.mxu0 0.0
      %1831 = vmatprep.subr.mxu0 0.0
      %1832 = vmatpush1.xpose.msra.mxu0 0.0
      %1833 = vmatprep.subr.mxu0 0.0
      %1834 = vmatpush1.xpose.msra.mxu0 0.0
      %1835 = vmatprep.subr.mxu0 0.0
      %1836 = vmatpush1.xpose.msra.mxu0 0.0
      %1837 = vmatprep.subr.mxu0 0.0
      %1838 = vmatpush1.xpose.msra.mxu0 0.0
      %1839 = vmatprep.subr.mxu0 0.0
      %1840 = vmatpush1.xpose.msra.mxu0 0.0
      %1841 = vmatprep.subr.mxu0 0.0
      %1842 = vmatpush1.xpose.msra.mxu0 0.0
      %1843 = vmatprep.subr.mxu0 0.0
      %1844 = vmatpush1.xpose.msra.mxu0 0.0
      %1845 = vmatprep.subr.mxu0 0.0
      %1846 = vmatpush1.xpose.msra.mxu0 0.0
      %1847 = vmatprep.subr.mxu0 0.0
      %1848 = vmatpush1.xpose.msra.mxu0 0.0
      %1849 = vmatprep.subr.mxu0 0.0
      %1850 = vmatpush1.xpose.msra.mxu0 0.0
      %1851 = vmatprep.subr.mxu0 0.0
      %1852 = vmatpush1.xpose.msra.mxu0 0.0
      %1853 = vmatprep.subr.mxu0 0.0
      %1854 = vmatpush1.xpose.msra.mxu0 0.0
      %1855 = vmatprep.subr.mxu0 0.0
      %1856 = vmatpush1.xpose.msra.mxu0 0.0
      %1857 = vmatprep.subr.mxu0 0.0
      %1858 = vmatpush1.xpose.msra.mxu0 %v1827
      %1859 = vmatprep.subr.mxu0 0.0
      %1860 = vmatpush1.xpose.msra.mxu0 %v1825
      %1861 = vmatprep.subr.mxu0 0.0
      %1862 = vmatpush2.xpose.msra.mxu0 0.0
      %1863 = vmatprep.subr.mxu0 0.0
      %1864 = vmatpush2.xpose.msra.mxu0 0.0
      %1865 = vmatprep.subr.mxu0 0.0
      %1866 = vmatpush2.xpose.msra.mxu0 0.0
      %1867 = vmatprep.subr.mxu0 0.0
      %1868 = vmatpush2.xpose.msra.mxu0 0.0
      %1869 = vmatprep.subr.mxu0 0.0
      %1870 = vmatpush2.xpose.msra.mxu0 0.0
      %1871 = vmatprep.subr.mxu0 0.0
      %1872 = vmatpush2.xpose.msra.mxu0 0.0
      %1873 = vmatprep.subr.mxu0 0.0
      %1874 = vmatpush2.xpose.msra.mxu0 0.0
      %1875 = vmatprep.subr.mxu0 0.0
      %1876 = vmatpush2.xpose.msra.mxu0 0.0
      %1877 = vmatprep.subr.mxu0 0.0
      %1878 = vmatpush2.xpose.msra.mxu0 0.0
      %1879 = vmatprep.subr.mxu0 0.0
      %1880 = vmatpush2.xpose.msra.mxu0 0.0
      %1881 = vmatprep.subr.mxu0 0.0
      %1882 = vmatpush2.xpose.msra.mxu0 0.0
      %1883 = vmatprep.subr.mxu0 0.0
      %1884 = vmatpush2.xpose.msra.mxu0 0.0
      %1885 = vmatprep.subr.mxu0 0.0
      %1886 = vmatpush2.xpose.msra.mxu0 0.0
      %1887 = vmatprep.subr.mxu0 0.0
      %1888 = vmatpush2.xpose.msra.mxu0 0.0
      %1889 = vmatprep.subr.mxu0 0.0
      %1890 = vmatpush2.xpose.msra.mxu0 0.0
      %1891 = vmatprep.subr.mxu0 0.0
      %1892 = vmatpush2.xpose.msra.mxu0 0.0
      %1893 = vmatprep.mubr.f32.mxu0 0.0
      %1894 = vmatmul.mubr.f32.gmra.mxu0 %v1821
      %v1895 = vpop.f32.mrf.mxu0
      %v1896 = vadd.f32 %v771, %v1895
      %v1897 = vpop.f32.mrf.mxu0
      %1898 = vmatprep.mubr.f32.mxu0 0.0
      %1899 = vmatmul.mubr.f32.gmra.mxu0 %v1823
      %v1900 = vpop.f32.mrf.mxu0
      %v1901 = vadd.f32 %v772, %v1900
      %v1902 = vpop.f32.mrf.mxu0
      %1903 = vdwg.mxu0
      %1906 = vrot.lane.b32.xlu0 %v1617, 120
      %v1907 = vpop.permute.xlu0 %1906
      %1908 = vrot.lane.b32.xlu0 %v1618, 120
      %v1909 = vpop.permute.xlu0 %1908
      %1912 = vrot.lane.b32.xlu0 %v1609, 88
      %v1913 = vpop.permute.xlu0 %1912
      %1914 = vrot.lane.b32.xlu0 %v1610, 88
      %v1915 = vpop.permute.xlu0 %1914
      %v1916 = vsel %vm799, %v1907, 0
      %v1918 = vsel %vm799, %v1909, 0
      %v1920 = vsel %vm799, %v1913, 0
      %v1922 = vsel %vm799, %v1915, 0
      %1924 = vmatprep.subr.mxu0 0.0
      %1925 = vmatpush1.xpose.msra.mxu0 0.0
      %1926 = vmatprep.subr.mxu0 0.0
      %1927 = vmatpush1.xpose.msra.mxu0 0.0
      %1928 = vmatprep.subr.mxu0 0.0
      %1929 = vmatpush1.xpose.msra.mxu0 0.0
      %1930 = vmatprep.subr.mxu0 0.0
      %1931 = vmatpush1.xpose.msra.mxu0 0.0
      %1932 = vmatprep.subr.mxu0 0.0
      %1933 = vmatpush1.xpose.msra.mxu0 0.0
      %1934 = vmatprep.subr.mxu0 0.0
      %1935 = vmatpush1.xpose.msra.mxu0 0.0
      %1936 = vmatprep.subr.mxu0 0.0
      %1937 = vmatpush1.xpose.msra.mxu0 0.0
      %1938 = vmatprep.subr.mxu0 0.0
      %1939 = vmatpush1.xpose.msra.mxu0 0.0
      %1940 = vmatprep.subr.mxu0 0.0
      %1941 = vmatpush1.xpose.msra.mxu0 0.0
      %1942 = vmatprep.subr.mxu0 0.0
      %1943 = vmatpush1.xpose.msra.mxu0 0.0
      %1944 = vmatprep.subr.mxu0 0.0
      %1945 = vmatpush1.xpose.msra.mxu0 0.0
      %1946 = vmatprep.subr.mxu0 0.0
      %1947 = vmatpush1.xpose.msra.mxu0 0.0
      %1948 = vmatprep.subr.mxu0 0.0
      %1949 = vmatpush1.xpose.msra.mxu0 0.0
      %1950 = vmatprep.subr.mxu0 0.0
      %1951 = vmatpush1.xpose.msra.mxu0 0.0
      %1952 = vmatprep.subr.mxu0 0.0
      %1953 = vmatpush1.xpose.msra.mxu0 %v1922
      %1954 = vmatprep.subr.mxu0 0.0
      %1955 = vmatpush1.xpose.msra.mxu0 %v1920
      %1956 = vmatprep.subr.mxu0 0.0
      %1957 = vmatpush2.xpose.msra.mxu0 0.0
      %1958 = vmatprep.subr.mxu0 0.0
      %1959 = vmatpush2.xpose.msra.mxu0 0.0
      %1960 = vmatprep.subr.mxu0 0.0
      %1961 = vmatpush2.xpose.msra.mxu0 0.0
      %1962 = vmatprep.subr.mxu0 0.0
      %1963 = vmatpush2.xpose.msra.mxu0 0.0
      %1964 = vmatprep.subr.mxu0 0.0
      %1965 = vmatpush2.xpose.msra.mxu0 0.0
      %1966 = vmatprep.subr.mxu0 0.0
      %1967 = vmatpush2.xpose.msra.mxu0 0.0
      %1968 = vmatprep.subr.mxu0 0.0
      %1969 = vmatpush2.xpose.msra.mxu0 0.0
      %1970 = vmatprep.subr.mxu0 0.0
      %1971 = vmatpush2.xpose.msra.mxu0 0.0
      %1972 = vmatprep.subr.mxu0 0.0
      %1973 = vmatpush2.xpose.msra.mxu0 0.0
      %1974 = vmatprep.subr.mxu0 0.0
      %1975 = vmatpush2.xpose.msra.mxu0 0.0
      %1976 = vmatprep.subr.mxu0 0.0
      %1977 = vmatpush2.xpose.msra.mxu0 0.0
      %1978 = vmatprep.subr.mxu0 0.0
      %1979 = vmatpush2.xpose.msra.mxu0 0.0
      %1980 = vmatprep.subr.mxu0 0.0
      %1981 = vmatpush2.xpose.msra.mxu0 0.0
      %1982 = vmatprep.subr.mxu0 0.0
      %1983 = vmatpush2.xpose.msra.mxu0 0.0
      %1984 = vmatprep.subr.mxu0 0.0
      %1985 = vmatpush2.xpose.msra.mxu0 0.0
      %1986 = vmatprep.subr.mxu0 0.0
      %1987 = vmatpush2.xpose.msra.mxu0 0.0
      %1988 = vmatprep.mubr.f32.mxu0 0.0
      %1989 = vmatmul.mubr.f32.gmra.mxu0 %v1916
      %v1990 = vpop.f32.mrf.mxu0
      %v1991 = vadd.f32 %v771, %v1990
      %v1992 = vpop.f32.mrf.mxu0
      %1993 = vmatprep.mubr.f32.mxu0 0.0
      %1994 = vmatmul.mubr.f32.gmra.mxu0 %v1918
      %v1995 = vpop.f32.mrf.mxu0
      %v1996 = vadd.f32 %v772, %v1995
      %v1997 = vpop.f32.mrf.mxu0
      %1998 = vdwg.mxu0
      %v1999 = vsel %vm1158, %v1706, -inf
      %2000 = vmax.xlane.f32.xlu0 %v1999
      %v2001 = vpop.xlane.xlu0 %2000
      %v2002 = vsel %vm1158, %v1711, -inf
      %2003 = vmax.xlane.f32.xlu0 %v2002
      %v2004 = vpop.xlane.xlu0 %2003
      %v2005 = vsel %vm1158, %v1801, -inf
      %2006 = vmax.xlane.f32.xlu0 %v2005
      %v2007 = vpop.xlane.xlu0 %2006
      %v2008 = vsel %vm1158, %v1806, -inf
      %2009 = vmax.xlane.f32.xlu0 %v2008
      %v2010 = vpop.xlane.xlu0 %2009
      %v2011 = vsel %vm1158, %v1896, -inf
      %2012 = vmax.xlane.f32.xlu0 %v2011
      %v2013 = vpop.xlane.xlu0 %2012
      %v2014 = vsel %vm1158, %v1901, -inf
      %2015 = vmax.xlane.f32.xlu0 %v2014
      %v2016 = vpop.xlane.xlu0 %2015
      %v2017 = vsel %vm1158, %v1991, -inf
      %2018 = vmax.xlane.f32.xlu0 %v2017
      %v2019 = vpop.xlane.xlu0 %2018
      %v2020 = vsel %vm1158, %v1996, -inf
      %2021 = vmax.xlane.f32.xlu0 %v2020
      %v2022 = vpop.xlane.xlu0 %2021
      %v2023 = vsub.f32 %v1706, %v2001
      %v2024 = vsub.f32 %v1711, %v2004
      %v2025 = vsub.f32 %v1801, %v2007
      %v2026 = vsub.f32 %v1806, %v2010
      %v2027 = vsub.f32 %v1896, %v2013
      %v2028 = vsub.f32 %v1901, %v2016
      %v2029 = vsub.f32 %v1991, %v2019
      %v2030 = vsub.f32 %v1996, %v2022
      %v2031 = vmul.f32 %v2023, 1.442695
      %v2032 = vpow.pop %v2031
      %v2033 = vmul.f32 %v2024, 1.442695
      %v2034 = vpow.pop %v2033
      %v2035 = vmul.f32 %v2025, 1.442695
      %v2036 = vpow.pop %v2035
      %v2037 = vmul.f32 %v2026, 1.442695
      %v2038 = vpow.pop %v2037
      %v2039 = vmul.f32 %v2027, 1.442695
      %v2040 = vpow.pop %v2039
      %v2041 = vmul.f32 %v2028, 1.442695
      %v2042 = vpow.pop %v2041
      %v2043 = vmul.f32 %v2029, 1.442695
      %v2044 = vpow.pop %v2043
      %v2045 = vmul.f32 %v2030, 1.442695
      %v2046 = vpow.pop %v2045
      %v2047 = vsel %vm1158, %v2032, 0.0
      %2048 = vadd.xlane.f32.xlu0 %v2047
      %v2049 = vpop.xlane.xlu0 %2048
      %v2050 = vsel %vm1158, %v2034, 0.0
      %2051 = vadd.xlane.f32.xlu0 %v2050
      %v2052 = vpop.xlane.xlu0 %2051
      %v2053 = vsel %vm1158, %v2036, 0.0
      %2054 = vadd.xlane.f32.xlu0 %v2053
      %v2055 = vpop.xlane.xlu0 %2054
      %v2056 = vsel %vm1158, %v2038, 0.0
      %2057 = vadd.xlane.f32.xlu0 %v2056
      %v2058 = vpop.xlane.xlu0 %2057
      %v2059 = vsel %vm1158, %v2040, 0.0
      %2060 = vadd.xlane.f32.xlu0 %v2059
      %v2061 = vpop.xlane.xlu0 %2060
      %v2062 = vsel %vm1158, %v2042, 0.0
      %2063 = vadd.xlane.f32.xlu0 %v2062
      %v2064 = vpop.xlane.xlu0 %2063
      %v2065 = vsel %vm1158, %v2044, 0.0
      %2066 = vadd.xlane.f32.xlu0 %v2065
      %v2067 = vpop.xlane.xlu0 %2066
      %v2068 = vsel %vm1158, %v2046, 0.0
      %2069 = vadd.xlane.f32.xlu0 %v2068
      %v2070 = vpop.xlane.xlu0 %2069
      %v2071 = vrcp.pop %v2049
      %v2072 = vrcp.pop %v2052
      %v2073 = vrcp.pop %v2055
      %v2074 = vrcp.pop %v2058
      %v2075 = vrcp.pop %v2061
      %v2076 = vrcp.pop %v2064
      %v2077 = vrcp.pop %v2067
      %v2078 = vrcp.pop %v2070
      %v2079 = vmul.f32 %v2032, %v2071
      %v2080 = vmul.f32 %v2034, %v2072
      %v2081 = vmul.f32 %v2036, %v2073
      %v2082 = vmul.f32 %v2038, %v2074
      %v2083 = vmul.f32 %v2040, %v2075
      %v2084 = vmul.f32 %v2042, %v2076
      %v2085 = vmul.f32 %v2044, %v2077
      %v2086 = vmul.f32 %v2046, %v2078
      %2087 = vrot.lane.b32.xlu0 %v1603, 56
      %v2088 = vpop.permute.xlu0 %2087
      %2089 = vrot.lane.b32.xlu0 %v1604, 56
      %v2090 = vpop.permute.xlu0 %2089
      %v2094 = vsel %vm1158, %v2079, 0
      %v2097 = vsel %vm1158, %v2080, 0
      %2099 = vmatprep.subr.mxu0 0.0
      %2100 = vmatpush1.msra.mxu0 0.0
      %2101 = vmatprep.subr.mxu0 0.0
      %2102 = vmatpush1.msra.mxu0 0.0
      %2103 = vmatprep.subr.mxu0 0.0
      %2104 = vmatpush1.msra.mxu0 0.0
      %2105 = vmatprep.subr.mxu0 0.0
      %2106 = vmatpush1.msra.mxu0 0.0
      %2107 = vmatprep.subr.mxu0 0.0
      %2108 = vmatpush1.msra.mxu0 0.0
      %2109 = vmatprep.subr.mxu0 0.0
      %2110 = vmatpush1.msra.mxu0 0.0
      %2111 = vmatprep.subr.mxu0 0.0
      %2112 = vmatpush1.msra.mxu0 0.0
      %2113 = vmatprep.subr.mxu0 0.0
      %2114 = vmatpush1.msra.mxu0 0.0
      %2115 = vmatprep.subr.mxu0 0.0
      %2116 = vmatpush1.msra.mxu0 0.0
      %2117 = vmatprep.subr.mxu0 0.0
      %2118 = vmatpush1.msra.mxu0 0.0
      %2119 = vmatprep.subr.mxu0 0.0
      %2120 = vmatpush1.msra.mxu0 0.0
      %2121 = vmatprep.subr.mxu0 0.0
      %2122 = vmatpush1.msra.mxu0 0.0
      %2123 = vmatprep.subr.mxu0 0.0
      %2124 = vmatpush1.msra.mxu0 0.0
      %2125 = vmatprep.subr.mxu0 0.0
      %2126 = vmatpush1.msra.mxu0 0.0
      %2127 = vmatprep.subr.mxu0 0.0
      %2128 = vmatpush1.msra.mxu0 %v2090
      %2129 = vmatprep.subr.mxu0 0.0
      %2130 = vmatpush1.msra.mxu0 %v2088
      %2131 = vmatprep.subr.mxu0 0.0
      %2132 = vmatpush2.msra.mxu0 0.0
      %2133 = vmatprep.subr.mxu0 0.0
      %2134 = vmatpush2.msra.mxu0 0.0
      %2135 = vmatprep.subr.mxu0 0.0
      %2136 = vmatpush2.msra.mxu0 0.0
      %2137 = vmatprep.subr.mxu0 0.0
      %2138 = vmatpush2.msra.mxu0 0.0
      %2139 = vmatprep.subr.mxu0 0.0
      %2140 = vmatpush2.msra.mxu0 0.0
      %2141 = vmatprep.subr.mxu0 0.0
      %2142 = vmatpush2.msra.mxu0 0.0
      %2143 = vmatprep.subr.mxu0 0.0
      %2144 = vmatpush2.msra.mxu0 0.0
      %2145 = vmatprep.subr.mxu0 0.0
      %2146 = vmatpush2.msra.mxu0 0.0
      %2147 = vmatprep.subr.mxu0 0.0
      %2148 = vmatpush2.msra.mxu0 0.0
      %2149 = vmatprep.subr.mxu0 0.0
      %2150 = vmatpush2.msra.mxu0 0.0
      %2151 = vmatprep.subr.mxu0 0.0
      %2152 = vmatpush2.msra.mxu0 0.0
      %2153 = vmatprep.subr.mxu0 0.0
      %2154 = vmatpush2.msra.mxu0 0.0
      %2155 = vmatprep.subr.mxu0 0.0
      %2156 = vmatpush2.msra.mxu0 0.0
      %2157 = vmatprep.subr.mxu0 0.0
      %2158 = vmatpush2.msra.mxu0 0.0
      %2159 = vmatprep.subr.mxu0 0.0
      %2160 = vmatpush2.msra.mxu0 0.0
      %2161 = vmatprep.subr.mxu0 0.0
      %2162 = vmatpush2.msra.mxu0 0.0
      %2163 = vmatprep.mubr.f32.mxu0 0.0
      %2164 = vmatmul.mubr.f32.gmra.mxu0 %v2094
      %v2165 = vpop.f32.mrf.mxu0
      %v2166 = vadd.f32 0.0, %v2165
      %v2167 = vpop.f32.mrf.mxu0
      %2168 = vmatprep.mubr.f32.mxu0 0.0
      %2169 = vmatmul.mubr.f32.gmra.mxu0 %v2097
      %v2170 = vpop.f32.mrf.mxu0
      %v2171 = vadd.f32 0.0, %v2170
      %v2172 = vpop.f32.mrf.mxu0
      %2173 = vdwg.mxu0
      %2174 = vrot.lane.b32.xlu0 %v1605, 56
      %v2175 = vpop.permute.xlu0 %2174
      %2176 = vrot.lane.b32.xlu0 %v1606, 56
      %v2177 = vpop.permute.xlu0 %2176
      %v2181 = vsel %vm1158, %v2081, 0
      %v2184 = vsel %vm1158, %v2082, 0
      %2186 = vmatprep.subr.mxu0 0.0
      %2187 = vmatpush1.msra.mxu0 0.0
      %2188 = vmatprep.subr.mxu0 0.0
      %2189 = vmatpush1.msra.mxu0 0.0
      %2190 = vmatprep.subr.mxu0 0.0
      %2191 = vmatpush1.msra.mxu0 0.0
      %2192 = vmatprep.subr.mxu0 0.0
      %2193 = vmatpush1.msra.mxu0 0.0
      %2194 = vmatprep.subr.mxu0 0.0
      %2195 = vmatpush1.msra.mxu0 0.0
      %2196 = vmatprep.subr.mxu0 0.0
      %2197 = vmatpush1.msra.mxu0 0.0
      %2198 = vmatprep.subr.mxu0 0.0
      %2199 = vmatpush1.msra.mxu0 0.0
      %2200 = vmatprep.subr.mxu0 0.0
      %2201 = vmatpush1.msra.mxu0 0.0
      %2202 = vmatprep.subr.mxu0 0.0
      %2203 = vmatpush1.msra.mxu0 0.0
      %2204 = vmatprep.subr.mxu0 0.0
      %2205 = vmatpush1.msra.mxu0 0.0
      %2206 = vmatprep.subr.mxu0 0.0
      %2207 = vmatpush1.msra.mxu0 0.0
      %2208 = vmatprep.subr.mxu0 0.0
      %2209 = vmatpush1.msra.mxu0 0.0
      %2210 = vmatprep.subr.mxu0 0.0
      %2211 = vmatpush1.msra.mxu0 0.0
      %2212 = vmatprep.subr.mxu0 0.0
      %2213 = vmatpush1.msra.mxu0 0.0
      %2214 = vmatprep.subr.mxu0 0.0
      %2215 = vmatpush1.msra.mxu0 %v2177
      %2216 = vmatprep.subr.mxu0 0.0
      %2217 = vmatpush1.msra.mxu0 %v2175
      %2218 = vmatprep.subr.mxu0 0.0
      %2219 = vmatpush2.msra.mxu0 0.0
      %2220 = vmatprep.subr.mxu0 0.0
      %2221 = vmatpush2.msra.mxu0 0.0
      %2222 = vmatprep.subr.mxu0 0.0
      %2223 = vmatpush2.msra.mxu0 0.0
      %2224 = vmatprep.subr.mxu0 0.0
      %2225 = vmatpush2.msra.mxu0 0.0
      %2226 = vmatprep.subr.mxu0 0.0
      %2227 = vmatpush2.msra.mxu0 0.0
      %2228 = vmatprep.subr.mxu0 0.0
      %2229 = vmatpush2.msra.mxu0 0.0
      %2230 = vmatprep.subr.mxu0 0.0
      %2231 = vmatpush2.msra.mxu0 0.0
      %2232 = vmatprep.subr.mxu0 0.0
      %2233 = vmatpush2.msra.mxu0 0.0
      %2234 = vmatprep.subr.mxu0 0.0
      %2235 = vmatpush2.msra.mxu0 0.0
      %2236 = vmatprep.subr.mxu0 0.0
      %2237 = vmatpush2.msra.mxu0 0.0
      %2238 = vmatprep.subr.mxu0 0.0
      %2239 = vmatpush2.msra.mxu0 0.0
      %2240 = vmatprep.subr.mxu0 0.0
      %2241 = vmatpush2.msra.mxu0 0.0
      %2242 = vmatprep.subr.mxu0 0.0
      %2243 = vmatpush2.msra.mxu0 0.0
      %2244 = vmatprep.subr.mxu0 0.0
      %2245 = vmatpush2.msra.mxu0 0.0
      %2246 = vmatprep.subr.mxu0 0.0
      %2247 = vmatpush2.msra.mxu0 0.0
      %2248 = vmatprep.subr.mxu0 0.0
      %2249 = vmatpush2.msra.mxu0 0.0
      %2250 = vmatprep.mubr.f32.mxu0 0.0
      %2251 = vmatmul.mubr.f32.gmra.mxu0 %v2181
      %v2252 = vpop.f32.mrf.mxu0
      %v2253 = vadd.f32 0.0, %v2252
      %v2254 = vpop.f32.mrf.mxu0
      %2255 = vmatprep.mubr.f32.mxu0 0.0
      %2256 = vmatmul.mubr.f32.gmra.mxu0 %v2184
      %v2257 = vpop.f32.mrf.mxu0
      %v2258 = vadd.f32 0.0, %v2257
      %v2259 = vpop.f32.mrf.mxu0
      %2260 = vdwg.mxu0
      %2261 = vrot.lane.b32.xlu0 %v1607, 56
      %v2262 = vpop.permute.xlu0 %2261
      %2263 = vrot.lane.b32.xlu0 %v1608, 56
      %v2264 = vpop.permute.xlu0 %2263
      %v2268 = vsel %vm1158, %v2083, 0
      %v2271 = vsel %vm1158, %v2084, 0
      %2273 = vmatprep.subr.mxu0 0.0
      %2274 = vmatpush1.msra.mxu0 0.0
      %2275 = vmatprep.subr.mxu0 0.0
      %2276 = vmatpush1.msra.mxu0 0.0
      %2277 = vmatprep.subr.mxu0 0.0
      %2278 = vmatpush1.msra.mxu0 0.0
      %2279 = vmatprep.subr.mxu0 0.0
      %2280 = vmatpush1.msra.mxu0 0.0
      %2281 = vmatprep.subr.mxu0 0.0
      %2282 = vmatpush1.msra.mxu0 0.0
      %2283 = vmatprep.subr.mxu0 0.0
      %2284 = vmatpush1.msra.mxu0 0.0
      %2285 = vmatprep.subr.mxu0 0.0
      %2286 = vmatpush1.msra.mxu0 0.0
      %2287 = vmatprep.subr.mxu0 0.0
      %2288 = vmatpush1.msra.mxu0 0.0
      %2289 = vmatprep.subr.mxu0 0.0
      %2290 = vmatpush1.msra.mxu0 0.0
      %2291 = vmatprep.subr.mxu0 0.0
      %2292 = vmatpush1.msra.mxu0 0.0
      %2293 = vmatprep.subr.mxu0 0.0
      %2294 = vmatpush1.msra.mxu0 0.0
      %2295 = vmatprep.subr.mxu0 0.0
      %2296 = vmatpush1.msra.mxu0 0.0
      %2297 = vmatprep.subr.mxu0 0.0
      %2298 = vmatpush1.msra.mxu0 0.0
      %2299 = vmatprep.subr.mxu0 0.0
      %2300 = vmatpush1.msra.mxu0 0.0
      %2301 = vmatprep.subr.mxu0 0.0
      %2302 = vmatpush1.msra.mxu0 %v2264
      %2303 = vmatprep.subr.mxu0 0.0
      %2304 = vmatpush1.msra.mxu0 %v2262
      %2305 = vmatprep.subr.mxu0 0.0
      %2306 = vmatpush2.msra.mxu0 0.0
      %2307 = vmatprep.subr.mxu0 0.0
      %2308 = vmatpush2.msra.mxu0 0.0
      %2309 = vmatprep.subr.mxu0 0.0
      %2310 = vmatpush2.msra.mxu0 0.0
      %2311 = vmatprep.subr.mxu0 0.0
      %2312 = vmatpush2.msra.mxu0 0.0
      %2313 = vmatprep.subr.mxu0 0.0
      %2314 = vmatpush2.msra.mxu0 0.0
      %2315 = vmatprep.subr.mxu0 0.0
      %2316 = vmatpush2.msra.mxu0 0.0
      %2317 = vmatprep.subr.mxu0 0.0
      %2318 = vmatpush2.msra.mxu0 0.0
      %2319 = vmatprep.subr.mxu0 0.0
      %2320 = vmatpush2.msra.mxu0 0.0
      %2321 = vmatprep.subr.mxu0 0.0
      %2322 = vmatpush2.msra.mxu0 0.0
      %2323 = vmatprep.subr.mxu0 0.0
      %2324 = vmatpush2.msra.mxu0 0.0
      %2325 = vmatprep.subr.mxu0 0.0
      %2326 = vmatpush2.msra.mxu0 0.0
      %2327 = vmatprep.subr.mxu0 0.0
      %2328 = vmatpush2.msra.mxu0 0.0
      %2329 = vmatprep.subr.mxu0 0.0
      %2330 = vmatpush2.msra.mxu0 0.0
      %2331 = vmatprep.subr.mxu0 0.0
      %2332 = vmatpush2.msra.mxu0 0.0
      %2333 = vmatprep.subr.mxu0 0.0
      %2334 = vmatpush2.msra.mxu0 0.0
      %2335 = vmatprep.subr.mxu0 0.0
      %2336 = vmatpush2.msra.mxu0 0.0
      %2337 = vmatprep.mubr.f32.mxu0 0.0
      %2338 = vmatmul.mubr.f32.gmra.mxu0 %v2268
      %v2339 = vpop.f32.mrf.mxu0
      %v2340 = vadd.f32 0.0, %v2339
      %v2341 = vpop.f32.mrf.mxu0
      %2342 = vmatprep.mubr.f32.mxu0 0.0
      %2343 = vmatmul.mubr.f32.gmra.mxu0 %v2271
      %v2344 = vpop.f32.mrf.mxu0
      %v2345 = vadd.f32 0.0, %v2344
      %v2346 = vpop.f32.mrf.mxu0
      %2347 = vdwg.mxu0
      %2348 = vrot.lane.b32.xlu0 %v1609, 56
      %v2349 = vpop.permute.xlu0 %2348
      %2350 = vrot.lane.b32.xlu0 %v1610, 56
      %v2351 = vpop.permute.xlu0 %2350
      %v2355 = vsel %vm1158, %v2085, 0
      %v2358 = vsel %vm1158, %v2086, 0
      %2360 = vmatprep.subr.mxu0 0.0
      %2361 = vmatpush1.msra.mxu0 0.0
      %2362 = vmatprep.subr.mxu0 0.0
      %2363 = vmatpush1.msra.mxu0 0.0
      %2364 = vmatprep.subr.mxu0 0.0
      %2365 = vmatpush1.msra.mxu0 0.0
      %2366 = vmatprep.subr.mxu0 0.0
      %2367 = vmatpush1.msra.mxu0 0.0
      %2368 = vmatprep.subr.mxu0 0.0
      %2369 = vmatpush1.msra.mxu0 0.0
      %2370 = vmatprep.subr.mxu0 0.0
      %2371 = vmatpush1.msra.mxu0 0.0
      %2372 = vmatprep.subr.mxu0 0.0
      %2373 = vmatpush1.msra.mxu0 0.0
      %2374 = vmatprep.subr.mxu0 0.0
      %2375 = vmatpush1.msra.mxu0 0.0
      %2376 = vmatprep.subr.mxu0 0.0
      %2377 = vmatpush1.msra.mxu0 0.0
      %2378 = vmatprep.subr.mxu0 0.0
      %2379 = vmatpush1.msra.mxu0 0.0
      %2380 = vmatprep.subr.mxu0 0.0
      %2381 = vmatpush1.msra.mxu0 0.0
      %2382 = vmatprep.subr.mxu0 0.0
      %2383 = vmatpush1.msra.mxu0 0.0
      %2384 = vmatprep.subr.mxu0 0.0
      %2385 = vmatpush1.msra.mxu0 0.0
      %2386 = vmatprep.subr.mxu0 0.0
      %2387 = vmatpush1.msra.mxu0 0.0
      %2388 = vmatprep.subr.mxu0 0.0
      %2389 = vmatpush1.msra.mxu0 %v2351
      %2390 = vmatprep.subr.mxu0 0.0
      %2391 = vmatpush1.msra.mxu0 %v2349
      %2392 = vmatprep.subr.mxu0 0.0
      %2393 = vmatpush2.msra.mxu0 0.0
      %2394 = vmatprep.subr.mxu0 0.0
      %2395 = vmatpush2.msra.mxu0 0.0
      %2396 = vmatprep.subr.mxu0 0.0
      %2397 = vmatpush2.msra.mxu0 0.0
      %2398 = vmatprep.subr.mxu0 0.0
      %2399 = vmatpush2.msra.mxu0 0.0
      %2400 = vmatprep.subr.mxu0 0.0
      %2401 = vmatpush2.msra.mxu0 0.0
      %2402 = vmatprep.subr.mxu0 0.0
      %2403 = vmatpush2.msra.mxu0 0.0
      %2404 = vmatprep.subr.mxu0 0.0
      %2405 = vmatpush2.msra.mxu0 0.0
      %2406 = vmatprep.subr.mxu0 0.0
      %2407 = vmatpush2.msra.mxu0 0.0
      %2408 = vmatprep.subr.mxu0 0.0
      %2409 = vmatpush2.msra.mxu0 0.0
      %2410 = vmatprep.subr.mxu0 0.0
      %2411 = vmatpush2.msra.mxu0 0.0
      %2412 = vmatprep.subr.mxu0 0.0
      %2413 = vmatpush2.msra.mxu0 0.0
      %2414 = vmatprep.subr.mxu0 0.0
      %2415 = vmatpush2.msra.mxu0 0.0
      %2416 = vmatprep.subr.mxu0 0.0
      %2417 = vmatpush2.msra.mxu0 0.0
      %2418 = vmatprep.subr.mxu0 0.0
      %2419 = vmatpush2.msra.mxu0 0.0
      %2420 = vmatprep.subr.mxu0 0.0
      %2421 = vmatpush2.msra.mxu0 0.0
      %2422 = vmatprep.subr.mxu0 0.0
      %2423 = vmatpush2.msra.mxu0 0.0
      %2424 = vmatprep.mubr.f32.mxu0 0.0
      %2425 = vmatmul.mubr.f32.gmra.mxu0 %v2355
      %v2426 = vpop.f32.mrf.mxu0
      %v2427 = vadd.f32 0.0, %v2426
      %v2428 = vpop.f32.mrf.mxu0
      %2429 = vmatprep.mubr.f32.mxu0 0.0
      %2430 = vmatmul.mubr.f32.gmra.mxu0 %v2358
      %v2431 = vpop.f32.mrf.mxu0
      %v2432 = vadd.f32 0.0, %v2431
      %v2433 = vpop.f32.mrf.mxu0
      %2434 = vdwg.mxu0
      %2443 = vrot.lane.b32.xlu0 %v2166, 8
      %v2444 = vpop.permute.xlu0 %2443
      %2445 = vrot.lane.b32.xlu0 %v2171, 8
      %v2446 = vpop.permute.xlu0 %2445
      %2447 = vrot.lane.b32.xlu0 %v2253, 8
      %v2448 = vpop.permute.xlu0 %2447
      %2449 = vrot.lane.b32.xlu0 %v2258, 8
      %v2450 = vpop.permute.xlu0 %2449
      %2451 = vrot.lane.b32.xlu0 %v2340, 8
      %v2452 = vpop.permute.xlu0 %2451
      %2453 = vrot.lane.b32.xlu0 %v2345, 8
      %v2454 = vpop.permute.xlu0 %2453
      %2455 = vrot.lane.b32.xlu0 %v2427, 8
      %v2456 = vpop.permute.xlu0 %2455
      %2457 = vrot.lane.b32.xlu0 %v2432, 8
      %v2458 = vpop.permute.xlu0 %2457
      %vm2467 = vcmask 130112
      %2468 = vst.msk [vmem:[#allocation3] sm:$0xff] %vm2467, %v2444
      %2469 = vst.msk [vmem:[#allocation3 + $0x8] sm:$0xff] %vm2467, %v2446
      %2470 = vst.msk [vmem:[#allocation3 + $0x10] sm:$0xff] %vm2467, %v2448
      %2471 = vst.msk [vmem:[#allocation3 + $0x18] sm:$0xff] %vm2467, %v2450
      %2472 = vst.msk [vmem:[#allocation3 + $0x20] sm:$0xff] %vm2467, %v2452
      %2473 = vst.msk [vmem:[#allocation3 + $0x28] sm:$0xff] %vm2467, %v2454
      %2474 = vst.msk [vmem:[#allocation3 + $0x30] sm:$0xff] %vm2467, %v2456
      %2475 = vst.msk [vmem:[#allocation3 + $0x38] sm:$0xff] %vm2467, %v2458
      %v2476 = vld [vmem:[#allocation2] sm:$0xff]
      %v2477 = vld [vmem:[#allocation2 + $0x8] sm:$0xff]
      %v2478 = vld [vmem:[#allocation2 + $0x10] sm:$0xff]
      %v2479 = vld [vmem:[#allocation2 + $0x18] sm:$0xff]
      %v2480 = vld [vmem:[#allocation2 + $0x20] sm:$0xff]
      %v2481 = vld [vmem:[#allocation2 + $0x28] sm:$0xff]
      %v2482 = vld [vmem:[#allocation2 + $0x30] sm:$0xff]
      %v2483 = vld [vmem:[#allocation2 + $0x38] sm:$0xff]
      %v2484 = vmul.f32 %v2476, 0.35355338
      %v2485 = vmul.f32 %v2477, 0.35355338
      %v2486 = vmul.f32 %v2478, 0.35355338
      %v2487 = vmul.f32 %v2479, 0.35355338
      %v2488 = vmul.f32 %v2480, 0.35355338
      %v2489 = vmul.f32 %v2481, 0.35355338
      %v2490 = vmul.f32 %v2482, 0.35355338
      %v2491 = vmul.f32 %v2483, 0.35355338
      %2494 = vrot.lane.b32.xlu0 %v2484, 112
      %v2495 = vpop.permute.xlu0 %2494
      %2496 = vrot.lane.b32.xlu0 %v2485, 112
      %v2497 = vpop.permute.xlu0 %2496
      %2500 = vrot.lane.b32.xlu0 %v2476, 80
      %v2501 = vpop.permute.xlu0 %2500
      %2502 = vrot.lane.b32.xlu0 %v2477, 80
      %v2503 = vpop.permute.xlu0 %2502
      %v2504 = vsel %vm799, %v2495, 0
      %v2506 = vsel %vm799, %v2497, 0
      %v2508 = vsel %vm799, %v2501, 0
      %v2510 = vsel %vm799, %v2503, 0
      %2512 = vmatprep.subr.mxu0 0.0
      %2513 = vmatpush1.xpose.msra.mxu0 0.0
      %2514 = vmatprep.subr.mxu0 0.0
      %2515 = vmatpush1.xpose.msra.mxu0 0.0
      %2516 = vmatprep.subr.mxu0 0.0
      %2517 = vmatpush1.xpose.msra.mxu0 0.0
      %2518 = vmatprep.subr.mxu0 0.0
      %2519 = vmatpush1.xpose.msra.mxu0 0.0
      %2520 = vmatprep.subr.mxu0 0.0
      %2521 = vmatpush1.xpose.msra.mxu0 0.0
      %2522 = vmatprep.subr.mxu0 0.0
      %2523 = vmatpush1.xpose.msra.mxu0 0.0
      %2524 = vmatprep.subr.mxu0 0.0
      %2525 = vmatpush1.xpose.msra.mxu0 0.0
      %2526 = vmatprep.subr.mxu0 0.0
      %2527 = vmatpush1.xpose.msra.mxu0 0.0
      %2528 = vmatprep.subr.mxu0 0.0
      %2529 = vmatpush1.xpose.msra.mxu0 0.0
      %2530 = vmatprep.subr.mxu0 0.0
      %2531 = vmatpush1.xpose.msra.mxu0 0.0
      %2532 = vmatprep.subr.mxu0 0.0
      %2533 = vmatpush1.xpose.msra.mxu0 0.0
      %2534 = vmatprep.subr.mxu0 0.0
      %2535 = vmatpush1.xpose.msra.mxu0 0.0
      %2536 = vmatprep.subr.mxu0 0.0
      %2537 = vmatpush1.xpose.msra.mxu0 0.0
      %2538 = vmatprep.subr.mxu0 0.0
      %2539 = vmatpush1.xpose.msra.mxu0 0.0
      %2540 = vmatprep.subr.mxu0 0.0
      %2541 = vmatpush1.xpose.msra.mxu0 %v2510
      %2542 = vmatprep.subr.mxu0 0.0
      %2543 = vmatpush1.xpose.msra.mxu0 %v2508
      %2544 = vmatprep.subr.mxu0 0.0
      %2545 = vmatpush2.xpose.msra.mxu0 0.0
      %2546 = vmatprep.subr.mxu0 0.0
      %2547 = vmatpush2.xpose.msra.mxu0 0.0
      %2548 = vmatprep.subr.mxu0 0.0
      %2549 = vmatpush2.xpose.msra.mxu0 0.0
      %2550 = vmatprep.subr.mxu0 0.0
      %2551 = vmatpush2.xpose.msra.mxu0 0.0
      %2552 = vmatprep.subr.mxu0 0.0
      %2553 = vmatpush2.xpose.msra.mxu0 0.0
      %2554 = vmatprep.subr.mxu0 0.0
      %2555 = vmatpush2.xpose.msra.mxu0 0.0
      %2556 = vmatprep.subr.mxu0 0.0
      %2557 = vmatpush2.xpose.msra.mxu0 0.0
      %2558 = vmatprep.subr.mxu0 0.0
      %2559 = vmatpush2.xpose.msra.mxu0 0.0
      %2560 = vmatprep.subr.mxu0 0.0
      %2561 = vmatpush2.xpose.msra.mxu0 0.0
      %2562 = vmatprep.subr.mxu0 0.0
      %2563 = vmatpush2.xpose.msra.mxu0 0.0
      %2564 = vmatprep.subr.mxu0 0.0
      %2565 = vmatpush2.xpose.msra.mxu0 0.0
      %2566 = vmatprep.subr.mxu0 0.0
      %2567 = vmatpush2.xpose.msra.mxu0 0.0
      %2568 = vmatprep.subr.mxu0 0.0
      %2569 = vmatpush2.xpose.msra.mxu0 0.0
      %2570 = vmatprep.subr.mxu0 0.0
      %2571 = vmatpush2.xpose.msra.mxu0 0.0
      %2572 = vmatprep.subr.mxu0 0.0
      %2573 = vmatpush2.xpose.msra.mxu0 0.0
      %2574 = vmatprep.subr.mxu0 0.0
      %2575 = vmatpush2.xpose.msra.mxu0 0.0
      %2576 = vmatprep.mubr.f32.mxu0 0.0
      %2577 = vmatmul.mubr.f32.gmra.mxu0 %v2504
      %v2578 = vpop.f32.mrf.mxu0
      %v2579 = vadd.f32 %v773, %v2578
      %v2580 = vpop.f32.mrf.mxu0
      %2581 = vmatprep.mubr.f32.mxu0 0.0
      %2582 = vmatmul.mubr.f32.gmra.mxu0 %v2506
      %v2583 = vpop.f32.mrf.mxu0
      %v2584 = vadd.f32 %v774, %v2583
      %v2585 = vpop.f32.mrf.mxu0
      %2586 = vdwg.mxu0
      %2589 = vrot.lane.b32.xlu0 %v2486, 112
      %v2590 = vpop.permute.xlu0 %2589
      %2591 = vrot.lane.b32.xlu0 %v2487, 112
      %v2592 = vpop.permute.xlu0 %2591
      %2595 = vrot.lane.b32.xlu0 %v2478, 80
      %v2596 = vpop.permute.xlu0 %2595
      %2597 = vrot.lane.b32.xlu0 %v2479, 80
      %v2598 = vpop.permute.xlu0 %2597
      %v2599 = vsel %vm799, %v2590, 0
      %v2601 = vsel %vm799, %v2592, 0
      %v2603 = vsel %vm799, %v2596, 0
      %v2605 = vsel %vm799, %v2598, 0
      %2607 = vmatprep.subr.mxu0 0.0
      %2608 = vmatpush1.xpose.msra.mxu0 0.0
      %2609 = vmatprep.subr.mxu0 0.0
      %2610 = vmatpush1.xpose.msra.mxu0 0.0
      %2611 = vmatprep.subr.mxu0 0.0
      %2612 = vmatpush1.xpose.msra.mxu0 0.0
      %2613 = vmatprep.subr.mxu0 0.0
      %2614 = vmatpush1.xpose.msra.mxu0 0.0
      %2615 = vmatprep.subr.mxu0 0.0
      %2616 = vmatpush1.xpose.msra.mxu0 0.0
      %2617 = vmatprep.subr.mxu0 0.0
      %2618 = vmatpush1.xpose.msra.mxu0 0.0
      %2619 = vmatprep.subr.mxu0 0.0
      %2620 = vmatpush1.xpose.msra.mxu0 0.0
      %2621 = vmatprep.subr.mxu0 0.0
      %2622 = vmatpush1.xpose.msra.mxu0 0.0
      %2623 = vmatprep.subr.mxu0 0.0
      %2624 = vmatpush1.xpose.msra.mxu0 0.0
      %2625 = vmatprep.subr.mxu0 0.0
      %2626 = vmatpush1.xpose.msra.mxu0 0.0
      %2627 = vmatprep.subr.mxu0 0.0
      %2628 = vmatpush1.xpose.msra.mxu0 0.0
      %2629 = vmatprep.subr.mxu0 0.0
      %2630 = vmatpush1.xpose.msra.mxu0 0.0
      %2631 = vmatprep.subr.mxu0 0.0
      %2632 = vmatpush1.xpose.msra.mxu0 0.0
      %2633 = vmatprep.subr.mxu0 0.0
      %2634 = vmatpush1.xpose.msra.mxu0 0.0
      %2635 = vmatprep.subr.mxu0 0.0
      %2636 = vmatpush1.xpose.msra.mxu0 %v2605
      %2637 = vmatprep.subr.mxu0 0.0
      %2638 = vmatpush1.xpose.msra.mxu0 %v2603
      %2639 = vmatprep.subr.mxu0 0.0
      %2640 = vmatpush2.xpose.msra.mxu0 0.0
      %2641 = vmatprep.subr.mxu0 0.0
      %2642 = vmatpush2.xpose.msra.mxu0 0.0
      %2643 = vmatprep.subr.mxu0 0.0
      %2644 = vmatpush2.xpose.msra.mxu0 0.0
      %2645 = vmatprep.subr.mxu0 0.0
      %2646 = vmatpush2.xpose.msra.mxu0 0.0
      %2647 = vmatprep.subr.mxu0 0.0
      %2648 = vmatpush2.xpose.msra.mxu0 0.0
      %2649 = vmatprep.subr.mxu0 0.0
      %2650 = vmatpush2.xpose.msra.mxu0 0.0
      %2651 = vmatprep.subr.mxu0 0.0
      %2652 = vmatpush2.xpose.msra.mxu0 0.0
      %2653 = vmatprep.subr.mxu0 0.0
      %2654 = vmatpush2.xpose.msra.mxu0 0.0
      %2655 = vmatprep.subr.mxu0 0.0
      %2656 = vmatpush2.xpose.msra.mxu0 0.0
      %2657 = vmatprep.subr.mxu0 0.0
      %2658 = vmatpush2.xpose.msra.mxu0 0.0
      %2659 = vmatprep.subr.mxu0 0.0
      %2660 = vmatpush2.xpose.msra.mxu0 0.0
      %2661 = vmatprep.subr.mxu0 0.0
      %2662 = vmatpush2.xpose.msra.mxu0 0.0
      %2663 = vmatprep.subr.mxu0 0.0
      %2664 = vmatpush2.xpose.msra.mxu0 0.0
      %2665 = vmatprep.subr.mxu0 0.0
      %2666 = vmatpush2.xpose.msra.mxu0 0.0
      %2667 = vmatprep.subr.mxu0 0.0
      %2668 = vmatpush2.xpose.msra.mxu0 0.0
      %2669 = vmatprep.subr.mxu0 0.0
      %2670 = vmatpush2.xpose.msra.mxu0 0.0
      %2671 = vmatprep.mubr.f32.mxu0 0.0
      %2672 = vmatmul.mubr.f32.gmra.mxu0 %v2599
      %v2673 = vpop.f32.mrf.mxu0
      %v2674 = vadd.f32 %v773, %v2673
      %v2675 = vpop.f32.mrf.mxu0
      %2676 = vmatprep.mubr.f32.mxu0 0.0
      %2677 = vmatmul.mubr.f32.gmra.mxu0 %v2601
      %v2678 = vpop.f32.mrf.mxu0
      %v2679 = vadd.f32 %v774, %v2678
      %v2680 = vpop.f32.mrf.mxu0
      %2681 = vdwg.mxu0
      %2684 = vrot.lane.b32.xlu0 %v2488, 112
      %v2685 = vpop.permute.xlu0 %2684
      %2686 = vrot.lane.b32.xlu0 %v2489, 112
      %v2687 = vpop.permute.xlu0 %2686
      %2690 = vrot.lane.b32.xlu0 %v2480, 80
      %v2691 = vpop.permute.xlu0 %2690
      %2692 = vrot.lane.b32.xlu0 %v2481, 80
      %v2693 = vpop.permute.xlu0 %2692
      %v2694 = vsel %vm799, %v2685, 0
      %v2696 = vsel %vm799, %v2687, 0
      %v2698 = vsel %vm799, %v2691, 0
      %v2700 = vsel %vm799, %v2693, 0
      %2702 = vmatprep.subr.mxu0 0.0
      %2703 = vmatpush1.xpose.msra.mxu0 0.0
      %2704 = vmatprep.subr.mxu0 0.0
      %2705 = vmatpush1.xpose.msra.mxu0 0.0
      %2706 = vmatprep.subr.mxu0 0.0
      %2707 = vmatpush1.xpose.msra.mxu0 0.0
      %2708 = vmatprep.subr.mxu0 0.0
      %2709 = vmatpush1.xpose.msra.mxu0 0.0
      %2710 = vmatprep.subr.mxu0 0.0
      %2711 = vmatpush1.xpose.msra.mxu0 0.0
      %2712 = vmatprep.subr.mxu0 0.0
      %2713 = vmatpush1.xpose.msra.mxu0 0.0
      %2714 = vmatprep.subr.mxu0 0.0
      %2715 = vmatpush1.xpose.msra.mxu0 0.0
      %2716 = vmatprep.subr.mxu0 0.0
      %2717 = vmatpush1.xpose.msra.mxu0 0.0
      %2718 = vmatprep.subr.mxu0 0.0
      %2719 = vmatpush1.xpose.msra.mxu0 0.0
      %2720 = vmatprep.subr.mxu0 0.0
      %2721 = vmatpush1.xpose.msra.mxu0 0.0
      %2722 = vmatprep.subr.mxu0 0.0
      %2723 = vmatpush1.xpose.msra.mxu0 0.0
      %2724 = vmatprep.subr.mxu0 0.0
      %2725 = vmatpush1.xpose.msra.mxu0 0.0
      %2726 = vmatprep.subr.mxu0 0.0
      %2727 = vmatpush1.xpose.msra.mxu0 0.0
      %2728 = vmatprep.subr.mxu0 0.0
      %2729 = vmatpush1.xpose.msra.mxu0 0.0
      %2730 = vmatprep.subr.mxu0 0.0
      %2731 = vmatpush1.xpose.msra.mxu0 %v2700
      %2732 = vmatprep.subr.mxu0 0.0
      %2733 = vmatpush1.xpose.msra.mxu0 %v2698
      %2734 = vmatprep.subr.mxu0 0.0
      %2735 = vmatpush2.xpose.msra.mxu0 0.0
      %2736 = vmatprep.subr.mxu0 0.0
      %2737 = vmatpush2.xpose.msra.mxu0 0.0
      %2738 = vmatprep.subr.mxu0 0.0
      %2739 = vmatpush2.xpose.msra.mxu0 0.0
      %2740 = vmatprep.subr.mxu0 0.0
      %2741 = vmatpush2.xpose.msra.mxu0 0.0
      %2742 = vmatprep.subr.mxu0 0.0
      %2743 = vmatpush2.xpose.msra.mxu0 0.0
      %2744 = vmatprep.subr.mxu0 0.0
      %2745 = vmatpush2.xpose.msra.mxu0 0.0
      %2746 = vmatprep.subr.mxu0 0.0
      %2747 = vmatpush2.xpose.msra.mxu0 0.0
      %2748 = vmatprep.subr.mxu0 0.0
      %2749 = vmatpush2.xpose.msra.mxu0 0.0
      %2750 = vmatprep.subr.mxu0 0.0
      %2751 = vmatpush2.xpose.msra.mxu0 0.0
      %2752 = vmatprep.subr.mxu0 0.0
      %2753 = vmatpush2.xpose.msra.mxu0 0.0
      %2754 = vmatprep.subr.mxu0 0.0
      %2755 = vmatpush2.xpose.msra.mxu0 0.0
      %2756 = vmatprep.subr.mxu0 0.0
      %2757 = vmatpush2.xpose.msra.mxu0 0.0
      %2758 = vmatprep.subr.mxu0 0.0
      %2759 = vmatpush2.xpose.msra.mxu0 0.0
      %2760 = vmatprep.subr.mxu0 0.0
      %2761 = vmatpush2.xpose.msra.mxu0 0.0
      %2762 = vmatprep.subr.mxu0 0.0
      %2763 = vmatpush2.xpose.msra.mxu0 0.0
      %2764 = vmatprep.subr.mxu0 0.0
      %2765 = vmatpush2.xpose.msra.mxu0 0.0
      %2766 = vmatprep.mubr.f32.mxu0 0.0
      %2767 = vmatmul.mubr.f32.gmra.mxu0 %v2694
      %v2768 = vpop.f32.mrf.mxu0
      %v2769 = vadd.f32 %v773, %v2768
      %v2770 = vpop.f32.mrf.mxu0
      %2771 = vmatprep.mubr.f32.mxu0 0.0
      %2772 = vmatmul.mubr.f32.gmra.mxu0 %v2696
      %v2773 = vpop.f32.mrf.mxu0
      %v2774 = vadd.f32 %v774, %v2773
      %v2775 = vpop.f32.mrf.mxu0
      %2776 = vdwg.mxu0
      %2779 = vrot.lane.b32.xlu0 %v2490, 112
      %v2780 = vpop.permute.xlu0 %2779
      %2781 = vrot.lane.b32.xlu0 %v2491, 112
      %v2782 = vpop.permute.xlu0 %2781
      %2785 = vrot.lane.b32.xlu0 %v2482, 80
      %v2786 = vpop.permute.xlu0 %2785
      %2787 = vrot.lane.b32.xlu0 %v2483, 80
      %v2788 = vpop.permute.xlu0 %2787
      %v2789 = vsel %vm799, %v2780, 0
      %v2791 = vsel %vm799, %v2782, 0
      %v2793 = vsel %vm799, %v2786, 0
      %v2795 = vsel %vm799, %v2788, 0
      %2797 = vmatprep.subr.mxu0 0.0
      %2798 = vmatpush1.xpose.msra.mxu0 0.0
      %2799 = vmatprep.subr.mxu0 0.0
      %2800 = vmatpush1.xpose.msra.mxu0 0.0
      %2801 = vmatprep.subr.mxu0 0.0
      %2802 = vmatpush1.xpose.msra.mxu0 0.0
      %2803 = vmatprep.subr.mxu0 0.0
      %2804 = vmatpush1.xpose.msra.mxu0 0.0
      %2805 = vmatprep.subr.mxu0 0.0
      %2806 = vmatpush1.xpose.msra.mxu0 0.0
      %2807 = vmatprep.subr.mxu0 0.0
      %2808 = vmatpush1.xpose.msra.mxu0 0.0
      %2809 = vmatprep.subr.mxu0 0.0
      %2810 = vmatpush1.xpose.msra.mxu0 0.0
      %2811 = vmatprep.subr.mxu0 0.0
      %2812 = vmatpush1.xpose.msra.mxu0 0.0
      %2813 = vmatprep.subr.mxu0 0.0
      %2814 = vmatpush1.xpose.msra.mxu0 0.0
      %2815 = vmatprep.subr.mxu0 0.0
      %2816 = vmatpush1.xpose.msra.mxu0 0.0
      %2817 = vmatprep.subr.mxu0 0.0
      %2818 = vmatpush1.xpose.msra.mxu0 0.0
      %2819 = vmatprep.subr.mxu0 0.0
      %2820 = vmatpush1.xpose.msra.mxu0 0.0
      %2821 = vmatprep.subr.mxu0 0.0
      %2822 = vmatpush1.xpose.msra.mxu0 0.0
      %2823 = vmatprep.subr.mxu0 0.0
      %2824 = vmatpush1.xpose.msra.mxu0 0.0
      %2825 = vmatprep.subr.mxu0 0.0
      %2826 = vmatpush1.xpose.msra.mxu0 %v2795
      %2827 = vmatprep.subr.mxu0 0.0
      %2828 = vmatpush1.xpose.msra.mxu0 %v2793
      %2829 = vmatprep.subr.mxu0 0.0
      %2830 = vmatpush2.xpose.msra.mxu0 0.0
      %2831 = vmatprep.subr.mxu0 0.0
      %2832 = vmatpush2.xpose.msra.mxu0 0.0
      %2833 = vmatprep.subr.mxu0 0.0
      %2834 = vmatpush2.xpose.msra.mxu0 0.0
      %2835 = vmatprep.subr.mxu0 0.0
      %2836 = vmatpush2.xpose.msra.mxu0 0.0
      %2837 = vmatprep.subr.mxu0 0.0
      %2838 = vmatpush2.xpose.msra.mxu0 0.0
      %2839 = vmatprep.subr.mxu0 0.0
      %2840 = vmatpush2.xpose.msra.mxu0 0.0
      %2841 = vmatprep.subr.mxu0 0.0
      %2842 = vmatpush2.xpose.msra.mxu0 0.0
      %2843 = vmatprep.subr.mxu0 0.0
      %2844 = vmatpush2.xpose.msra.mxu0 0.0
      %2845 = vmatprep.subr.mxu0 0.0
      %2846 = vmatpush2.xpose.msra.mxu0 0.0
      %2847 = vmatprep.subr.mxu0 0.0
      %2848 = vmatpush2.xpose.msra.mxu0 0.0
      %2849 = vmatprep.subr.mxu0 0.0
      %2850 = vmatpush2.xpose.msra.mxu0 0.0
      %2851 = vmatprep.subr.mxu0 0.0
      %2852 = vmatpush2.xpose.msra.mxu0 0.0
      %2853 = vmatprep.subr.mxu0 0.0
      %2854 = vmatpush2.xpose.msra.mxu0 0.0
      %2855 = vmatprep.subr.mxu0 0.0
      %2856 = vmatpush2.xpose.msra.mxu0 0.0
      %2857 = vmatprep.subr.mxu0 0.0
      %2858 = vmatpush2.xpose.msra.mxu0 0.0
      %2859 = vmatprep.subr.mxu0 0.0
      %2860 = vmatpush2.xpose.msra.mxu0 0.0
      %2861 = vmatprep.mubr.f32.mxu0 0.0
      %2862 = vmatmul.mubr.f32.gmra.mxu0 %v2789
      %v2863 = vpop.f32.mrf.mxu0
      %v2864 = vadd.f32 %v773, %v2863
      %v2865 = vpop.f32.mrf.mxu0
      %2866 = vmatprep.mubr.f32.mxu0 0.0
      %2867 = vmatmul.mubr.f32.gmra.mxu0 %v2791
      %v2868 = vpop.f32.mrf.mxu0
      %v2869 = vadd.f32 %v774, %v2868
      %v2870 = vpop.f32.mrf.mxu0
      %2871 = vdwg.mxu0
      %v2872 = vsel %vm1158, %v2579, -inf
      %2873 = vmax.xlane.f32.xlu0 %v2872
      %v2874 = vpop.xlane.xlu0 %2873
      %v2875 = vsel %vm1158, %v2584, -inf
      %2876 = vmax.xlane.f32.xlu0 %v2875
      %v2877 = vpop.xlane.xlu0 %2876
      %v2878 = vsel %vm1158, %v2674, -inf
      %2879 = vmax.xlane.f32.xlu0 %v2878
      %v2880 = vpop.xlane.xlu0 %2879
      %v2881 = vsel %vm1158, %v2679, -inf
      %2882 = vmax.xlane.f32.xlu0 %v2881
      %v2883 = vpop.xlane.xlu0 %2882
      %v2884 = vsel %vm1158, %v2769, -inf
      %2885 = vmax.xlane.f32.xlu0 %v2884
      %v2886 = vpop.xlane.xlu0 %2885
      %v2887 = vsel %vm1158, %v2774, -inf
      %2888 = vmax.xlane.f32.xlu0 %v2887
      %v2889 = vpop.xlane.xlu0 %2888
      %v2890 = vsel %vm1158, %v2864, -inf
      %2891 = vmax.xlane.f32.xlu0 %v2890
      %v2892 = vpop.xlane.xlu0 %2891
      %v2893 = vsel %vm1158, %v2869, -inf
      %2894 = vmax.xlane.f32.xlu0 %v2893
      %v2895 = vpop.xlane.xlu0 %2894
      %v2896 = vsub.f32 %v2579, %v2874
      %v2897 = vsub.f32 %v2584, %v2877
      %v2898 = vsub.f32 %v2674, %v2880
      %v2899 = vsub.f32 %v2679, %v2883
      %v2900 = vsub.f32 %v2769, %v2886
      %v2901 = vsub.f32 %v2774, %v2889
      %v2902 = vsub.f32 %v2864, %v2892
      %v2903 = vsub.f32 %v2869, %v2895
      %v2904 = vmul.f32 %v2896, 1.442695
      %v2905 = vpow.pop %v2904
      %v2906 = vmul.f32 %v2897, 1.442695
      %v2907 = vpow.pop %v2906
      %v2908 = vmul.f32 %v2898, 1.442695
      %v2909 = vpow.pop %v2908
      %v2910 = vmul.f32 %v2899, 1.442695
      %v2911 = vpow.pop %v2910
      %v2912 = vmul.f32 %v2900, 1.442695
      %v2913 = vpow.pop %v2912
      %v2914 = vmul.f32 %v2901, 1.442695
      %v2915 = vpow.pop %v2914
      %v2916 = vmul.f32 %v2902, 1.442695
      %v2917 = vpow.pop %v2916
      %v2918 = vmul.f32 %v2903, 1.442695
      %v2919 = vpow.pop %v2918
      %v2920 = vsel %vm1158, %v2905, 0.0
      %2921 = vadd.xlane.f32.xlu0 %v2920
      %v2922 = vpop.xlane.xlu0 %2921
      %v2923 = vsel %vm1158, %v2907, 0.0
      %2924 = vadd.xlane.f32.xlu0 %v2923
      %v2925 = vpop.xlane.xlu0 %2924
      %v2926 = vsel %vm1158, %v2909, 0.0
      %2927 = vadd.xlane.f32.xlu0 %v2926
      %v2928 = vpop.xlane.xlu0 %2927
      %v2929 = vsel %vm1158, %v2911, 0.0
      %2930 = vadd.xlane.f32.xlu0 %v2929
      %v2931 = vpop.xlane.xlu0 %2930
      %v2932 = vsel %vm1158, %v2913, 0.0
      %2933 = vadd.xlane.f32.xlu0 %v2932
      %v2934 = vpop.xlane.xlu0 %2933
      %v2935 = vsel %vm1158, %v2915, 0.0
      %2936 = vadd.xlane.f32.xlu0 %v2935
      %v2937 = vpop.xlane.xlu0 %2936
      %v2938 = vsel %vm1158, %v2917, 0.0
      %2939 = vadd.xlane.f32.xlu0 %v2938
      %v2940 = vpop.xlane.xlu0 %2939
      %v2941 = vsel %vm1158, %v2919, 0.0
      %2942 = vadd.xlane.f32.xlu0 %v2941
      %v2943 = vpop.xlane.xlu0 %2942
      %v2944 = vrcp.pop %v2922
      %v2945 = vrcp.pop %v2925
      %v2946 = vrcp.pop %v2928
      %v2947 = vrcp.pop %v2931
      %v2948 = vrcp.pop %v2934
      %v2949 = vrcp.pop %v2937
      %v2950 = vrcp.pop %v2940
      %v2951 = vrcp.pop %v2943
      %v2952 = vmul.f32 %v2905, %v2944
      %v2953 = vmul.f32 %v2907, %v2945
      %v2954 = vmul.f32 %v2909, %v2946
      %v2955 = vmul.f32 %v2911, %v2947
      %v2956 = vmul.f32 %v2913, %v2948
      %v2957 = vmul.f32 %v2915, %v2949
      %v2958 = vmul.f32 %v2917, %v2950
      %v2959 = vmul.f32 %v2919, %v2951
      %2960 = vrot.lane.b32.xlu0 %v2476, 48
      %v2961 = vpop.permute.xlu0 %2960
      %2962 = vrot.lane.b32.xlu0 %v2477, 48
      %v2963 = vpop.permute.xlu0 %2962
      %v2967 = vsel %vm1158, %v2952, 0
      %v2970 = vsel %vm1158, %v2953, 0
      %2972 = vmatprep.subr.mxu0 0.0
      %2973 = vmatpush1.msra.mxu0 0.0
      %2974 = vmatprep.subr.mxu0 0.0
      %2975 = vmatpush1.msra.mxu0 0.0
      %2976 = vmatprep.subr.mxu0 0.0
      %2977 = vmatpush1.msra.mxu0 0.0
      %2978 = vmatprep.subr.mxu0 0.0
      %2979 = vmatpush1.msra.mxu0 0.0
      %2980 = vmatprep.subr.mxu0 0.0
      %2981 = vmatpush1.msra.mxu0 0.0
      %2982 = vmatprep.subr.mxu0 0.0
      %2983 = vmatpush1.msra.mxu0 0.0
      %2984 = vmatprep.subr.mxu0 0.0
      %2985 = vmatpush1.msra.mxu0 0.0
      %2986 = vmatprep.subr.mxu0 0.0
      %2987 = vmatpush1.msra.mxu0 0.0
      %2988 = vmatprep.subr.mxu0 0.0
      %2989 = vmatpush1.msra.mxu0 0.0
      %2990 = vmatprep.subr.mxu0 0.0
      %2991 = vmatpush1.msra.mxu0 0.0
      %2992 = vmatprep.subr.mxu0 0.0
      %2993 = vmatpush1.msra.mxu0 0.0
      %2994 = vmatprep.subr.mxu0 0.0
      %2995 = vmatpush1.msra.mxu0 0.0
      %2996 = vmatprep.subr.mxu0 0.0
      %2997 = vmatpush1.msra.mxu0 0.0
      %2998 = vmatprep.subr.mxu0 0.0
      %2999 = vmatpush1.msra.mxu0 0.0
      %3000 = vmatprep.subr.mxu0 0.0
      %3001 = vmatpush1.msra.mxu0 %v2963
      %3002 = vmatprep.subr.mxu0 0.0
      %3003 = vmatpush1.msra.mxu0 %v2961
      %3004 = vmatprep.subr.mxu0 0.0
      %3005 = vmatpush2.msra.mxu0 0.0
      %3006 = vmatprep.subr.mxu0 0.0
      %3007 = vmatpush2.msra.mxu0 0.0
      %3008 = vmatprep.subr.mxu0 0.0
      %3009 = vmatpush2.msra.mxu0 0.0
      %3010 = vmatprep.subr.mxu0 0.0
      %3011 = vmatpush2.msra.mxu0 0.0
      %3012 = vmatprep.subr.mxu0 0.0
      %3013 = vmatpush2.msra.mxu0 0.0
      %3014 = vmatprep.subr.mxu0 0.0
      %3015 = vmatpush2.msra.mxu0 0.0
      %3016 = vmatprep.subr.mxu0 0.0
      %3017 = vmatpush2.msra.mxu0 0.0
      %3018 = vmatprep.subr.mxu0 0.0
      %3019 = vmatpush2.msra.mxu0 0.0
      %3020 = vmatprep.subr.mxu0 0.0
      %3021 = vmatpush2.msra.mxu0 0.0
      %3022 = vmatprep.subr.mxu0 0.0
      %3023 = vmatpush2.msra.mxu0 0.0
      %3024 = vmatprep.subr.mxu0 0.0
      %3025 = vmatpush2.msra.mxu0 0.0
      %3026 = vmatprep.subr.mxu0 0.0
      %3027 = vmatpush2.msra.mxu0 0.0
      %3028 = vmatprep.subr.mxu0 0.0
      %3029 = vmatpush2.msra.mxu0 0.0
      %3030 = vmatprep.subr.mxu0 0.0
      %3031 = vmatpush2.msra.mxu0 0.0
      %3032 = vmatprep.subr.mxu0 0.0
      %3033 = vmatpush2.msra.mxu0 0.0
      %3034 = vmatprep.subr.mxu0 0.0
      %3035 = vmatpush2.msra.mxu0 0.0
      %3036 = vmatprep.mubr.f32.mxu0 0.0
      %3037 = vmatmul.mubr.f32.gmra.mxu0 %v2967
      %v3038 = vpop.f32.mrf.mxu0
      %v3039 = vadd.f32 0.0, %v3038
      %v3040 = vpop.f32.mrf.mxu0
      %3041 = vmatprep.mubr.f32.mxu0 0.0
      %3042 = vmatmul.mubr.f32.gmra.mxu0 %v2970
      %v3043 = vpop.f32.mrf.mxu0
      %v3044 = vadd.f32 0.0, %v3043
      %v3045 = vpop.f32.mrf.mxu0
      %3046 = vdwg.mxu0
      %3047 = vrot.lane.b32.xlu0 %v2478, 48
      %v3048 = vpop.permute.xlu0 %3047
      %3049 = vrot.lane.b32.xlu0 %v2479, 48
      %v3050 = vpop.permute.xlu0 %3049
      %v3054 = vsel %vm1158, %v2954, 0
      %v3057 = vsel %vm1158, %v2955, 0
      %3059 = vmatprep.subr.mxu0 0.0
      %3060 = vmatpush1.msra.mxu0 0.0
      %3061 = vmatprep.subr.mxu0 0.0
      %3062 = vmatpush1.msra.mxu0 0.0
      %3063 = vmatprep.subr.mxu0 0.0
      %3064 = vmatpush1.msra.mxu0 0.0
      %3065 = vmatprep.subr.mxu0 0.0
      %3066 = vmatpush1.msra.mxu0 0.0
      %3067 = vmatprep.subr.mxu0 0.0
      %3068 = vmatpush1.msra.mxu0 0.0
      %3069 = vmatprep.subr.mxu0 0.0
      %3070 = vmatpush1.msra.mxu0 0.0
      %3071 = vmatprep.subr.mxu0 0.0
      %3072 = vmatpush1.msra.mxu0 0.0
      %3073 = vmatprep.subr.mxu0 0.0
      %3074 = vmatpush1.msra.mxu0 0.0
      %3075 = vmatprep.subr.mxu0 0.0
      %3076 = vmatpush1.msra.mxu0 0.0
      %3077 = vmatprep.subr.mxu0 0.0
      %3078 = vmatpush1.msra.mxu0 0.0
      %3079 = vmatprep.subr.mxu0 0.0
      %3080 = vmatpush1.msra.mxu0 0.0
      %3081 = vmatprep.subr.mxu0 0.0
      %3082 = vmatpush1.msra.mxu0 0.0
      %3083 = vmatprep.subr.mxu0 0.0
      %3084 = vmatpush1.msra.mxu0 0.0
      %3085 = vmatprep.subr.mxu0 0.0
      %3086 = vmatpush1.msra.mxu0 0.0
      %3087 = vmatprep.subr.mxu0 0.0
      %3088 = vmatpush1.msra.mxu0 %v3050
      %3089 = vmatprep.subr.mxu0 0.0
      %3090 = vmatpush1.msra.mxu0 %v3048
      %3091 = vmatprep.subr.mxu0 0.0
      %3092 = vmatpush2.msra.mxu0 0.0
      %3093 = vmatprep.subr.mxu0 0.0
      %3094 = vmatpush2.msra.mxu0 0.0
      %3095 = vmatprep.subr.mxu0 0.0
      %3096 = vmatpush2.msra.mxu0 0.0
      %3097 = vmatprep.subr.mxu0 0.0
      %3098 = vmatpush2.msra.mxu0 0.0
      %3099 = vmatprep.subr.mxu0 0.0
      %3100 = vmatpush2.msra.mxu0 0.0
      %3101 = vmatprep.subr.mxu0 0.0
      %3102 = vmatpush2.msra.mxu0 0.0
      %3103 = vmatprep.subr.mxu0 0.0
      %3104 = vmatpush2.msra.mxu0 0.0
      %3105 = vmatprep.subr.mxu0 0.0
      %3106 = vmatpush2.msra.mxu0 0.0
      %3107 = vmatprep.subr.mxu0 0.0
      %3108 = vmatpush2.msra.mxu0 0.0
      %3109 = vmatprep.subr.mxu0 0.0
      %3110 = vmatpush2.msra.mxu0 0.0
      %3111 = vmatprep.subr.mxu0 0.0
      %3112 = vmatpush2.msra.mxu0 0.0
      %3113 = vmatprep.subr.mxu0 0.0
      %3114 = vmatpush2.msra.mxu0 0.0
      %3115 = vmatprep.subr.mxu0 0.0
      %3116 = vmatpush2.msra.mxu0 0.0
      %3117 = vmatprep.subr.mxu0 0.0
      %3118 = vmatpush2.msra.mxu0 0.0
      %3119 = vmatprep.subr.mxu0 0.0
      %3120 = vmatpush2.msra.mxu0 0.0
      %3121 = vmatprep.subr.mxu0 0.0
      %3122 = vmatpush2.msra.mxu0 0.0
      %3123 = vmatprep.mubr.f32.mxu0 0.0
      %3124 = vmatmul.mubr.f32.gmra.mxu0 %v3054
      %v3125 = vpop.f32.mrf.mxu0
      %v3126 = vadd.f32 0.0, %v3125
      %v3127 = vpop.f32.mrf.mxu0
      %3128 = vmatprep.mubr.f32.mxu0 0.0
      %3129 = vmatmul.mubr.f32.gmra.mxu0 %v3057
      %v3130 = vpop.f32.mrf.mxu0
      %v3131 = vadd.f32 0.0, %v3130
      %v3132 = vpop.f32.mrf.mxu0
      %3133 = vdwg.mxu0
      %3134 = vrot.lane.b32.xlu0 %v2480, 48
      %v3135 = vpop.permute.xlu0 %3134
      %3136 = vrot.lane.b32.xlu0 %v2481, 48
      %v3137 = vpop.permute.xlu0 %3136
      %v3141 = vsel %vm1158, %v2956, 0
      %v3144 = vsel %vm1158, %v2957, 0
      %3146 = vmatprep.subr.mxu0 0.0
      %3147 = vmatpush1.msra.mxu0 0.0
      %3148 = vmatprep.subr.mxu0 0.0
      %3149 = vmatpush1.msra.mxu0 0.0
      %3150 = vmatprep.subr.mxu0 0.0
      %3151 = vmatpush1.msra.mxu0 0.0
      %3152 = vmatprep.subr.mxu0 0.0
      %3153 = vmatpush1.msra.mxu0 0.0
      %3154 = vmatprep.subr.mxu0 0.0
      %3155 = vmatpush1.msra.mxu0 0.0
      %3156 = vmatprep.subr.mxu0 0.0
      %3157 = vmatpush1.msra.mxu0 0.0
      %3158 = vmatprep.subr.mxu0 0.0
      %3159 = vmatpush1.msra.mxu0 0.0
      %3160 = vmatprep.subr.mxu0 0.0
      %3161 = vmatpush1.msra.mxu0 0.0
      %3162 = vmatprep.subr.mxu0 0.0
      %3163 = vmatpush1.msra.mxu0 0.0
      %3164 = vmatprep.subr.mxu0 0.0
      %3165 = vmatpush1.msra.mxu0 0.0
      %3166 = vmatprep.subr.mxu0 0.0
      %3167 = vmatpush1.msra.mxu0 0.0
      %3168 = vmatprep.subr.mxu0 0.0
      %3169 = vmatpush1.msra.mxu0 0.0
      %3170 = vmatprep.subr.mxu0 0.0
      %3171 = vmatpush1.msra.mxu0 0.0
      %3172 = vmatprep.subr.mxu0 0.0
      %3173 = vmatpush1.msra.mxu0 0.0
      %3174 = vmatprep.subr.mxu0 0.0
      %3175 = vmatpush1.msra.mxu0 %v3137
      %3176 = vmatprep.subr.mxu0 0.0
      %3177 = vmatpush1.msra.mxu0 %v3135
      %3178 = vmatprep.subr.mxu0 0.0
      %3179 = vmatpush2.msra.mxu0 0.0
      %3180 = vmatprep.subr.mxu0 0.0
      %3181 = vmatpush2.msra.mxu0 0.0
      %3182 = vmatprep.subr.mxu0 0.0
      %3183 = vmatpush2.msra.mxu0 0.0
      %3184 = vmatprep.subr.mxu0 0.0
      %3185 = vmatpush2.msra.mxu0 0.0
      %3186 = vmatprep.subr.mxu0 0.0
      %3187 = vmatpush2.msra.mxu0 0.0
      %3188 = vmatprep.subr.mxu0 0.0
      %3189 = vmatpush2.msra.mxu0 0.0
      %3190 = vmatprep.subr.mxu0 0.0
      %3191 = vmatpush2.msra.mxu0 0.0
      %3192 = vmatprep.subr.mxu0 0.0
      %3193 = vmatpush2.msra.mxu0 0.0
      %3194 = vmatprep.subr.mxu0 0.0
      %3195 = vmatpush2.msra.mxu0 0.0
      %3196 = vmatprep.subr.mxu0 0.0
      %3197 = vmatpush2.msra.mxu0 0.0
      %3198 = vmatprep.subr.mxu0 0.0
      %3199 = vmatpush2.msra.mxu0 0.0
      %3200 = vmatprep.subr.mxu0 0.0
      %3201 = vmatpush2.msra.mxu0 0.0
      %3202 = vmatprep.subr.mxu0 0.0
      %3203 = vmatpush2.msra.mxu0 0.0
      %3204 = vmatprep.subr.mxu0 0.0
      %3205 = vmatpush2.msra.mxu0 0.0
      %3206 = vmatprep.subr.mxu0 0.0
      %3207 = vmatpush2.msra.mxu0 0.0
      %3208 = vmatprep.subr.mxu0 0.0
      %3209 = vmatpush2.msra.mxu0 0.0
      %3210 = vmatprep.mubr.f32.mxu0 0.0
      %3211 = vmatmul.mubr.f32.gmra.mxu0 %v3141
      %v3212 = vpop.f32.mrf.mxu0
      %v3213 = vadd.f32 0.0, %v3212
      %v3214 = vpop.f32.mrf.mxu0
      %3215 = vmatprep.mubr.f32.mxu0 0.0
      %3216 = vmatmul.mubr.f32.gmra.mxu0 %v3144
      %v3217 = vpop.f32.mrf.mxu0
      %v3218 = vadd.f32 0.0, %v3217
      %v3219 = vpop.f32.mrf.mxu0
      %3220 = vdwg.mxu0
      %3221 = vrot.lane.b32.xlu0 %v2482, 48
      %v3222 = vpop.permute.xlu0 %3221
      %3223 = vrot.lane.b32.xlu0 %v2483, 48
      %v3224 = vpop.permute.xlu0 %3223
      %v3228 = vsel %vm1158, %v2958, 0
      %v3231 = vsel %vm1158, %v2959, 0
      %3233 = vmatprep.subr.mxu0 0.0
      %3234 = vmatpush1.msra.mxu0 0.0
      %3235 = vmatprep.subr.mxu0 0.0
      %3236 = vmatpush1.msra.mxu0 0.0
      %3237 = vmatprep.subr.mxu0 0.0
      %3238 = vmatpush1.msra.mxu0 0.0
      %3239 = vmatprep.subr.mxu0 0.0
      %3240 = vmatpush1.msra.mxu0 0.0
      %3241 = vmatprep.subr.mxu0 0.0
      %3242 = vmatpush1.msra.mxu0 0.0
      %3243 = vmatprep.subr.mxu0 0.0
      %3244 = vmatpush1.msra.mxu0 0.0
      %3245 = vmatprep.subr.mxu0 0.0
      %3246 = vmatpush1.msra.mxu0 0.0
      %3247 = vmatprep.subr.mxu0 0.0
      %3248 = vmatpush1.msra.mxu0 0.0
      %3249 = vmatprep.subr.mxu0 0.0
      %3250 = vmatpush1.msra.mxu0 0.0
      %3251 = vmatprep.subr.mxu0 0.0
      %3252 = vmatpush1.msra.mxu0 0.0
      %3253 = vmatprep.subr.mxu0 0.0
      %3254 = vmatpush1.msra.mxu0 0.0
      %3255 = vmatprep.subr.mxu0 0.0
      %3256 = vmatpush1.msra.mxu0 0.0
      %3257 = vmatprep.subr.mxu0 0.0
      %3258 = vmatpush1.msra.mxu0 0.0
      %3259 = vmatprep.subr.mxu0 0.0
      %3260 = vmatpush1.msra.mxu0 0.0
      %3261 = vmatprep.subr.mxu0 0.0
      %3262 = vmatpush1.msra.mxu0 %v3224
      %3263 = vmatprep.subr.mxu0 0.0
      %3264 = vmatpush1.msra.mxu0 %v3222
      %3265 = vmatprep.subr.mxu0 0.0
      %3266 = vmatpush2.msra.mxu0 0.0
      %3267 = vmatprep.subr.mxu0 0.0
      %3268 = vmatpush2.msra.mxu0 0.0
      %3269 = vmatprep.subr.mxu0 0.0
      %3270 = vmatpush2.msra.mxu0 0.0
      %3271 = vmatprep.subr.mxu0 0.0
      %3272 = vmatpush2.msra.mxu0 0.0
      %3273 = vmatprep.subr.mxu0 0.0
      %3274 = vmatpush2.msra.mxu0 0.0
      %3275 = vmatprep.subr.mxu0 0.0
      %3276 = vmatpush2.msra.mxu0 0.0
      %3277 = vmatprep.subr.mxu0 0.0
      %3278 = vmatpush2.msra.mxu0 0.0
      %3279 = vmatprep.subr.mxu0 0.0
      %3280 = vmatpush2.msra.mxu0 0.0
      %3281 = vmatprep.subr.mxu0 0.0
      %3282 = vmatpush2.msra.mxu0 0.0
      %3283 = vmatprep.subr.mxu0 0.0
      %3284 = vmatpush2.msra.mxu0 0.0
      %3285 = vmatprep.subr.mxu0 0.0
      %3286 = vmatpush2.msra.mxu0 0.0
      %3287 = vmatprep.subr.mxu0 0.0
      %3288 = vmatpush2.msra.mxu0 0.0
      %3289 = vmatprep.subr.mxu0 0.0
      %3290 = vmatpush2.msra.mxu0 0.0
      %3291 = vmatprep.subr.mxu0 0.0
      %3292 = vmatpush2.msra.mxu0 0.0
      %3293 = vmatprep.subr.mxu0 0.0
      %3294 = vmatpush2.msra.mxu0 0.0
      %3295 = vmatprep.subr.mxu0 0.0
      %3296 = vmatpush2.msra.mxu0 0.0
      %3297 = vmatprep.mubr.f32.mxu0 0.0
      %3298 = vmatmul.mubr.f32.gmra.mxu0 %v3228
      %v3299 = vpop.f32.mrf.mxu0
      %v3300 = vadd.f32 0.0, %v3299
      %v3301 = vpop.f32.mrf.mxu0
      %3302 = vmatprep.mubr.f32.mxu0 0.0
      %3303 = vmatmul.mubr.f32.gmra.mxu0 %v3231
      %v3304 = vpop.f32.mrf.mxu0
      %v3305 = vadd.f32 0.0, %v3304
      %v3306 = vpop.f32.mrf.mxu0
      %3307 = vdwg.mxu0
      %3316 = vrot.lane.b32.xlu0 %v3039, 16
      %v3317 = vpop.permute.xlu0 %3316
      %3318 = vrot.lane.b32.xlu0 %v3044, 16
      %v3319 = vpop.permute.xlu0 %3318
      %3320 = vrot.lane.b32.xlu0 %v3126, 16
      %v3321 = vpop.permute.xlu0 %3320
      %3322 = vrot.lane.b32.xlu0 %v3131, 16
      %v3323 = vpop.permute.xlu0 %3322
      %3324 = vrot.lane.b32.xlu0 %v3213, 16
      %v3325 = vpop.permute.xlu0 %3324
      %3326 = vrot.lane.b32.xlu0 %v3218, 16
      %v3327 = vpop.permute.xlu0 %3326
      %3328 = vrot.lane.b32.xlu0 %v3300, 16
      %v3329 = vpop.permute.xlu0 %3328
      %3330 = vrot.lane.b32.xlu0 %v3305, 16
      %v3331 = vpop.permute.xlu0 %3330
      %vm3340 = vcmask 195712
      %3341 = vst.msk [vmem:[#allocation3] sm:$0xff] %vm3340, %v3317
      %3342 = vst.msk [vmem:[#allocation3 + $0x8] sm:$0xff] %vm3340, %v3319
      %3343 = vst.msk [vmem:[#allocation3 + $0x10] sm:$0xff] %vm3340, %v3321
      %3344 = vst.msk [vmem:[#allocation3 + $0x18] sm:$0xff] %vm3340, %v3323
      %3345 = vst.msk [vmem:[#allocation3 + $0x20] sm:$0xff] %vm3340, %v3325
      %3346 = vst.msk [vmem:[#allocation3 + $0x28] sm:$0xff] %vm3340, %v3327
      %3347 = vst.msk [vmem:[#allocation3 + $0x30] sm:$0xff] %vm3340, %v3329
      %3348 = vst.msk [vmem:[#allocation3 + $0x38] sm:$0xff] %vm3340, %v3331
      %v3349 = vld [vmem:[#allocation2] sm:$0xff]
      %v3350 = vld [vmem:[#allocation2 + $0x8] sm:$0xff]
      %v3351 = vld [vmem:[#allocation2 + $0x10] sm:$0xff]
      %v3352 = vld [vmem:[#allocation2 + $0x18] sm:$0xff]
      %v3353 = vld [vmem:[#allocation2 + $0x20] sm:$0xff]
      %v3354 = vld [vmem:[#allocation2 + $0x28] sm:$0xff]
      %v3355 = vld [vmem:[#allocation2 + $0x30] sm:$0xff]
      %v3356 = vld [vmem:[#allocation2 + $0x38] sm:$0xff]
      %v3357 = vmul.f32 %v3349, 0.35355338
      %v3358 = vmul.f32 %v3350, 0.35355338
      %v3359 = vmul.f32 %v3351, 0.35355338
      %v3360 = vmul.f32 %v3352, 0.35355338
      %v3361 = vmul.f32 %v3353, 0.35355338
      %v3362 = vmul.f32 %v3354, 0.35355338
      %v3363 = vmul.f32 %v3355, 0.35355338
      %v3364 = vmul.f32 %v3356, 0.35355338
      %3367 = vrot.lane.b32.xlu0 %v3357, 104
      %v3368 = vpop.permute.xlu0 %3367
      %3369 = vrot.lane.b32.xlu0 %v3358, 104
      %v3370 = vpop.permute.xlu0 %3369
      %3373 = vrot.lane.b32.xlu0 %v3349, 72
      %v3374 = vpop.permute.xlu0 %3373
      %3375 = vrot.lane.b32.xlu0 %v3350, 72
      %v3376 = vpop.permute.xlu0 %3375
      %v3377 = vsel %vm799, %v3368, 0
      %v3379 = vsel %vm799, %v3370, 0
      %v3381 = vsel %vm799, %v3374, 0
      %v3383 = vsel %vm799, %v3376, 0
      %3385 = vmatprep.subr.mxu0 0.0
      %3386 = vmatpush1.xpose.msra.mxu0 0.0
      %3387 = vmatprep.subr.mxu0 0.0
      %3388 = vmatpush1.xpose.msra.mxu0 0.0
      %3389 = vmatprep.subr.mxu0 0.0
      %3390 = vmatpush1.xpose.msra.mxu0 0.0
      %3391 = vmatprep.subr.mxu0 0.0
      %3392 = vmatpush1.xpose.msra.mxu0 0.0
      %3393 = vmatprep.subr.mxu0 0.0
      %3394 = vmatpush1.xpose.msra.mxu0 0.0
      %3395 = vmatprep.subr.mxu0 0.0
      %3396 = vmatpush1.xpose.msra.mxu0 0.0
      %3397 = vmatprep.subr.mxu0 0.0
      %3398 = vmatpush1.xpose.msra.mxu0 0.0
      %3399 = vmatprep.subr.mxu0 0.0
      %3400 = vmatpush1.xpose.msra.mxu0 0.0
      %3401 = vmatprep.subr.mxu0 0.0
      %3402 = vmatpush1.xpose.msra.mxu0 0.0
      %3403 = vmatprep.subr.mxu0 0.0
      %3404 = vmatpush1.xpose.msra.mxu0 0.0
      %3405 = vmatprep.subr.mxu0 0.0
      %3406 = vmatpush1.xpose.msra.mxu0 0.0
      %3407 = vmatprep.subr.mxu0 0.0
      %3408 = vmatpush1.xpose.msra.mxu0 0.0
      %3409 = vmatprep.subr.mxu0 0.0
      %3410 = vmatpush1.xpose.msra.mxu0 0.0
      %3411 = vmatprep.subr.mxu0 0.0
      %3412 = vmatpush1.xpose.msra.mxu0 0.0
      %3413 = vmatprep.subr.mxu0 0.0
      %3414 = vmatpush1.xpose.msra.mxu0 %v3383
      %3415 = vmatprep.subr.mxu0 0.0
      %3416 = vmatpush1.xpose.msra.mxu0 %v3381
      %3417 = vmatprep.subr.mxu0 0.0
      %3418 = vmatpush2.xpose.msra.mxu0 0.0
      %3419 = vmatprep.subr.mxu0 0.0
      %3420 = vmatpush2.xpose.msra.mxu0 0.0
      %3421 = vmatprep.subr.mxu0 0.0
      %3422 = vmatpush2.xpose.msra.mxu0 0.0
      %3423 = vmatprep.subr.mxu0 0.0
      %3424 = vmatpush2.xpose.msra.mxu0 0.0
      %3425 = vmatprep.subr.mxu0 0.0
      %3426 = vmatpush2.xpose.msra.mxu0 0.0
      %3427 = vmatprep.subr.mxu0 0.0
      %3428 = vmatpush2.xpose.msra.mxu0 0.0
      %3429 = vmatprep.subr.mxu0 0.0
      %3430 = vmatpush2.xpose.msra.mxu0 0.0
      %3431 = vmatprep.subr.mxu0 0.0
      %3432 = vmatpush2.xpose.msra.mxu0 0.0
      %3433 = vmatprep.subr.mxu0 0.0
      %3434 = vmatpush2.xpose.msra.mxu0 0.0
      %3435 = vmatprep.subr.mxu0 0.0
      %3436 = vmatpush2.xpose.msra.mxu0 0.0
      %3437 = vmatprep.subr.mxu0 0.0
      %3438 = vmatpush2.xpose.msra.mxu0 0.0
      %3439 = vmatprep.subr.mxu0 0.0
      %3440 = vmatpush2.xpose.msra.mxu0 0.0
      %3441 = vmatprep.subr.mxu0 0.0
      %3442 = vmatpush2.xpose.msra.mxu0 0.0
      %3443 = vmatprep.subr.mxu0 0.0
      %3444 = vmatpush2.xpose.msra.mxu0 0.0
      %3445 = vmatprep.subr.mxu0 0.0
      %3446 = vmatpush2.xpose.msra.mxu0 0.0
      %3447 = vmatprep.subr.mxu0 0.0
      %3448 = vmatpush2.xpose.msra.mxu0 0.0
      %3449 = vmatprep.mubr.f32.mxu0 0.0
      %3450 = vmatmul.mubr.f32.gmra.mxu0 %v3377
      %v3451 = vpop.f32.mrf.mxu0
      %v3452 = vadd.f32 %v775, %v3451
      %v3453 = vpop.f32.mrf.mxu0
      %3454 = vmatprep.mubr.f32.mxu0 0.0
      %3455 = vmatmul.mubr.f32.gmra.mxu0 %v3379
      %v3456 = vpop.f32.mrf.mxu0
      %v3457 = vadd.f32 %v776, %v3456
      %v3458 = vpop.f32.mrf.mxu0
      %3459 = vdwg.mxu0
      %3462 = vrot.lane.b32.xlu0 %v3359, 104
      %v3463 = vpop.permute.xlu0 %3462
      %3464 = vrot.lane.b32.xlu0 %v3360, 104
      %v3465 = vpop.permute.xlu0 %3464
      %3468 = vrot.lane.b32.xlu0 %v3351, 72
      %v3469 = vpop.permute.xlu0 %3468
      %3470 = vrot.lane.b32.xlu0 %v3352, 72
      %v3471 = vpop.permute.xlu0 %3470
      %v3472 = vsel %vm799, %v3463, 0
      %v3474 = vsel %vm799, %v3465, 0
      %v3476 = vsel %vm799, %v3469, 0
      %v3478 = vsel %vm799, %v3471, 0
      %3480 = vmatprep.subr.mxu0 0.0
      %3481 = vmatpush1.xpose.msra.mxu0 0.0
      %3482 = vmatprep.subr.mxu0 0.0
      %3483 = vmatpush1.xpose.msra.mxu0 0.0
      %3484 = vmatprep.subr.mxu0 0.0
      %3485 = vmatpush1.xpose.msra.mxu0 0.0
      %3486 = vmatprep.subr.mxu0 0.0
      %3487 = vmatpush1.xpose.msra.mxu0 0.0
      %3488 = vmatprep.subr.mxu0 0.0
      %3489 = vmatpush1.xpose.msra.mxu0 0.0
      %3490 = vmatprep.subr.mxu0 0.0
      %3491 = vmatpush1.xpose.msra.mxu0 0.0
      %3492 = vmatprep.subr.mxu0 0.0
      %3493 = vmatpush1.xpose.msra.mxu0 0.0
      %3494 = vmatprep.subr.mxu0 0.0
      %3495 = vmatpush1.xpose.msra.mxu0 0.0
      %3496 = vmatprep.subr.mxu0 0.0
      %3497 = vmatpush1.xpose.msra.mxu0 0.0
      %3498 = vmatprep.subr.mxu0 0.0
      %3499 = vmatpush1.xpose.msra.mxu0 0.0
      %3500 = vmatprep.subr.mxu0 0.0
      %3501 = vmatpush1.xpose.msra.mxu0 0.0
      %3502 = vmatprep.subr.mxu0 0.0
      %3503 = vmatpush1.xpose.msra.mxu0 0.0
      %3504 = vmatprep.subr.mxu0 0.0
      %3505 = vmatpush1.xpose.msra.mxu0 0.0
      %3506 = vmatprep.subr.mxu0 0.0
      %3507 = vmatpush1.xpose.msra.mxu0 0.0
      %3508 = vmatprep.subr.mxu0 0.0
      %3509 = vmatpush1.xpose.msra.mxu0 %v3478
      %3510 = vmatprep.subr.mxu0 0.0
      %3511 = vmatpush1.xpose.msra.mxu0 %v3476
      %3512 = vmatprep.subr.mxu0 0.0
      %3513 = vmatpush2.xpose.msra.mxu0 0.0
      %3514 = vmatprep.subr.mxu0 0.0
      %3515 = vmatpush2.xpose.msra.mxu0 0.0
      %3516 = vmatprep.subr.mxu0 0.0
      %3517 = vmatpush2.xpose.msra.mxu0 0.0
      %3518 = vmatprep.subr.mxu0 0.0
      %3519 = vmatpush2.xpose.msra.mxu0 0.0
      %3520 = vmatprep.subr.mxu0 0.0
      %3521 = vmatpush2.xpose.msra.mxu0 0.0
      %3522 = vmatprep.subr.mxu0 0.0
      %3523 = vmatpush2.xpose.msra.mxu0 0.0
      %3524 = vmatprep.subr.mxu0 0.0
      %3525 = vmatpush2.xpose.msra.mxu0 0.0
      %3526 = vmatprep.subr.mxu0 0.0
      %3527 = vmatpush2.xpose.msra.mxu0 0.0
      %3528 = vmatprep.subr.mxu0 0.0
      %3529 = vmatpush2.xpose.msra.mxu0 0.0
      %3530 = vmatprep.subr.mxu0 0.0
      %3531 = vmatpush2.xpose.msra.mxu0 0.0
      %3532 = vmatprep.subr.mxu0 0.0
      %3533 = vmatpush2.xpose.msra.mxu0 0.0
      %3534 = vmatprep.subr.mxu0 0.0
      %3535 = vmatpush2.xpose.msra.mxu0 0.0
      %3536 = vmatprep.subr.mxu0 0.0
      %3537 = vmatpush2.xpose.msra.mxu0 0.0
      %3538 = vmatprep.subr.mxu0 0.0
      %3539 = vmatpush2.xpose.msra.mxu0 0.0
      %3540 = vmatprep.subr.mxu0 0.0
      %3541 = vmatpush2.xpose.msra.mxu0 0.0
      %3542 = vmatprep.subr.mxu0 0.0
      %3543 = vmatpush2.xpose.msra.mxu0 0.0
      %3544 = vmatprep.mubr.f32.mxu0 0.0
      %3545 = vmatmul.mubr.f32.gmra.mxu0 %v3472
      %v3546 = vpop.f32.mrf.mxu0
      %v3547 = vadd.f32 %v775, %v3546
      %v3548 = vpop.f32.mrf.mxu0
      %3549 = vmatprep.mubr.f32.mxu0 0.0
      %3550 = vmatmul.mubr.f32.gmra.mxu0 %v3474
      %v3551 = vpop.f32.mrf.mxu0
      %v3552 = vadd.f32 %v776, %v3551
      %v3553 = vpop.f32.mrf.mxu0
      %3554 = vdwg.mxu0
      %3557 = vrot.lane.b32.xlu0 %v3361, 104
      %v3558 = vpop.permute.xlu0 %3557
      %3559 = vrot.lane.b32.xlu0 %v3362, 104
      %v3560 = vpop.permute.xlu0 %3559
      %3563 = vrot.lane.b32.xlu0 %v3353, 72
      %v3564 = vpop.permute.xlu0 %3563
      %3565 = vrot.lane.b32.xlu0 %v3354, 72
      %v3566 = vpop.permute.xlu0 %3565
      %v3567 = vsel %vm799, %v3558, 0
      %v3569 = vsel %vm799, %v3560, 0
      %v3571 = vsel %vm799, %v3564, 0
      %v3573 = vsel %vm799, %v3566, 0
      %3575 = vmatprep.subr.mxu0 0.0
      %3576 = vmatpush1.xpose.msra.mxu0 0.0
      %3577 = vmatprep.subr.mxu0 0.0
      %3578 = vmatpush1.xpose.msra.mxu0 0.0
      %3579 = vmatprep.subr.mxu0 0.0
      %3580 = vmatpush1.xpose.msra.mxu0 0.0
      %3581 = vmatprep.subr.mxu0 0.0
      %3582 = vmatpush1.xpose.msra.mxu0 0.0
      %3583 = vmatprep.subr.mxu0 0.0
      %3584 = vmatpush1.xpose.msra.mxu0 0.0
      %3585 = vmatprep.subr.mxu0 0.0
      %3586 = vmatpush1.xpose.msra.mxu0 0.0
      %3587 = vmatprep.subr.mxu0 0.0
      %3588 = vmatpush1.xpose.msra.mxu0 0.0
      %3589 = vmatprep.subr.mxu0 0.0
      %3590 = vmatpush1.xpose.msra.mxu0 0.0
      %3591 = vmatprep.subr.mxu0 0.0
      %3592 = vmatpush1.xpose.msra.mxu0 0.0
      %3593 = vmatprep.subr.mxu0 0.0
      %3594 = vmatpush1.xpose.msra.mxu0 0.0
      %3595 = vmatprep.subr.mxu0 0.0
      %3596 = vmatpush1.xpose.msra.mxu0 0.0
      %3597 = vmatprep.subr.mxu0 0.0
      %3598 = vmatpush1.xpose.msra.mxu0 0.0
      %3599 = vmatprep.subr.mxu0 0.0
      %3600 = vmatpush1.xpose.msra.mxu0 0.0
      %3601 = vmatprep.subr.mxu0 0.0
      %3602 = vmatpush1.xpose.msra.mxu0 0.0
      %3603 = vmatprep.subr.mxu0 0.0
      %3604 = vmatpush1.xpose.msra.mxu0 %v3573
      %3605 = vmatprep.subr.mxu0 0.0
      %3606 = vmatpush1.xpose.msra.mxu0 %v3571
      %3607 = vmatprep.subr.mxu0 0.0
      %3608 = vmatpush2.xpose.msra.mxu0 0.0
      %3609 = vmatprep.subr.mxu0 0.0
      %3610 = vmatpush2.xpose.msra.mxu0 0.0
      %3611 = vmatprep.subr.mxu0 0.0
      %3612 = vmatpush2.xpose.msra.mxu0 0.0
      %3613 = vmatprep.subr.mxu0 0.0
      %3614 = vmatpush2.xpose.msra.mxu0 0.0
      %3615 = vmatprep.subr.mxu0 0.0
      %3616 = vmatpush2.xpose.msra.mxu0 0.0
      %3617 = vmatprep.subr.mxu0 0.0
      %3618 = vmatpush2.xpose.msra.mxu0 0.0
      %3619 = vmatprep.subr.mxu0 0.0
      %3620 = vmatpush2.xpose.msra.mxu0 0.0
      %3621 = vmatprep.subr.mxu0 0.0
      %3622 = vmatpush2.xpose.msra.mxu0 0.0
      %3623 = vmatprep.subr.mxu0 0.0
      %3624 = vmatpush2.xpose.msra.mxu0 0.0
      %3625 = vmatprep.subr.mxu0 0.0
      %3626 = vmatpush2.xpose.msra.mxu0 0.0
      %3627 = vmatprep.subr.mxu0 0.0
      %3628 = vmatpush2.xpose.msra.mxu0 0.0
      %3629 = vmatprep.subr.mxu0 0.0
      %3630 = vmatpush2.xpose.msra.mxu0 0.0
      %3631 = vmatprep.subr.mxu0 0.0
      %3632 = vmatpush2.xpose.msra.mxu0 0.0
      %3633 = vmatprep.subr.mxu0 0.0
      %3634 = vmatpush2.xpose.msra.mxu0 0.0
      %3635 = vmatprep.subr.mxu0 0.0
      %3636 = vmatpush2.xpose.msra.mxu0 0.0
      %3637 = vmatprep.subr.mxu0 0.0
      %3638 = vmatpush2.xpose.msra.mxu0 0.0
      %3639 = vmatprep.mubr.f32.mxu0 0.0
      %3640 = vmatmul.mubr.f32.gmra.mxu0 %v3567
      %v3641 = vpop.f32.mrf.mxu0
      %v3642 = vadd.f32 %v775, %v3641
      %v3643 = vpop.f32.mrf.mxu0
      %3644 = vmatprep.mubr.f32.mxu0 0.0
      %3645 = vmatmul.mubr.f32.gmra.mxu0 %v3569
      %v3646 = vpop.f32.mrf.mxu0
      %v3647 = vadd.f32 %v776, %v3646
      %v3648 = vpop.f32.mrf.mxu0
      %3649 = vdwg.mxu0
      %3652 = vrot.lane.b32.xlu0 %v3363, 104
      %v3653 = vpop.permute.xlu0 %3652
      %3654 = vrot.lane.b32.xlu0 %v3364, 104
      %v3655 = vpop.permute.xlu0 %3654
      %3658 = vrot.lane.b32.xlu0 %v3355, 72
      %v3659 = vpop.permute.xlu0 %3658
      %3660 = vrot.lane.b32.xlu0 %v3356, 72
      %v3661 = vpop.permute.xlu0 %3660
      %v3662 = vsel %vm799, %v3653, 0
      %v3664 = vsel %vm799, %v3655, 0
      %v3666 = vsel %vm799, %v3659, 0
      %v3668 = vsel %vm799, %v3661, 0
      %3670 = vmatprep.subr.mxu0 0.0
      %3671 = vmatpush1.xpose.msra.mxu0 0.0
      %3672 = vmatprep.subr.mxu0 0.0
      %3673 = vmatpush1.xpose.msra.mxu0 0.0
      %3674 = vmatprep.subr.mxu0 0.0
      %3675 = vmatpush1.xpose.msra.mxu0 0.0
      %3676 = vmatprep.subr.mxu0 0.0
      %3677 = vmatpush1.xpose.msra.mxu0 0.0
      %3678 = vmatprep.subr.mxu0 0.0
      %3679 = vmatpush1.xpose.msra.mxu0 0.0
      %3680 = vmatprep.subr.mxu0 0.0
      %3681 = vmatpush1.xpose.msra.mxu0 0.0
      %3682 = vmatprep.subr.mxu0 0.0
      %3683 = vmatpush1.xpose.msra.mxu0 0.0
      %3684 = vmatprep.subr.mxu0 0.0
      %3685 = vmatpush1.xpose.msra.mxu0 0.0
      %3686 = vmatprep.subr.mxu0 0.0
      %3687 = vmatpush1.xpose.msra.mxu0 0.0
      %3688 = vmatprep.subr.mxu0 0.0
      %3689 = vmatpush1.xpose.msra.mxu0 0.0
      %3690 = vmatprep.subr.mxu0 0.0
      %3691 = vmatpush1.xpose.msra.mxu0 0.0
      %3692 = vmatprep.subr.mxu0 0.0
      %3693 = vmatpush1.xpose.msra.mxu0 0.0
      %3694 = vmatprep.subr.mxu0 0.0
      %3695 = vmatpush1.xpose.msra.mxu0 0.0
      %3696 = vmatprep.subr.mxu0 0.0
      %3697 = vmatpush1.xpose.msra.mxu0 0.0
      %3698 = vmatprep.subr.mxu0 0.0
      %3699 = vmatpush1.xpose.msra.mxu0 %v3668
      %3700 = vmatprep.subr.mxu0 0.0
      %3701 = vmatpush1.xpose.msra.mxu0 %v3666
      %3702 = vmatprep.subr.mxu0 0.0
      %3703 = vmatpush2.xpose.msra.mxu0 0.0
      %3704 = vmatprep.subr.mxu0 0.0
      %3705 = vmatpush2.xpose.msra.mxu0 0.0
      %3706 = vmatprep.subr.mxu0 0.0
      %3707 = vmatpush2.xpose.msra.mxu0 0.0
      %3708 = vmatprep.subr.mxu0 0.0
      %3709 = vmatpush2.xpose.msra.mxu0 0.0
      %3710 = vmatprep.subr.mxu0 0.0
      %3711 = vmatpush2.xpose.msra.mxu0 0.0
      %3712 = vmatprep.subr.mxu0 0.0
      %3713 = vmatpush2.xpose.msra.mxu0 0.0
      %3714 = vmatprep.subr.mxu0 0.0
      %3715 = vmatpush2.xpose.msra.mxu0 0.0
      %3716 = vmatprep.subr.mxu0 0.0
      %3717 = vmatpush2.xpose.msra.mxu0 0.0
      %3718 = vmatprep.subr.mxu0 0.0
      %3719 = vmatpush2.xpose.msra.mxu0 0.0
      %3720 = vmatprep.subr.mxu0 0.0
      %3721 = vmatpush2.xpose.msra.mxu0 0.0
      %3722 = vmatprep.subr.mxu0 0.0
      %3723 = vmatpush2.xpose.msra.mxu0 0.0
      %3724 = vmatprep.subr.mxu0 0.0
      %3725 = vmatpush2.xpose.msra.mxu0 0.0
      %3726 = vmatprep.subr.mxu0 0.0
      %3727 = vmatpush2.xpose.msra.mxu0 0.0
      %3728 = vmatprep.subr.mxu0 0.0
      %3729 = vmatpush2.xpose.msra.mxu0 0.0
      %3730 = vmatprep.subr.mxu0 0.0
      %3731 = vmatpush2.xpose.msra.mxu0 0.0
      %3732 = vmatprep.subr.mxu0 0.0
      %3733 = vmatpush2.xpose.msra.mxu0 0.0
      %3734 = vmatprep.mubr.f32.mxu0 0.0
      %3735 = vmatmul.mubr.f32.gmra.mxu0 %v3662
      %v3736 = vpop.f32.mrf.mxu0
      %v3737 = vadd.f32 %v775, %v3736
      %v3738 = vpop.f32.mrf.mxu0
      %3739 = vmatprep.mubr.f32.mxu0 0.0
      %3740 = vmatmul.mubr.f32.gmra.mxu0 %v3664
      %v3741 = vpop.f32.mrf.mxu0
      %v3742 = vadd.f32 %v776, %v3741
      %v3743 = vpop.f32.mrf.mxu0
      %3744 = vdwg.mxu0
      %v3745 = vsel %vm1158, %v3452, -inf
      %3746 = vmax.xlane.f32.xlu0 %v3745
      %v3747 = vpop.xlane.xlu0 %3746
      %v3748 = vsel %vm1158, %v3457, -inf
      %3749 = vmax.xlane.f32.xlu0 %v3748
      %v3750 = vpop.xlane.xlu0 %3749
      %v3751 = vsel %vm1158, %v3547, -inf
      %3752 = vmax.xlane.f32.xlu0 %v3751
      %v3753 = vpop.xlane.xlu0 %3752
      %v3754 = vsel %vm1158, %v3552, -inf
      %3755 = vmax.xlane.f32.xlu0 %v3754
      %v3756 = vpop.xlane.xlu0 %3755
      %v3757 = vsel %vm1158, %v3642, -inf
      %3758 = vmax.xlane.f32.xlu0 %v3757
      %v3759 = vpop.xlane.xlu0 %3758
      %v3760 = vsel %vm1158, %v3647, -inf
      %3761 = vmax.xlane.f32.xlu0 %v3760
      %v3762 = vpop.xlane.xlu0 %3761
      %v3763 = vsel %vm1158, %v3737, -inf
      %3764 = vmax.xlane.f32.xlu0 %v3763
      %v3765 = vpop.xlane.xlu0 %3764
      %v3766 = vsel %vm1158, %v3742, -inf
      %3767 = vmax.xlane.f32.xlu0 %v3766
      %v3768 = vpop.xlane.xlu0 %3767
      %v3769 = vsub.f32 %v3452, %v3747
      %v3770 = vsub.f32 %v3457, %v3750
      %v3771 = vsub.f32 %v3547, %v3753
      %v3772 = vsub.f32 %v3552, %v3756
      %v3773 = vsub.f32 %v3642, %v3759
      %v3774 = vsub.f32 %v3647, %v3762
      %v3775 = vsub.f32 %v3737, %v3765
      %v3776 = vsub.f32 %v3742, %v3768
      %v3777 = vmul.f32 %v3769, 1.442695
      %v3778 = vpow.pop %v3777
      %v3779 = vmul.f32 %v3770, 1.442695
      %v3780 = vpow.pop %v3779
      %v3781 = vmul.f32 %v3771, 1.442695
      %v3782 = vpow.pop %v3781
      %v3783 = vmul.f32 %v3772, 1.442695
      %v3784 = vpow.pop %v3783
      %v3785 = vmul.f32 %v3773, 1.442695
      %v3786 = vpow.pop %v3785
      %v3787 = vmul.f32 %v3774, 1.442695
      %v3788 = vpow.pop %v3787
      %v3789 = vmul.f32 %v3775, 1.442695
      %v3790 = vpow.pop %v3789
      %v3791 = vmul.f32 %v3776, 1.442695
      %v3792 = vpow.pop %v3791
      %v3793 = vsel %vm1158, %v3778, 0.0
      %3794 = vadd.xlane.f32.xlu0 %v3793
      %v3795 = vpop.xlane.xlu0 %3794
      %v3796 = vsel %vm1158, %v3780, 0.0
      %3797 = vadd.xlane.f32.xlu0 %v3796
      %v3798 = vpop.xlane.xlu0 %3797
      %v3799 = vsel %vm1158, %v3782, 0.0
      %3800 = vadd.xlane.f32.xlu0 %v3799
      %v3801 = vpop.xlane.xlu0 %3800
      %v3802 = vsel %vm1158, %v3784, 0.0
      %3803 = vadd.xlane.f32.xlu0 %v3802
      %v3804 = vpop.xlane.xlu0 %3803
      %v3805 = vsel %vm1158, %v3786, 0.0
      %3806 = vadd.xlane.f32.xlu0 %v3805
      %v3807 = vpop.xlane.xlu0 %3806
      %v3808 = vsel %vm1158, %v3788, 0.0
      %3809 = vadd.xlane.f32.xlu0 %v3808
      %v3810 = vpop.xlane.xlu0 %3809
      %v3811 = vsel %vm1158, %v3790, 0.0
      %3812 = vadd.xlane.f32.xlu0 %v3811
      %v3813 = vpop.xlane.xlu0 %3812
      %v3814 = vsel %vm1158, %v3792, 0.0
      %3815 = vadd.xlane.f32.xlu0 %v3814
      %v3816 = vpop.xlane.xlu0 %3815
      %v3817 = vrcp.pop %v3795
      %v3818 = vrcp.pop %v3798
      %v3819 = vrcp.pop %v3801
      %v3820 = vrcp.pop %v3804
      %v3821 = vrcp.pop %v3807
      %v3822 = vrcp.pop %v3810
      %v3823 = vrcp.pop %v3813
      %v3824 = vrcp.pop %v3816
      %v3825 = vmul.f32 %v3778, %v3817
      %v3826 = vmul.f32 %v3780, %v3818
      %v3827 = vmul.f32 %v3782, %v3819
      %v3828 = vmul.f32 %v3784, %v3820
      %v3829 = vmul.f32 %v3786, %v3821
      %v3830 = vmul.f32 %v3788, %v3822
      %v3831 = vmul.f32 %v3790, %v3823
      %v3832 = vmul.f32 %v3792, %v3824
      %3833 = vrot.lane.b32.xlu0 %v3349, 40
      %v3834 = vpop.permute.xlu0 %3833
      %3835 = vrot.lane.b32.xlu0 %v3350, 40
      %v3836 = vpop.permute.xlu0 %3835
      %v3840 = vsel %vm1158, %v3825, 0
      %v3843 = vsel %vm1158, %v3826, 0
      %3845 = vmatprep.subr.mxu0 0.0
      %3846 = vmatpush1.msra.mxu0 0.0
      %3847 = vmatprep.subr.mxu0 0.0
      %3848 = vmatpush1.msra.mxu0 0.0
      %3849 = vmatprep.subr.mxu0 0.0
      %3850 = vmatpush1.msra.mxu0 0.0
      %3851 = vmatprep.subr.mxu0 0.0
      %3852 = vmatpush1.msra.mxu0 0.0
      %3853 = vmatprep.subr.mxu0 0.0
      %3854 = vmatpush1.msra.mxu0 0.0
      %3855 = vmatprep.subr.mxu0 0.0
      %3856 = vmatpush1.msra.mxu0 0.0
      %3857 = vmatprep.subr.mxu0 0.0
      %3858 = vmatpush1.msra.mxu0 0.0
      %3859 = vmatprep.subr.mxu0 0.0
      %3860 = vmatpush1.msra.mxu0 0.0
      %3861 = vmatprep.subr.mxu0 0.0
      %3862 = vmatpush1.msra.mxu0 0.0
      %3863 = vmatprep.subr.mxu0 0.0
      %3864 = vmatpush1.msra.mxu0 0.0
      %3865 = vmatprep.subr.mxu0 0.0
      %3866 = vmatpush1.msra.mxu0 0.0
      %3867 = vmatprep.subr.mxu0 0.0
      %3868 = vmatpush1.msra.mxu0 0.0
      %3869 = vmatprep.subr.mxu0 0.0
      %3870 = vmatpush1.msra.mxu0 0.0
      %3871 = vmatprep.subr.mxu0 0.0
      %3872 = vmatpush1.msra.mxu0 0.0
      %3873 = vmatprep.subr.mxu0 0.0
      %3874 = vmatpush1.msra.mxu0 %v3836
      %3875 = vmatprep.subr.mxu0 0.0
      %3876 = vmatpush1.msra.mxu0 %v3834
      %3877 = vmatprep.subr.mxu0 0.0
      %3878 = vmatpush2.msra.mxu0 0.0
      %3879 = vmatprep.subr.mxu0 0.0
      %3880 = vmatpush2.msra.mxu0 0.0
      %3881 = vmatprep.subr.mxu0 0.0
      %3882 = vmatpush2.msra.mxu0 0.0
      %3883 = vmatprep.subr.mxu0 0.0
      %3884 = vmatpush2.msra.mxu0 0.0
      %3885 = vmatprep.subr.mxu0 0.0
      %3886 = vmatpush2.msra.mxu0 0.0
      %3887 = vmatprep.subr.mxu0 0.0
      %3888 = vmatpush2.msra.mxu0 0.0
      %3889 = vmatprep.subr.mxu0 0.0
      %3890 = vmatpush2.msra.mxu0 0.0
      %3891 = vmatprep.subr.mxu0 0.0
      %3892 = vmatpush2.msra.mxu0 0.0
      %3893 = vmatprep.subr.mxu0 0.0
      %3894 = vmatpush2.msra.mxu0 0.0
      %3895 = vmatprep.subr.mxu0 0.0
      %3896 = vmatpush2.msra.mxu0 0.0
      %3897 = vmatprep.subr.mxu0 0.0
      %3898 = vmatpush2.msra.mxu0 0.0
      %3899 = vmatprep.subr.mxu0 0.0
      %3900 = vmatpush2.msra.mxu0 0.0
      %3901 = vmatprep.subr.mxu0 0.0
      %3902 = vmatpush2.msra.mxu0 0.0
      %3903 = vmatprep.subr.mxu0 0.0
      %3904 = vmatpush2.msra.mxu0 0.0
      %3905 = vmatprep.subr.mxu0 0.0
      %3906 = vmatpush2.msra.mxu0 0.0
      %3907 = vmatprep.subr.mxu0 0.0
      %3908 = vmatpush2.msra.mxu0 0.0
      %3909 = vmatprep.mubr.f32.mxu0 0.0
      %3910 = vmatmul.mubr.f32.gmra.mxu0 %v3840
      %v3911 = vpop.f32.mrf.mxu0
      %v3912 = vadd.f32 0.0, %v3911
      %v3913 = vpop.f32.mrf.mxu0
      %3914 = vmatprep.mubr.f32.mxu0 0.0
      %3915 = vmatmul.mubr.f32.gmra.mxu0 %v3843
      %v3916 = vpop.f32.mrf.mxu0
      %v3917 = vadd.f32 0.0, %v3916
      %v3918 = vpop.f32.mrf.mxu0
      %3919 = vdwg.mxu0
      %3920 = vrot.lane.b32.xlu0 %v3351, 40
      %v3921 = vpop.permute.xlu0 %3920
      %3922 = vrot.lane.b32.xlu0 %v3352, 40
      %v3923 = vpop.permute.xlu0 %3922
      %v3927 = vsel %vm1158, %v3827, 0
      %v3930 = vsel %vm1158, %v3828, 0
      %3932 = vmatprep.subr.mxu0 0.0
      %3933 = vmatpush1.msra.mxu0 0.0
      %3934 = vmatprep.subr.mxu0 0.0
      %3935 = vmatpush1.msra.mxu0 0.0
      %3936 = vmatprep.subr.mxu0 0.0
      %3937 = vmatpush1.msra.mxu0 0.0
      %3938 = vmatprep.subr.mxu0 0.0
      %3939 = vmatpush1.msra.mxu0 0.0
      %3940 = vmatprep.subr.mxu0 0.0
      %3941 = vmatpush1.msra.mxu0 0.0
      %3942 = vmatprep.subr.mxu0 0.0
      %3943 = vmatpush1.msra.mxu0 0.0
      %3944 = vmatprep.subr.mxu0 0.0
      %3945 = vmatpush1.msra.mxu0 0.0
      %3946 = vmatprep.subr.mxu0 0.0
      %3947 = vmatpush1.msra.mxu0 0.0
      %3948 = vmatprep.subr.mxu0 0.0
      %3949 = vmatpush1.msra.mxu0 0.0
      %3950 = vmatprep.subr.mxu0 0.0
      %3951 = vmatpush1.msra.mxu0 0.0
      %3952 = vmatprep.subr.mxu0 0.0
      %3953 = vmatpush1.msra.mxu0 0.0
      %3954 = vmatprep.subr.mxu0 0.0
      %3955 = vmatpush1.msra.mxu0 0.0
      %3956 = vmatprep.subr.mxu0 0.0
      %3957 = vmatpush1.msra.mxu0 0.0
      %3958 = vmatprep.subr.mxu0 0.0
      %3959 = vmatpush1.msra.mxu0 0.0
      %3960 = vmatprep.subr.mxu0 0.0
      %3961 = vmatpush1.msra.mxu0 %v3923
      %3962 = vmatprep.subr.mxu0 0.0
      %3963 = vmatpush1.msra.mxu0 %v3921
      %3964 = vmatprep.subr.mxu0 0.0
      %3965 = vmatpush2.msra.mxu0 0.0
      %3966 = vmatprep.subr.mxu0 0.0
      %3967 = vmatpush2.msra.mxu0 0.0
      %3968 = vmatprep.subr.mxu0 0.0
      %3969 = vmatpush2.msra.mxu0 0.0
      %3970 = vmatprep.subr.mxu0 0.0
      %3971 = vmatpush2.msra.mxu0 0.0
      %3972 = vmatprep.subr.mxu0 0.0
      %3973 = vmatpush2.msra.mxu0 0.0
      %3974 = vmatprep.subr.mxu0 0.0
      %3975 = vmatpush2.msra.mxu0 0.0
      %3976 = vmatprep.subr.mxu0 0.0
      %3977 = vmatpush2.msra.mxu0 0.0
      %3978 = vmatprep.subr.mxu0 0.0
      %3979 = vmatpush2.msra.mxu0 0.0
      %3980 = vmatprep.subr.mxu0 0.0
      %3981 = vmatpush2.msra.mxu0 0.0
      %3982 = vmatprep.subr.mxu0 0.0
      %3983 = vmatpush2.msra.mxu0 0.0
      %3984 = vmatprep.subr.mxu0 0.0
      %3985 = vmatpush2.msra.mxu0 0.0
      %3986 = vmatprep.subr.mxu0 0.0
      %3987 = vmatpush2.msra.mxu0 0.0
      %3988 = vmatprep.subr.mxu0 0.0
      %3989 = vmatpush2.msra.mxu0 0.0
      %3990 = vmatprep.subr.mxu0 0.0
      %3991 = vmatpush2.msra.mxu0 0.0
      %3992 = vmatprep.subr.mxu0 0.0
      %3993 = vmatpush2.msra.mxu0 0.0
      %3994 = vmatprep.subr.mxu0 0.0
      %3995 = vmatpush2.msra.mxu0 0.0
      %3996 = vmatprep.mubr.f32.mxu0 0.0
      %3997 = vmatmul.mubr.f32.gmra.mxu0 %v3927
      %v3998 = vpop.f32.mrf.mxu0
      %v3999 = vadd.f32 0.0, %v3998
      %v4000 = vpop.f32.mrf.mxu0
      %4001 = vmatprep.mubr.f32.mxu0 0.0
      %4002 = vmatmul.mubr.f32.gmra.mxu0 %v3930
      %v4003 = vpop.f32.mrf.mxu0
      %v4004 = vadd.f32 0.0, %v4003
      %v4005 = vpop.f32.mrf.mxu0
      %4006 = vdwg.mxu0
      %4007 = vrot.lane.b32.xlu0 %v3353, 40
      %v4008 = vpop.permute.xlu0 %4007
      %4009 = vrot.lane.b32.xlu0 %v3354, 40
      %v4010 = vpop.permute.xlu0 %4009
      %v4014 = vsel %vm1158, %v3829, 0
      %v4017 = vsel %vm1158, %v3830, 0
      %4019 = vmatprep.subr.mxu0 0.0
      %4020 = vmatpush1.msra.mxu0 0.0
      %4021 = vmatprep.subr.mxu0 0.0
      %4022 = vmatpush1.msra.mxu0 0.0
      %4023 = vmatprep.subr.mxu0 0.0
      %4024 = vmatpush1.msra.mxu0 0.0
      %4025 = vmatprep.subr.mxu0 0.0
      %4026 = vmatpush1.msra.mxu0 0.0
      %4027 = vmatprep.subr.mxu0 0.0
      %4028 = vmatpush1.msra.mxu0 0.0
      %4029 = vmatprep.subr.mxu0 0.0
      %4030 = vmatpush1.msra.mxu0 0.0
      %4031 = vmatprep.subr.mxu0 0.0
      %4032 = vmatpush1.msra.mxu0 0.0
      %4033 = vmatprep.subr.mxu0 0.0
      %4034 = vmatpush1.msra.mxu0 0.0
      %4035 = vmatprep.subr.mxu0 0.0
      %4036 = vmatpush1.msra.mxu0 0.0
      %4037 = vmatprep.subr.mxu0 0.0
      %4038 = vmatpush1.msra.mxu0 0.0
      %4039 = vmatprep.subr.mxu0 0.0
      %4040 = vmatpush1.msra.mxu0 0.0
      %4041 = vmatprep.subr.mxu0 0.0
      %4042 = vmatpush1.msra.mxu0 0.0
      %4043 = vmatprep.subr.mxu0 0.0
      %4044 = vmatpush1.msra.mxu0 0.0
      %4045 = vmatprep.subr.mxu0 0.0
      %4046 = vmatpush1.msra.mxu0 0.0
      %4047 = vmatprep.subr.mxu0 0.0
      %4048 = vmatpush1.msra.mxu0 %v4010
      %4049 = vmatprep.subr.mxu0 0.0
      %4050 = vmatpush1.msra.mxu0 %v4008
      %4051 = vmatprep.subr.mxu0 0.0
      %4052 = vmatpush2.msra.mxu0 0.0
      %4053 = vmatprep.subr.mxu0 0.0
      %4054 = vmatpush2.msra.mxu0 0.0
      %4055 = vmatprep.subr.mxu0 0.0
      %4056 = vmatpush2.msra.mxu0 0.0
      %4057 = vmatprep.subr.mxu0 0.0
      %4058 = vmatpush2.msra.mxu0 0.0
      %4059 = vmatprep.subr.mxu0 0.0
      %4060 = vmatpush2.msra.mxu0 0.0
      %4061 = vmatprep.subr.mxu0 0.0
      %4062 = vmatpush2.msra.mxu0 0.0
      %4063 = vmatprep.subr.mxu0 0.0
      %4064 = vmatpush2.msra.mxu0 0.0
      %4065 = vmatprep.subr.mxu0 0.0
      %4066 = vmatpush2.msra.mxu0 0.0
      %4067 = vmatprep.subr.mxu0 0.0
      %4068 = vmatpush2.msra.mxu0 0.0
      %4069 = vmatprep.subr.mxu0 0.0
      %4070 = vmatpush2.msra.mxu0 0.0
      %4071 = vmatprep.subr.mxu0 0.0
      %4072 = vmatpush2.msra.mxu0 0.0
      %4073 = vmatprep.subr.mxu0 0.0
      %4074 = vmatpush2.msra.mxu0 0.0
      %4075 = vmatprep.subr.mxu0 0.0
      %4076 = vmatpush2.msra.mxu0 0.0
      %4077 = vmatprep.subr.mxu0 0.0
      %4078 = vmatpush2.msra.mxu0 0.0
      %4079 = vmatprep.subr.mxu0 0.0
      %4080 = vmatpush2.msra.mxu0 0.0
      %4081 = vmatprep.subr.mxu0 0.0
      %4082 = vmatpush2.msra.mxu0 0.0
      %4083 = vmatprep.mubr.f32.mxu0 0.0
      %4084 = vmatmul.mubr.f32.gmra.mxu0 %v4014
      %v4085 = vpop.f32.mrf.mxu0
      %v4086 = vadd.f32 0.0, %v4085
      %v4087 = vpop.f32.mrf.mxu0
      %4088 = vmatprep.mubr.f32.mxu0 0.0
      %4089 = vmatmul.mubr.f32.gmra.mxu0 %v4017
      %v4090 = vpop.f32.mrf.mxu0
      %v4091 = vadd.f32 0.0, %v4090
      %v4092 = vpop.f32.mrf.mxu0
      %4093 = vdwg.mxu0
      %4094 = vrot.lane.b32.xlu0 %v3355, 40
      %v4095 = vpop.permute.xlu0 %4094
      %4096 = vrot.lane.b32.xlu0 %v3356, 40
      %v4097 = vpop.permute.xlu0 %4096
      %v4101 = vsel %vm1158, %v3831, 0
      %v4104 = vsel %vm1158, %v3832, 0
      %4106 = vmatprep.subr.mxu0 0.0
      %4107 = vmatpush1.msra.mxu0 0.0
      %4108 = vmatprep.subr.mxu0 0.0
      %4109 = vmatpush1.msra.mxu0 0.0
      %4110 = vmatprep.subr.mxu0 0.0
      %4111 = vmatpush1.msra.mxu0 0.0
      %4112 = vmatprep.subr.mxu0 0.0
      %4113 = vmatpush1.msra.mxu0 0.0
      %4114 = vmatprep.subr.mxu0 0.0
      %4115 = vmatpush1.msra.mxu0 0.0
      %4116 = vmatprep.subr.mxu0 0.0
      %4117 = vmatpush1.msra.mxu0 0.0
      %4118 = vmatprep.subr.mxu0 0.0
      %4119 = vmatpush1.msra.mxu0 0.0
      %4120 = vmatprep.subr.mxu0 0.0
      %4121 = vmatpush1.msra.mxu0 0.0
      %4122 = vmatprep.subr.mxu0 0.0
      %4123 = vmatpush1.msra.mxu0 0.0
      %4124 = vmatprep.subr.mxu0 0.0
      %4125 = vmatpush1.msra.mxu0 0.0
      %4126 = vmatprep.subr.mxu0 0.0
      %4127 = vmatpush1.msra.mxu0 0.0
      %4128 = vmatprep.subr.mxu0 0.0
      %4129 = vmatpush1.msra.mxu0 0.0
      %4130 = vmatprep.subr.mxu0 0.0
      %4131 = vmatpush1.msra.mxu0 0.0
      %4132 = vmatprep.subr.mxu0 0.0
      %4133 = vmatpush1.msra.mxu0 0.0
      %4134 = vmatprep.subr.mxu0 0.0
      %4135 = vmatpush1.msra.mxu0 %v4097
      %4136 = vmatprep.subr.mxu0 0.0
      %4137 = vmatpush1.msra.mxu0 %v4095
      %4138 = vmatprep.subr.mxu0 0.0
      %4139 = vmatpush2.msra.mxu0 0.0
      %4140 = vmatprep.subr.mxu0 0.0
      %4141 = vmatpush2.msra.mxu0 0.0
      %4142 = vmatprep.subr.mxu0 0.0
      %4143 = vmatpush2.msra.mxu0 0.0
      %4144 = vmatprep.subr.mxu0 0.0
      %4145 = vmatpush2.msra.mxu0 0.0
      %4146 = vmatprep.subr.mxu0 0.0
      %4147 = vmatpush2.msra.mxu0 0.0
      %4148 = vmatprep.subr.mxu0 0.0
      %4149 = vmatpush2.msra.mxu0 0.0
      %4150 = vmatprep.subr.mxu0 0.0
      %4151 = vmatpush2.msra.mxu0 0.0
      %4152 = vmatprep.subr.mxu0 0.0
      %4153 = vmatpush2.msra.mxu0 0.0
      %4154 = vmatprep.subr.mxu0 0.0
      %4155 = vmatpush2.msra.mxu0 0.0
      %4156 = vmatprep.subr.mxu0 0.0
      %4157 = vmatpush2.msra.mxu0 0.0
      %4158 = vmatprep.subr.mxu0 0.0
      %4159 = vmatpush2.msra.mxu0 0.0
      %4160 = vmatprep.subr.mxu0 0.0
      %4161 = vmatpush2.msra.mxu0 0.0
      %4162 = vmatprep.subr.mxu0 0.0
      %4163 = vmatpush2.msra.mxu0 0.0
      %4164 = vmatprep.subr.mxu0 0.0
      %4165 = vmatpush2.msra.mxu0 0.0
      %4166 = vmatprep.subr.mxu0 0.0
      %4167 = vmatpush2.msra.mxu0 0.0
      %4168 = vmatprep.subr.mxu0 0.0
      %4169 = vmatpush2.msra.mxu0 0.0
      %4170 = vmatprep.mubr.f32.mxu0 0.0
      %4171 = vmatmul.mubr.f32.gmra.mxu0 %v4101
      %v4172 = vpop.f32.mrf.mxu0
      %v4173 = vadd.f32 0.0, %v4172
      %v4174 = vpop.f32.mrf.mxu0
      %4175 = vmatprep.mubr.f32.mxu0 0.0
      %4176 = vmatmul.mubr.f32.gmra.mxu0 %v4104
      %v4177 = vpop.f32.mrf.mxu0
      %v4178 = vadd.f32 0.0, %v4177
      %v4179 = vpop.f32.mrf.mxu0
      %4180 = vdwg.mxu0
      %4189 = vrot.lane.b32.xlu0 %v3912, 24
      %v4190 = vpop.permute.xlu0 %4189
      %4191 = vrot.lane.b32.xlu0 %v3917, 24
      %v4192 = vpop.permute.xlu0 %4191
      %4193 = vrot.lane.b32.xlu0 %v3999, 24
      %v4194 = vpop.permute.xlu0 %4193
      %4195 = vrot.lane.b32.xlu0 %v4004, 24
      %v4196 = vpop.permute.xlu0 %4195
      %4197 = vrot.lane.b32.xlu0 %v4086, 24
      %v4198 = vpop.permute.xlu0 %4197
      %4199 = vrot.lane.b32.xlu0 %v4091, 24
      %v4200 = vpop.permute.xlu0 %4199
      %4201 = vrot.lane.b32.xlu0 %v4173, 24
      %v4202 = vpop.permute.xlu0 %4201
      %4203 = vrot.lane.b32.xlu0 %v4178, 24
      %v4204 = vpop.permute.xlu0 %4203
      %vm4213 = vcmask 261312
      %4214 = vst.msk [vmem:[#allocation3] sm:$0xff] %vm4213, %v4190
      %4215 = vst.msk [vmem:[#allocation3 + $0x8] sm:$0xff] %vm4213, %v4192
      %4216 = vst.msk [vmem:[#allocation3 + $0x10] sm:$0xff] %vm4213, %v4194
      %4217 = vst.msk [vmem:[#allocation3 + $0x18] sm:$0xff] %vm4213, %v4196
      %4218 = vst.msk [vmem:[#allocation3 + $0x20] sm:$0xff] %vm4213, %v4198
      %4219 = vst.msk [vmem:[#allocation3 + $0x28] sm:$0xff] %vm4213, %v4200
      %4220 = vst.msk [vmem:[#allocation3 + $0x30] sm:$0xff] %vm4213, %v4202
      %4221 = vst.msk [vmem:[#allocation3 + $0x38] sm:$0xff] %vm4213, %v4204
      %v4222 = vld [vmem:[#allocation3] sm:$0xff]
      %v4223 = vld [vmem:[#allocation3 + $0x8] sm:$0xff]
      %v4224 = vld [vmem:[#allocation3 + $0x10] sm:$0xff]
      %v4225 = vld [vmem:[#allocation3 + $0x18] sm:$0xff]
      %v4226 = vld [vmem:[#allocation3 + $0x20] sm:$0xff]
      %v4227 = vld [vmem:[#allocation3 + $0x28] sm:$0xff]
      %v4228 = vld [vmem:[#allocation3 + $0x30] sm:$0xff]
      %v4229 = vld [vmem:[#allocation3 + $0x38] sm:$0xff]
      %v4230 = vld [vmem:[%s6] sm:$0xff]
      %v4231 = vld [vmem:[%s6 + $0x8] sm:$0xff]
      %v4232 = vld [vmem:[%s6 + $0x10] sm:$0xff]
      %v4233 = vld [vmem:[%s6 + $0x18] sm:$0xff]
      %v4234 = vld [vmem:[%s7] sm:$0x1]
      %v4236 = vlaneseq
      %v4237 = vshrl.u32 %v4236, 7
      %v4238 = vsub.s32 0, %v4237
      %v4239 = vrot.slane %v4234, %v4238
      %v4242 = vsel %vm484, %v4222, 0
      %v4245 = vsel %vm484, %v4223, 0
      %v4248 = vsel %vm484, %v4224, 0
      %v4251 = vsel %vm484, %v4225, 0
      %v4254 = vsel %vm484, %v4226, 0
      %v4257 = vsel %vm484, %v4227, 0
      %v4260 = vsel %vm484, %v4228, 0
      %v4263 = vsel %vm484, %v4229, 0
      %4265 = vmatprep.subr.mxu0 0.0
      %4266 = vmatpush1.msra.mxu0 0.0
      %4267 = vmatprep.subr.mxu0 0.0
      %4268 = vmatpush1.msra.mxu0 0.0
      %4269 = vmatprep.subr.mxu0 0.0
      %4270 = vmatpush1.msra.mxu0 0.0
      %4271 = vmatprep.subr.mxu0 0.0
      %4272 = vmatpush1.msra.mxu0 0.0
      %4273 = vmatprep.subr.mxu0 0.0
      %4274 = vmatpush1.msra.mxu0 0.0
      %4275 = vmatprep.subr.mxu0 0.0
      %4276 = vmatpush1.msra.mxu0 0.0
      %4277 = vmatprep.subr.mxu0 0.0
      %4278 = vmatpush1.msra.mxu0 0.0
      %4279 = vmatprep.subr.mxu0 0.0
      %4280 = vmatpush1.msra.mxu0 0.0
      %4281 = vmatprep.subr.mxu0 0.0
      %4282 = vmatpush1.msra.mxu0 0.0
      %4283 = vmatprep.subr.mxu0 0.0
      %4284 = vmatpush1.msra.mxu0 0.0
      %4285 = vmatprep.subr.mxu0 0.0
      %4286 = vmatpush1.msra.mxu0 0.0
      %4287 = vmatprep.subr.mxu0 0.0
      %4288 = vmatpush1.msra.mxu0 0.0
      %4289 = vmatprep.subr.mxu0 0.0
      %4290 = vmatpush1.msra.mxu0 %v4233
      %4291 = vmatprep.subr.mxu0 0.0
      %4292 = vmatpush1.msra.mxu0 %v4232
      %4293 = vmatprep.subr.mxu0 0.0
      %4294 = vmatpush1.msra.mxu0 %v4231
      %4295 = vmatprep.subr.mxu0 0.0
      %4296 = vmatpush1.msra.mxu0 %v4230
      %4297 = vmatprep.subr.mxu0 0.0
      %4298 = vmatpush2.msra.mxu0 0.0
      %4299 = vmatprep.subr.mxu0 0.0
      %4300 = vmatpush2.msra.mxu0 0.0
      %4301 = vmatprep.subr.mxu0 0.0
      %4302 = vmatpush2.msra.mxu0 0.0
      %4303 = vmatprep.subr.mxu0 0.0
      %4304 = vmatpush2.msra.mxu0 0.0
      %4305 = vmatprep.subr.mxu0 0.0
      %4306 = vmatpush2.msra.mxu0 0.0
      %4307 = vmatprep.subr.mxu0 0.0
      %4308 = vmatpush2.msra.mxu0 0.0
      %4309 = vmatprep.subr.mxu0 0.0
      %4310 = vmatpush2.msra.mxu0 0.0
      %4311 = vmatprep.subr.mxu0 0.0
      %4312 = vmatpush2.msra.mxu0 0.0
      %4313 = vmatprep.subr.mxu0 0.0
      %4314 = vmatpush2.msra.mxu0 0.0
      %4315 = vmatprep.subr.mxu0 0.0
      %4316 = vmatpush2.msra.mxu0 0.0
      %4317 = vmatprep.subr.mxu0 0.0
      %4318 = vmatpush2.msra.mxu0 0.0
      %4319 = vmatprep.subr.mxu0 0.0
      %4320 = vmatpush2.msra.mxu0 0.0
      %4321 = vmatprep.subr.mxu0 0.0
      %4322 = vmatpush2.msra.mxu0 0.0
      %4323 = vmatprep.subr.mxu0 0.0
      %4324 = vmatpush2.msra.mxu0 0.0
      %4325 = vmatprep.subr.mxu0 0.0
      %4326 = vmatpush2.msra.mxu0 0.0
      %4327 = vmatprep.subr.mxu0 0.0
      %4328 = vmatpush2.msra.mxu0 0.0
      %4329 = vmatprep.mubr.f32.mxu0 0.0
      %4330 = vmatmul.mubr.f32.gmra.mxu0 %v4242
      %v4331 = vpop.f32.mrf.mxu0
      %v4332 = vadd.f32 %v4239, %v4331
      %v4333 = vpop.f32.mrf.mxu0
      %4334 = vmatprep.mubr.f32.mxu0 0.0
      %4335 = vmatmul.mubr.f32.gmra.mxu0 %v4245
      %v4336 = vpop.f32.mrf.mxu0
      %v4337 = vadd.f32 %v4239, %v4336
      %v4338 = vpop.f32.mrf.mxu0
      %4339 = vmatprep.mubr.f32.mxu0 0.0
      %4340 = vmatmul.mubr.f32.gmra.mxu0 %v4248
      %v4341 = vpop.f32.mrf.mxu0
      %v4342 = vadd.f32 %v4239, %v4341
      %v4343 = vpop.f32.mrf.mxu0
      %4344 = vmatprep.mubr.f32.mxu0 0.0
      %4345 = vmatmul.mubr.f32.gmra.mxu0 %v4251
      %v4346 = vpop.f32.mrf.mxu0
      %v4347 = vadd.f32 %v4239, %v4346
      %v4348 = vpop.f32.mrf.mxu0
      %4349 = vmatprep.mubr.f32.mxu0 0.0
      %4350 = vmatmul.mubr.f32.gmra.mxu0 %v4254
      %v4351 = vpop.f32.mrf.mxu0
      %v4352 = vadd.f32 %v4239, %v4351
      %v4353 = vpop.f32.mrf.mxu0
      %4354 = vmatprep.mubr.f32.mxu0 0.0
      %4355 = vmatmul.mubr.f32.gmra.mxu0 %v4257
      %v4356 = vpop.f32.mrf.mxu0
      %v4357 = vadd.f32 %v4239, %v4356
      %v4358 = vpop.f32.mrf.mxu0
      %4359 = vmatprep.mubr.f32.mxu0 0.0
      %4360 = vmatmul.mubr.f32.gmra.mxu0 %v4260
      %v4361 = vpop.f32.mrf.mxu0
      %v4362 = vadd.f32 %v4239, %v4361
      %v4363 = vpop.f32.mrf.mxu0
      %4364 = vmatprep.mubr.f32.mxu0 0.0
      %4365 = vmatmul.mubr.f32.gmra.mxu0 %v4263
      %v4366 = vpop.f32.mrf.mxu0
      %v4367 = vadd.f32 %v4239, %v4366
      %v4368 = vpop.f32.mrf.mxu0
      %4369 = vdwg.mxu0
      %v4370 = vadd.f32 %v476, %v4332
      %v4371 = vadd.f32 %v477, %v4337
      %v4372 = vadd.f32 %v478, %v4342
      %v4373 = vadd.f32 %v479, %v4347
      %v4374 = vadd.f32 %v480, %v4352
      %v4375 = vadd.f32 %v481, %v4357
      %v4376 = vadd.f32 %v482, %v4362
      %v4377 = vadd.f32 %v483, %v4367
      %v4378 = vsel %vm484, %v4370, 0.0
      %4379 = vadd.xlane.f32.xlu0 %v4378
      %v4380 = vpop.xlane.xlu0 %4379
      %v4381 = vsel %vm484, %v4371, 0.0
      %4382 = vadd.xlane.f32.xlu0 %v4381
      %v4383 = vpop.xlane.xlu0 %4382
      %v4384 = vsel %vm484, %v4372, 0.0
      %4385 = vadd.xlane.f32.xlu0 %v4384
      %v4386 = vpop.xlane.xlu0 %4385
      %v4387 = vsel %vm484, %v4373, 0.0
      %4388 = vadd.xlane.f32.xlu0 %v4387
      %v4389 = vpop.xlane.xlu0 %4388
      %v4390 = vsel %vm484, %v4374, 0.0
      %4391 = vadd.xlane.f32.xlu0 %v4390
      %v4392 = vpop.xlane.xlu0 %4391
      %v4393 = vsel %vm484, %v4375, 0.0
      %4394 = vadd.xlane.f32.xlu0 %v4393
      %v4395 = vpop.xlane.xlu0 %4394
      %v4396 = vsel %vm484, %v4376, 0.0
      %4397 = vadd.xlane.f32.xlu0 %v4396
      %v4398 = vpop.xlane.xlu0 %4397
      %v4399 = vsel %vm484, %v4377, 0.0
      %4400 = vadd.xlane.f32.xlu0 %v4399
      %v4401 = vpop.xlane.xlu0 %4400
      %v4402 = vmul.f32 %v4380, %v509
      %v4403 = vmul.f32 %v4383, %v509
      %v4404 = vmul.f32 %v4386, %v509
      %v4405 = vmul.f32 %v4389, %v509
      %v4406 = vmul.f32 %v4392, %v509
      %v4407 = vmul.f32 %v4395, %v509
      %v4408 = vmul.f32 %v4398, %v509
      %v4409 = vmul.f32 %v4401, %v509
      %v4410 = vsub.f32 %v4370, %v4402
      %v4411 = vsub.f32 %v4371, %v4403
      %v4412 = vsub.f32 %v4372, %v4404
      %v4413 = vsub.f32 %v4373, %v4405
      %v4414 = vsub.f32 %v4374, %v4406
      %v4415 = vsub.f32 %v4375, %v4407
      %v4416 = vsub.f32 %v4376, %v4408
      %v4417 = vsub.f32 %v4377, %v4409
      %v4418 = vmul.f32 %v4410, %v4410
      %v4419 = vmul.f32 %v4411, %v4411
      %v4420 = vmul.f32 %v4412, %v4412
      %v4421 = vmul.f32 %v4413, %v4413
      %v4422 = vmul.f32 %v4414, %v4414
      %v4423 = vmul.f32 %v4415, %v4415
      %v4424 = vmul.f32 %v4416, %v4416
      %v4425 = vmul.f32 %v4417, %v4417
      %v4426 = vsel %vm484, %v4418, 0.0
      %4427 = vadd.xlane.f32.xlu0 %v4426
      %v4428 = vpop.xlane.xlu0 %4427
      %v4429 = vsel %vm484, %v4419, 0.0
      %4430 = vadd.xlane.f32.xlu0 %v4429
      %v4431 = vpop.xlane.xlu0 %4430
      %v4432 = vsel %vm484, %v4420, 0.0
      %4433 = vadd.xlane.f32.xlu0 %v4432
      %v4434 = vpop.xlane.xlu0 %4433
      %v4435 = vsel %vm484, %v4421, 0.0
      %4436 = vadd.xlane.f32.xlu0 %v4435
      %v4437 = vpop.xlane.xlu0 %4436
      %v4438 = vsel %vm484, %v4422, 0.0
      %4439 = vadd.xlane.f32.xlu0 %v4438
      %v4440 = vpop.xlane.xlu0 %4439
      %v4441 = vsel %vm484, %v4423, 0.0
      %4442 = vadd.xlane.f32.xlu0 %v4441
      %v4443 = vpop.xlane.xlu0 %4442
      %v4444 = vsel %vm484, %v4424, 0.0
      %4445 = vadd.xlane.f32.xlu0 %v4444
      %v4446 = vpop.xlane.xlu0 %4445
      %v4447 = vsel %vm484, %v4425, 0.0
      %4448 = vadd.xlane.f32.xlu0 %v4447
      %v4449 = vpop.xlane.xlu0 %4448
      %v4450 = vmul.f32 %v4428, %v509
      %v4451 = vmul.f32 %v4431, %v509
      %v4452 = vmul.f32 %v4434, %v509
      %v4453 = vmul.f32 %v4437, %v509
      %v4454 = vmul.f32 %v4440, %v509
      %v4455 = vmul.f32 %v4443, %v509
      %v4456 = vmul.f32 %v4446, %v509
      %v4457 = vmul.f32 %v4449, %v509
      %v4458 = vadd.f32 %v4450, 1e-05
      %v4459 = vadd.f32 %v4451, 1e-05
      %v4460 = vadd.f32 %v4452, 1e-05
      %v4461 = vadd.f32 %v4453, 1e-05
      %v4462 = vadd.f32 %v4454, 1e-05
      %v4463 = vadd.f32 %v4455, 1e-05
      %v4464 = vadd.f32 %v4456, 1e-05
      %v4465 = vadd.f32 %v4457, 1e-05
      %v4466 = vrsqrt.pop %v4458
      %v4467 = vrsqrt.pop %v4459
      %v4468 = vrsqrt.pop %v4460
      %v4469 = vrsqrt.pop %v4461
      %v4470 = vrsqrt.pop %v4462
      %v4471 = vrsqrt.pop %v4463
      %v4472 = vrsqrt.pop %v4464
      %v4473 = vrsqrt.pop %v4465
      %v4474 = vmul.f32 %v4410, %v4466
      %v4475 = vmul.f32 %v4411, %v4467
      %v4476 = vmul.f32 %v4412, %v4468
      %v4477 = vmul.f32 %v4413, %v4469
      %v4478 = vmul.f32 %v4414, %v4470
      %v4479 = vmul.f32 %v4415, %v4471
      %v4480 = vmul.f32 %v4416, %v4472
      %v4481 = vmul.f32 %v4417, %v4473
      %v4482 = vld [vmem:[%s8] sm:$0x1]
      %v4484 = vlaneseq
      %v4485 = vshrl.u32 %v4484, 7
      %v4486 = vsub.s32 0, %v4485
      %v4487 = vrot.slane %v4482, %v4486
      %v4489 = vmul.f32 %v4474, %v4487
      %v4490 = vmul.f32 %v4475, %v4487
      %v4491 = vmul.f32 %v4476, %v4487
      %v4492 = vmul.f32 %v4477, %v4487
      %v4493 = vmul.f32 %v4478, %v4487
      %v4494 = vmul.f32 %v4479, %v4487
      %v4495 = vmul.f32 %v4480, %v4487
      %v4496 = vmul.f32 %v4481, %v4487
      %v4497 = vld [vmem:[%s9] sm:$0x1]
      %v4499 = vlaneseq
      %v4500 = vshrl.u32 %v4499, 7
      %v4501 = vsub.s32 0, %v4500
      %v4502 = vrot.slane %v4497, %v4501
      %v4504 = vadd.f32 %v4489, %v4502
      %v4505 = vadd.f32 %v4490, %v4502
      %v4506 = vadd.f32 %v4491, %v4502
      %v4507 = vadd.f32 %v4492, %v4502
      %v4508 = vadd.f32 %v4493, %v4502
      %v4509 = vadd.f32 %v4494, %v4502
      %v4510 = vadd.f32 %v4495, %v4502
      %v4511 = vadd.f32 %v4496, %v4502
      %v4512 = vld [vmem:[%s10] sm:$0xff]
      %v4513 = vld [vmem:[%s10 + $0x8] sm:$0xff]
      %v4514 = vld [vmem:[%s10 + $0x10] sm:$0xff]
      %v4515 = vld [vmem:[%s10 + $0x18] sm:$0xff]
      %v4516 = vld [vmem:[%s11] sm:$0x1]
      %v4518 = vlaneseq
      %v4519 = vshrl.u32 %v4518, 7
      %v4520 = vsub.s32 0, %v4519
      %v4521 = vrot.slane %v4516, %v4520
      %v4524 = vsel %vm484, %v4504, 0
      %v4527 = vsel %vm484, %v4505, 0
      %v4530 = vsel %vm484, %v4506, 0
      %v4533 = vsel %vm484, %v4507, 0
      %v4536 = vsel %vm484, %v4508, 0
      %v4539 = vsel %vm484, %v4509, 0
      %v4542 = vsel %vm484, %v4510, 0
      %v4545 = vsel %vm484, %v4511, 0
      %4547 = vmatprep.subr.mxu0 0.0
      %4548 = vmatpush1.msra.mxu0 0.0
      %4549 = vmatprep.subr.mxu0 0.0
      %4550 = vmatpush1.msra.mxu0 0.0
      %4551 = vmatprep.subr.mxu0 0.0
      %4552 = vmatpush1.msra.mxu0 0.0
      %4553 = vmatprep.subr.mxu0 0.0
      %4554 = vmatpush1.msra.mxu0 0.0
      %4555 = vmatprep.subr.mxu0 0.0
      %4556 = vmatpush1.msra.mxu0 0.0
      %4557 = vmatprep.subr.mxu0 0.0
      %4558 = vmatpush1.msra.mxu0 0.0
      %4559 = vmatprep.subr.mxu0 0.0
      %4560 = vmatpush1.msra.mxu0 0.0
      %4561 = vmatprep.subr.mxu0 0.0
      %4562 = vmatpush1.msra.mxu0 0.0
      %4563 = vmatprep.subr.mxu0 0.0
      %4564 = vmatpush1.msra.mxu0 0.0
      %4565 = vmatprep.subr.mxu0 0.0
      %4566 = vmatpush1.msra.mxu0 0.0
      %4567 = vmatprep.subr.mxu0 0.0
      %4568 = vmatpush1.msra.mxu0 0.0
      %4569 = vmatprep.subr.mxu0 0.0
      %4570 = vmatpush1.msra.mxu0 0.0
      %4571 = vmatprep.subr.mxu0 0.0
      %4572 = vmatpush1.msra.mxu0 %v4515
      %4573 = vmatprep.subr.mxu0 0.0
      %4574 = vmatpush1.msra.mxu0 %v4514
      %4575 = vmatprep.subr.mxu0 0.0
      %4576 = vmatpush1.msra.mxu0 %v4513
      %4577 = vmatprep.subr.mxu0 0.0
      %4578 = vmatpush1.msra.mxu0 %v4512
      %4579 = vmatprep.subr.mxu0 0.0
      %4580 = vmatpush2.msra.mxu0 0.0
      %4581 = vmatprep.subr.mxu0 0.0
      %4582 = vmatpush2.msra.mxu0 0.0
      %4583 = vmatprep.subr.mxu0 0.0
      %4584 = vmatpush2.msra.mxu0 0.0
      %4585 = vmatprep.subr.mxu0 0.0
      %4586 = vmatpush2.msra.mxu0 0.0
      %4587 = vmatprep.subr.mxu0 0.0
      %4588 = vmatpush2.msra.mxu0 0.0
      %4589 = vmatprep.subr.mxu0 0.0
      %4590 = vmatpush2.msra.mxu0 0.0
      %4591 = vmatprep.subr.mxu0 0.0
      %4592 = vmatpush2.msra.mxu0 0.0
      %4593 = vmatprep.subr.mxu0 0.0
      %4594 = vmatpush2.msra.mxu0 0.0
      %4595 = vmatprep.subr.mxu0 0.0
      %4596 = vmatpush2.msra.mxu0 0.0
      %4597 = vmatprep.subr.mxu0 0.0
      %4598 = vmatpush2.msra.mxu0 0.0
      %4599 = vmatprep.subr.mxu0 0.0
      %4600 = vmatpush2.msra.mxu0 0.0
      %4601 = vmatprep.subr.mxu0 0.0
      %4602 = vmatpush2.msra.mxu0 0.0
      %4603 = vmatprep.subr.mxu0 0.0
      %4604 = vmatpush2.msra.mxu0 0.0
      %4605 = vmatprep.subr.mxu0 0.0
      %4606 = vmatpush2.msra.mxu0 0.0
      %4607 = vmatprep.subr.mxu0 0.0
      %4608 = vmatpush2.msra.mxu0 0.0
      %4609 = vmatprep.subr.mxu0 0.0
      %4610 = vmatpush2.msra.mxu0 0.0
      %4611 = vmatprep.mubr.f32.mxu0 0.0
      %4612 = vmatmul.mubr.f32.gmra.mxu0 %v4524
      %v4613 = vpop.f32.mrf.mxu0
      %v4614 = vadd.f32 %v4521, %v4613
      %v4615 = vpop.f32.mrf.mxu0
      %4616 = vmatprep.mubr.f32.mxu0 0.0
      %4617 = vmatmul.mubr.f32.gmra.mxu0 %v4527
      %v4618 = vpop.f32.mrf.mxu0
      %v4619 = vadd.f32 %v4521, %v4618
      %v4620 = vpop.f32.mrf.mxu0
      %4621 = vmatprep.mubr.f32.mxu0 0.0
      %4622 = vmatmul.mubr.f32.gmra.mxu0 %v4530
      %v4623 = vpop.f32.mrf.mxu0
      %v4624 = vadd.f32 %v4521, %v4623
      %v4625 = vpop.f32.mrf.mxu0
      %4626 = vmatprep.mubr.f32.mxu0 0.0
      %4627 = vmatmul.mubr.f32.gmra.mxu0 %v4533
      %v4628 = vpop.f32.mrf.mxu0
      %v4629 = vadd.f32 %v4521, %v4628
      %v4630 = vpop.f32.mrf.mxu0
      %4631 = vmatprep.mubr.f32.mxu0 0.0
      %4632 = vmatmul.mubr.f32.gmra.mxu0 %v4536
      %v4633 = vpop.f32.mrf.mxu0
      %v4634 = vadd.f32 %v4521, %v4633
      %v4635 = vpop.f32.mrf.mxu0
      %4636 = vmatprep.mubr.f32.mxu0 0.0
      %4637 = vmatmul.mubr.f32.gmra.mxu0 %v4539
      %v4638 = vpop.f32.mrf.mxu0
      %v4639 = vadd.f32 %v4521, %v4638
      %v4640 = vpop.f32.mrf.mxu0
      %4641 = vmatprep.mubr.f32.mxu0 0.0
      %4642 = vmatmul.mubr.f32.gmra.mxu0 %v4542
      %v4643 = vpop.f32.mrf.mxu0
      %v4644 = vadd.f32 %v4521, %v4643
      %v4645 = vpop.f32.mrf.mxu0
      %4646 = vmatprep.mubr.f32.mxu0 0.0
      %4647 = vmatmul.mubr.f32.gmra.mxu0 %v4545
      %v4648 = vpop.f32.mrf.mxu0
      %v4649 = vadd.f32 %v4521, %v4648
      %v4650 = vpop.f32.mrf.mxu0
      %4651 = vdwg.mxu0
      %v4652 = vmul.f32 %v4614, 0.5
      %v4653 = vmul.f32 %v4619, 0.5
      %v4654 = vmul.f32 %v4624, 0.5
      %v4655 = vmul.f32 %v4629, 0.5
      %v4656 = vmul.f32 %v4634, 0.5
      %v4657 = vmul.f32 %v4639, 0.5
      %v4658 = vmul.f32 %v4644, 0.5
      %v4659 = vmul.f32 %v4649, 0.5
      %v4660 = vmul.f32 %v4614, 0.70710677
      %v4661 = vmul.f32 %v4619, 0.70710677
      %v4662 = vmul.f32 %v4624, 0.70710677
      %v4663 = vmul.f32 %v4629, 0.70710677
      %v4664 = vmul.f32 %v4634, 0.70710677
      %v4665 = vmul.f32 %v4639, 0.70710677
      %v4666 = vmul.f32 %v4644, 0.70710677
      %v4667 = vmul.f32 %v4649, 0.70710677
      %v4668 = verf.f32.pop %v4660
      %v4669 = verf.f32.pop %v4661
      %v4670 = verf.f32.pop %v4662
      %v4671 = verf.f32.pop %v4663
      %v4672 = verf.f32.pop %v4664
      %v4673 = verf.f32.pop %v4665
      %v4674 = verf.f32.pop %v4666
      %v4675 = verf.f32.pop %v4667
      %v4676 = vadd.f32 %v4668, 1.0
      %v4677 = vadd.f32 %v4669, 1.0
      %v4678 = vadd.f32 %v4670, 1.0
      %v4679 = vadd.f32 %v4671, 1.0
      %v4680 = vadd.f32 %v4672, 1.0
      %v4681 = vadd.f32 %v4673, 1.0
      %v4682 = vadd.f32 %v4674, 1.0
      %v4683 = vadd.f32 %v4675, 1.0
      %v4684 = vmul.f32 %v4652, %v4676
      %v4685 = vmul.f32 %v4653, %v4677
      %v4686 = vmul.f32 %v4654, %v4678
      %v4687 = vmul.f32 %v4655, %v4679
      %v4688 = vmul.f32 %v4656, %v4680
      %v4689 = vmul.f32 %v4657, %v4681
      %v4690 = vmul.f32 %v4658, %v4682
      %v4691 = vmul.f32 %v4659, %v4683
      %v4692 = vld [vmem:[%s12] sm:$0xff]
      %v4693 = vld [vmem:[%s12 + $0x8] sm:$0xff]
      %v4694 = vld [vmem:[%s12 + $0x10] sm:$0xff]
      %v4695 = vld [vmem:[%s12 + $0x18] sm:$0xff]
      %v4696 = vld [vmem:[%s12 + $0x20] sm:$0xff]
      %v4697 = vld [vmem:[%s12 + $0x28] sm:$0xff]
      %v4698 = vld [vmem:[%s12 + $0x30] sm:$0xff]
      %v4699 = vld [vmem:[%s12 + $0x38] sm:$0xff]
      %v4700 = vld [vmem:[%s12 + $0x40] sm:$0xff]
      %v4701 = vld [vmem:[%s12 + $0x48] sm:$0xff]
      %v4702 = vld [vmem:[%s12 + $0x50] sm:$0xff]
      %v4703 = vld [vmem:[%s12 + $0x58] sm:$0xff]
      %v4704 = vld [vmem:[%s12 + $0x60] sm:$0xff]
      %v4705 = vld [vmem:[%s12 + $0x68] sm:$0xff]
      %v4706 = vld [vmem:[%s12 + $0x70] sm:$0xff]
      %v4707 = vld [vmem:[%s12 + $0x78] sm:$0xff]
      %v4708 = vld [vmem:[%s13] sm:$0x1]
      %v4710 = vlaneseq
      %v4711 = vshrl.u32 %v4710, 7
      %v4712 = vsub.s32 0, %v4711
      %v4713 = vrot.slane %v4708, %v4712
      %4715 = vmatprep.subr.mxu0 0.0
      %4716 = vmatpush1.msra.mxu0 %v4707
      %4717 = vmatprep.subr.mxu0 0.0
      %4718 = vmatpush1.msra.mxu0 %v4706
      %4719 = vmatprep.subr.mxu0 0.0
      %4720 = vmatpush1.msra.mxu0 %v4705
      %4721 = vmatprep.subr.mxu0 0.0
      %4722 = vmatpush1.msra.mxu0 %v4704
      %4723 = vmatprep.subr.mxu0 0.0
      %4724 = vmatpush1.msra.mxu0 %v4703
      %4725 = vmatprep.subr.mxu0 0.0
      %4726 = vmatpush1.msra.mxu0 %v4702
      %4727 = vmatprep.subr.mxu0 0.0
      %4728 = vmatpush1.msra.mxu0 %v4701
      %4729 = vmatprep.subr.mxu0 0.0
      %4730 = vmatpush1.msra.mxu0 %v4700
      %4731 = vmatprep.subr.mxu0 0.0
      %4732 = vmatpush1.msra.mxu0 %v4699
      %4733 = vmatprep.subr.mxu0 0.0
      %4734 = vmatpush1.msra.mxu0 %v4698
      %4735 = vmatprep.subr.mxu0 0.0
      %4736 = vmatpush1.msra.mxu0 %v4697
      %4737 = vmatprep.subr.mxu0 0.0
      %4738 = vmatpush1.msra.mxu0 %v4696
      %4739 = vmatprep.subr.mxu0 0.0
      %4740 = vmatpush1.msra.mxu0 %v4695
      %4741 = vmatprep.subr.mxu0 0.0
      %4742 = vmatpush1.msra.mxu0 %v4694
      %4743 = vmatprep.subr.mxu0 0.0
      %4744 = vmatpush1.msra.mxu0 %v4693
      %4745 = vmatprep.subr.mxu0 0.0
      %4746 = vmatpush1.msra.mxu0 %v4692
      %4747 = vmatprep.subr.mxu0 0.0
      %4748 = vmatpush2.msra.mxu0 0.0
      %4749 = vmatprep.subr.mxu0 0.0
      %4750 = vmatpush2.msra.mxu0 0.0
      %4751 = vmatprep.subr.mxu0 0.0
      %4752 = vmatpush2.msra.mxu0 0.0
      %4753 = vmatprep.subr.mxu0 0.0
      %4754 = vmatpush2.msra.mxu0 0.0
      %4755 = vmatprep.subr.mxu0 0.0
      %4756 = vmatpush2.msra.mxu0 0.0
      %4757 = vmatprep.subr.mxu0 0.0
      %4758 = vmatpush2.msra.mxu0 0.0
      %4759 = vmatprep.subr.mxu0 0.0
      %4760 = vmatpush2.msra.mxu0 0.0
      %4761 = vmatprep.subr.mxu0 0.0
      %4762 = vmatpush2.msra.mxu0 0.0
      %4763 = vmatprep.subr.mxu0 0.0
      %4764 = vmatpush2.msra.mxu0 0.0
      %4765 = vmatprep.subr.mxu0 0.0
      %4766 = vmatpush2.msra.mxu0 0.0
      %4767 = vmatprep.subr.mxu0 0.0
      %4768 = vmatpush2.msra.mxu0 0.0
      %4769 = vmatprep.subr.mxu0 0.0
      %4770 = vmatpush2.msra.mxu0 0.0
      %4771 = vmatprep.subr.mxu0 0.0
      %4772 = vmatpush2.msra.mxu0 0.0
      %4773 = vmatprep.subr.mxu0 0.0
      %4774 = vmatpush2.msra.mxu0 0.0
      %4775 = vmatprep.subr.mxu0 0.0
      %4776 = vmatpush2.msra.mxu0 0.0
      %4777 = vmatprep.subr.mxu0 0.0
      %4778 = vmatpush2.msra.mxu0 0.0
      %4779 = vmatprep.mubr.f32.mxu0 0.0
      %4780 = vmatmul.mubr.f32.gmra.mxu0 %v4684
      %v4781 = vpop.f32.mrf.mxu0
      %v4782 = vadd.f32 %v4713, %v4781
      %v4783 = vpop.f32.mrf.mxu0
      %4784 = vmatprep.mubr.f32.mxu0 0.0
      %4785 = vmatmul.mubr.f32.gmra.mxu0 %v4685
      %v4786 = vpop.f32.mrf.mxu0
      %v4787 = vadd.f32 %v4713, %v4786
      %v4788 = vpop.f32.mrf.mxu0
      %4789 = vmatprep.mubr.f32.mxu0 0.0
      %4790 = vmatmul.mubr.f32.gmra.mxu0 %v4686
      %v4791 = vpop.f32.mrf.mxu0
      %v4792 = vadd.f32 %v4713, %v4791
      %v4793 = vpop.f32.mrf.mxu0
      %4794 = vmatprep.mubr.f32.mxu0 0.0
      %4795 = vmatmul.mubr.f32.gmra.mxu0 %v4687
      %v4796 = vpop.f32.mrf.mxu0
      %v4797 = vadd.f32 %v4713, %v4796
      %v4798 = vpop.f32.mrf.mxu0
      %4799 = vmatprep.mubr.f32.mxu0 0.0
      %4800 = vmatmul.mubr.f32.gmra.mxu0 %v4688
      %v4801 = vpop.f32.mrf.mxu0
      %v4802 = vadd.f32 %v4713, %v4801
      %v4803 = vpop.f32.mrf.mxu0
      %4804 = vmatprep.mubr.f32.mxu0 0.0
      %4805 = vmatmul.mubr.f32.gmra.mxu0 %v4689
      %v4806 = vpop.f32.mrf.mxu0
      %v4807 = vadd.f32 %v4713, %v4806
      %v4808 = vpop.f32.mrf.mxu0
      %4809 = vmatprep.mubr.f32.mxu0 0.0
      %4810 = vmatmul.mubr.f32.gmra.mxu0 %v4690
      %v4811 = vpop.f32.mrf.mxu0
      %v4812 = vadd.f32 %v4713, %v4811
      %v4813 = vpop.f32.mrf.mxu0
      %4814 = vmatprep.mubr.f32.mxu0 0.0
      %4815 = vmatmul.mubr.f32.gmra.mxu0 %v4691
      %v4816 = vpop.f32.mrf.mxu0
      %v4817 = vadd.f32 %v4713, %v4816
      %v4818 = vpop.f32.mrf.mxu0
      %4819 = vdwg.mxu0
      %v4820 = vadd.f32 %v4370, %v4782
      %v4821 = vadd.f32 %v4371, %v4787
      %v4822 = vadd.f32 %v4372, %v4792
      %v4823 = vadd.f32 %v4373, %v4797
      %v4824 = vadd.f32 %v4374, %v4802
      %v4825 = vadd.f32 %v4375, %v4807
      %v4826 = vadd.f32 %v4376, %v4812
      %v4827 = vadd.f32 %v4377, %v4817
      %4828 = vst.msk [vmem:[%s474] sm:$0xff] %vm484, %v4820
      %4829 = vst.msk [vmem:[%s474 + $0x8] sm:$0xff] %vm484, %v4821
      %4830 = vst.msk [vmem:[%s474 + $0x10] sm:$0xff] %vm484, %v4822
      %4831 = vst.msk [vmem:[%s474 + $0x18] sm:$0xff] %vm484, %v4823
      %4832 = vst.msk [vmem:[%s474 + $0x20] sm:$0xff] %vm484, %v4824
      %4833 = vst.msk [vmem:[%s474 + $0x28] sm:$0xff] %vm484, %v4825
      %4834 = vst.msk [vmem:[%s474 + $0x30] sm:$0xff] %vm484, %v4826
      %4835 = vst.msk [vmem:[%s474 + $0x38] sm:$0xff] %vm484, %v4827
      %s4836 = smul.u32 4, %s25
      %p4837 = scmp.lt.s32.totalorder %s4836, 7
      %s4838 = scalar_select %p4837, %s4836, 7
      %s4839 = smul.addr %s4838, 2
      %s4840 = smul.addr %s4839, 8
      %s4841 = scalar_lea.vmem %s14, %s4840
      // Predicated region
      $region77: #{crossformer_block.1} parent=75 // pred_check
        %p4842 = pneg %p342
      $region78: #{crossformer_block.1} parent=75 // pred_check_branch
        %4844 = sbr.rel (%p4842) target = $region80
      $region79: #{crossformer_block.1} parent=75 // pred_region
        %s4845 = smul.u32 4, %s25
      $region80: #{crossformer_block.1} parent=75 // pred_fallthru
        _
    $region76: #{crossformer_block.1} parent=5 // pred_fallthru
      _
    %p4846 = scmp.le.s32.totalorder 2, %s20
    // Predicated region
    $region81: #{crossformer_block.1} parent=5 // pred_check
      %p4847 = pneg %p4846
    $region82: #{crossformer_block.1} parent=5 // pred_check_branch
      %4849 = sbr.rel (%p4847) target = $region84
    $region83: #{crossformer_block.1} parent=5 // pred_region
      %s4850 = ssub.s32 %s20, 2
      // Predicated region
      $region85: #{crossformer_block.1} parent=83 // pred_check
        %p4851 = pneg %p348
      $region86: #{crossformer_block.1} parent=83 // pred_check_branch
        %4853 = sbr.rel (%p4851) target = $region88
      $region87: #{crossformer_block.1} parent=83 // pred_region
        %s4854 = smul.u32 4, %s26
        %p4855 = scmp.lt.s32.totalorder %s4854, 7
        %s4856 = scalar_select %p4855, %s4854, 7
        %s4857 = smul.addr %s4856, 2
        %s4858 = smul.addr %s4857, 8
        %s4859 = scalar_lea.vmem %s14, %s4858
      $region88: #{crossformer_block.1} parent=83 // pred_fallthru
        _
    $region84: #{crossformer_block.1} parent=5 // pred_fallthru
      _
  $region6: #{crossformer_block.1} parent=0 // loop_footer
    %s24 = sadd.s32 1, %s20
  $region7: #{crossformer_block.1} parent=0 // loop_footer_branch
    %19 = sbr.rel target = $region3
  $region8: #{crossformer_block.1} parent=0 // loop_exit
    _

</llo_original>
